<compile_context>
chip_gen: v7x
topology: tpu7x:2x2x1
jax: 0.10.0
libtpu: 0.0.40
codegen_flags: <defaults>
</compile_context>

<pallas_src>
import functools

import jax
import jax.numpy as jnp
from jax.experimental import pallas as pl
from jax.experimental.pallas import tpu as pltpu


def _round_up(n, m):
    return ((n + m - 1) // m) * m


def lstm_kernel(xp_ref, h0_ref, c0_ref, mh_ref, wh_hbm,
                out_ref, hN_ref, cN_ref,
                h_sc, c_sc, wh_sc, wh_sem,
                *, apply_mask):
    ti = pl.program_id(1)                       # time-block index ("arbitrary")
    t_blk = xp_ref.shape[0]
    mm_dtype = wh_sc.dtype

    # First time-block of each batch tile: make wh resident (single-buffered)
    # and (re)initialize the recurrent carry.
    @pl.when(ti == 0)
    def _():
        cp = pltpu.make_async_copy(wh_hbm, wh_sc, wh_sem)
        cp.start()
        h_sc[...] = h0_ref[...].astype(jnp.float32)
        c_sc[...] = c0_ref[...].astype(jnp.float32)
        cp.wait()

    # Loop-invariant operands, loaded once per grid step.
    # TODO(synk): use pltpu.matmul_push_rhs/acc_lhs to keep wh staged in the MXU
    # across the unrolled steps instead of relying on Mosaic hoisting.
    wh = wh_sc[...]                             # (4, Hp, Hp), mm_dtype
    mh = mh_ref[...] if apply_mask else None    # (4, b_tile, Hp), f32
    h = h_sc[...]                               # (b_tile, Hp), f32 carry
    c = c_sc[...]

    for s in range(t_blk):                      # unrolled serial recurrence
        if apply_mask:
            hm = h[None, :, :] * mh             # per-gate masked h  (4, b, Hp)
        else:
            hm = jnp.broadcast_to(h[None, :, :], (4,) + h.shape)
        # 4 independent (b, Hp) x (Hp, Hp) matmuls, f32 accumulation.
        g = jax.lax.dot_general(
            hm.astype(mm_dtype), wh,
            dimension_numbers=(((2,), (1,)), ((0,), (0,))),
            preferred_element_type=jnp.float32,
        ) + xp_ref[s].astype(jnp.float32)       # (4, b, Hp)

        ig = jax.nn.sigmoid(g[0])
        fg = jax.nn.sigmoid(g[1])
        og = jax.nn.sigmoid(g[2])
        ng = jnp.tanh(g[3])
        c = fg * c + ig * ng                    # f32 carry
        h = og * jnp.tanh(c)
        out_ref[s] = h.astype(out_ref.dtype)    # lane-dense store (Hp % 128 == 0)

    h_sc[...] = h
    c_sc[...] = c

    @pl.when(ti == pl.num_programs(1) - 1)
    def _():
        hN_ref[...] = h.astype(hN_ref.dtype)
        cN_ref[...] = c.astype(cN_ref.dtype)


def lstm_forward(x, h0, c0, wx, wh, bx, bh, maskx, maskh, *,
                 use_masks=True, mm_dtype=jnp.float32,
                 t_blk=None, b_tile=None):
    """use_masks=False is the statically-guarded eval fast path (all-ones masks)."""
    T, B, D = x.shape
    H = h0.shape[1]
    Bp = _round_up(B, 8)        # sublane alignment
    Hp = _round_up(H, 128)      # lane alignment -> lane-dense gate slices & stores
    f32 = jnp.float32
    out_dtype = x.dtype

    if t_blk is None:
        t_blk = max(d for d in (32, 16, 8, 4, 2, 1) if T % d == 0)
    assert T % t_blk == 0
    # TODO(synk): mask tail time steps with pl.when so t_blk need not divide T.

    if b_tile is None:
        b_tile = Bp // 2 if (Bp >= 16 and (Bp // 2) % 8 == 0) else Bp
    assert Bp % b_tile == 0
    n_bt, n_tb = Bp // b_tile, T // t_blk

    # ---- parameter packing (gate-stacked, lane-padded, once per call) ----
    wx_g = jnp.zeros((4, D, Hp), f32).at[:, :, :H].set(wx.astype(f32))
    wh_g = jnp.zeros((4, Hp, Hp), mm_dtype).at[:, :H, :H].set(wh.astype(mm_dtype))
    b_g = jnp.zeros((4, Hp), f32).at[:, :H].set((bx + bh).astype(f32))

    h0_p = jnp.zeros((Bp, Hp), f32).at[:B, :H].set(h0.astype(f32))
    c0_p = jnp.zeros((Bp, Hp), f32).at[:B, :H].set(c0.astype(f32))

    # ---- hoisted x projection: one XLA GEMM over all T (runs at full MXU
    #      utilization outside the serial recurrence); biases folded. ----
    if use_masks:
        mx_g = maskx.reshape(4, B, D).astype(f32)
        xm = x.astype(f32)[:, None, :, :] * mx_g[None]           # (T, 4, B, D)
        xp = jnp.einsum('tgbd,gdh->tgbh', xm, wx_g)              # (T, 4, B, Hp)
    else:
        xp = jnp.einsum('tbd,gdh->tgbh', x.astype(f32), wx_g)
    xp = xp + b_g[None, :, None, :]
    # Stream xp in mm_dtype (bf16 halves the dominant HBM stream).
    xp_p = jnp.zeros((T, 4, Bp, Hp), mm_dtype).at[:, :, :B, :].set(xp.astype(mm_dtype))

    mh_p = jnp.zeros((4, Bp, Hp), f32)
    if use_masks:
        mh_p = mh_p.at[:, :B, :H].set(maskh.reshape(4, B, H).astype(f32))

    # ---- explicit VMEM budget (review: re-derive for v7x 64 MiB) ----
    mm_bytes = jnp.dtype(mm_dtype).itemsize
    out_bytes = jnp.dtype(out_dtype).itemsize
    est = (2 * t_blk * 4 * b_tile * Hp * mm_bytes      # xp blocks (double-buffered)
           + 2 * t_blk * b_tile * Hp * out_bytes       # out blocks
           + 4 * Hp * Hp * mm_bytes                    # resident wh scratch
           + 2 * 4 * b_tile * Hp * 4                   # maskh blocks
           + 4 * 2 * b_tile * Hp * 4                   # h0/c0 blocks
           + 2 * b_tile * Hp * 4                       # h/c carries
           + 4 * 2 * b_tile * Hp * 4                   # hN/cN blocks
           + (2 << 20))
    vmem_limit = int(min(max(2 * est, 32 << 20), 100 << 20))

    in_specs = [
        pl.BlockSpec((t_blk, 4, b_tile, Hp), lambda bi, ti: (ti, 0, bi, 0)),  # xp
        pl.BlockSpec((b_tile, Hp), lambda bi, ti: (bi, 0)),                   # h0
        pl.BlockSpec((b_tile, Hp), lambda bi, ti: (bi, 0)),                   # c0
        pl.BlockSpec((4, b_tile, Hp), lambda bi, ti: (0, bi, 0)),             # maskh
        pl.BlockSpec(memory_space=pl.ANY),                                    # wh (HBM)
    ]
    out_specs = (
        pl.BlockSpec((t_blk, b_tile, Hp), lambda bi, ti: (ti, bi, 0)),        # outputs
        pl.BlockSpec((b_tile, Hp), lambda bi, ti: (bi, 0)),                   # final h
        pl.BlockSpec((b_tile, Hp), lambda bi, ti: (bi, 0)),                   # final c
    )
    out_shapes = (
        jax.ShapeDtypeStruct((T, Bp, Hp), out_dtype),
        jax.ShapeDtypeStruct((Bp, Hp), f32),
        jax.ShapeDtypeStruct((Bp, Hp), f32),
    )

    kernel = functools.partial(lstm_kernel, apply_mask=use_masks)
    outs, h_last, c_last = pl.pallas_call(
        kernel,
        out_shape=out_shapes,
        grid_spec=pltpu.PrefetchScalarGridSpec(
            num_scalar_prefetch=0,
            grid=(n_bt, n_tb),                         # (batch tiles, time blocks)
            in_specs=in_specs,
            out_specs=out_specs,
            scratch_shapes=[
                pltpu.VMEM((b_tile, Hp), f32),         # h carry (f32)
                pltpu.VMEM((b_tile, Hp), f32),         # c carry (f32)
                pltpu.VMEM((4, Hp, Hp), mm_dtype),     # resident wh (single copy)
                pltpu.SemaphoreType.DMA(()),           # wh copy semaphore
            ],
        ),
        compiler_params=pltpu.CompilerParams(
            dimension_semantics=("parallel", "arbitrary"),  # batch ∥, time serial
            vmem_limit_bytes=vmem_limit,
        ),
    )(xp_p, h0_p, c0_p, mh_p, wh_g)

    return (outs[:, :B, :H].astype(x.dtype),
            (h_last[:B, :H].astype(h0.dtype), c_last[:B, :H].astype(c0.dtype)))


def lstm_reference(x, h, c, wx, wh, bx, bh, maskx, maskh):
    T, B, _ = x.shape
    outs = []
    for t in range(T):
        xt = x[t]
        g = []
        for k in range(4):
            mx = maskx[k * B:(k + 1) * B]
            mh = maskh[k * B:(k + 1) * B]
            g.append((xt * mx) @ wx[k] + bx[k] + (h * mh) @ wh[k] + bh[k])
        i = jax.nn.sigmoid(g[0])
        f = jax.nn.sigmoid(g[1])
        o = jax.nn.sigmoid(g[2])
        n = jnp.tanh(g[3])
        c = f * c + i * n
        h = o * jnp.tanh(c)
        outs.append(h)
    return jnp.stack(outs), (h, c)


if __name__ == "__main__":
    T, B, D, H = 8, 2, 16, 32
    winit = 0.1
    key = jax.random.PRNGKey(0)
    kx, kh, kc, kwx, kwh, kbx, kbh, kmx, kmh = jax.random.split(key, 9)

    x = jax.random.normal(kx, (T, B, D), jnp.float32)
    h0 = jax.random.normal(kh, (B, H), jnp.float32)
    c0 = jax.random.normal(kc, (B, H), jnp.float32)

    # Deterministic parameter init (module leaves params uninitialized; use U(-winit, winit)).
    wx = jax.random.uniform(kwx, (4, D, H), jnp.float32, -winit, winit)
    wh = jax.random.uniform(kwh, (4, H, H), jnp.float32, -winit, winit)
    bx = jax.random.uniform(kbx, (4, H), jnp.float32, -winit, winit)
    bh = jax.random.uniform(kbh, (4, H), jnp.float32, -winit, winit)

    # --- test 1: training-style variational dropout masks (general masked path, f32) ---
    # TODO(synk): in a full training setup the Bernoulli masks are generated on device.
    maskx_tr = (jax.random.bernoulli(kmx, 0.5, (4 * B, D)) / 0.5).astype(jnp.float32)
    maskh_tr = (jax.random.bernoulli(kmh, 0.7, (4 * B, H)) / 0.7).astype(jnp.float32)
    outs, (hN, cN) = lstm_forward(x, h0, c0, wx, wh, bx, bh, maskx_tr, maskh_tr,
                                  use_masks=True, mm_dtype=jnp.float32)
    jax.block_until_ready((outs, hN, cN))
    ref_outs, (ref_h, ref_c) = lstm_reference(x, h0, c0, wx, wh, bx, bh, maskx_tr, maskh_tr)
    assert jnp.allclose(outs, ref_outs, atol=1e-4, rtol=1e-4)
    assert jnp.allclose(hN, ref_h, atol=1e-4, rtol=1e-4)
    assert jnp.allclose(cN, ref_c, atol=1e-4, rtol=1e-4)

    # --- test 2: eval mode (all-ones masks) via the statically-guarded fast path, f32 ---
    maskx_ev = jnp.ones((4 * B, D), jnp.float32)
    maskh_ev = jnp.ones((4 * B, H), jnp.float32)
    outs2, (hN2, cN2) = lstm_forward(x, h0, c0, wx, wh, bx, bh, maskx_ev, maskh_ev,
                                     use_masks=False, mm_dtype=jnp.float32)
    jax.block_until_ready((outs2, hN2, cN2))
    ref2_outs, (ref2_h, ref2_c) = lstm_reference(x, h0, c0, wx, wh, bx, bh, maskx_ev, maskh_ev)
    assert jnp.allclose(outs2, ref2_outs, atol=1e-4, rtol=1e-4)
    assert jnp.allclose(hN2, ref2_h, atol=1e-4, rtol=1e-4)
    assert jnp.allclose(cN2, ref2_c, atol=1e-4, rtol=1e-4)

    # --- test 3: bf16 matmul operands / f32 carries (perf config), loose tolerance ---
    outs3, (hN3, cN3) = lstm_forward(x, h0, c0, wx, wh, bx, bh, maskx_ev, maskh_ev,
                                     use_masks=False, mm_dtype=jnp.bfloat16)
    jax.block_until_ready((outs3, hN3, cN3))
    assert jnp.allclose(outs3, ref2_outs, atol=5e-2, rtol=5e-2)
    assert jnp.allclose(hN3, ref2_h, atol=5e-2, rtol=5e-2)
    assert jnp.allclose(cN3, ref2_c, atol=5e-2, rtol=5e-2)

    print("KERNEL_OK")
</pallas_src>

<mosaic_0001>
module attributes {stable_mosaic.version = 11 : i64} {
  func.func @lstm_kernel(%arg0: i32, %arg1: i32, %arg2: memref<8x4x8x128xf32, #tpu.memory_space<vmem>>, %arg3: memref<8x128xf32, #tpu.memory_space<vmem>>, %arg4: memref<8x128xf32, #tpu.memory_space<vmem>>, %arg5: memref<4x8x128xf32, #tpu.memory_space<vmem>>, %arg6: memref<4x128x128xf32, #tpu.memory_space<any>>, %arg7: memref<8x8x128xf32, #tpu.memory_space<vmem>>, %arg8: memref<8x128xf32, #tpu.memory_space<vmem>>, %arg9: memref<8x128xf32, #tpu.memory_space<vmem>>, %arg10: memref<8x128xf32, #tpu.memory_space<vmem>>, %arg11: memref<8x128xf32, #tpu.memory_space<vmem>>, %arg12: memref<4x128x128xf32, #tpu.memory_space<vmem>>, %arg13: memref<!tpu.dma_semaphore, #tpu.memory_space<semaphore_mem>>) attributes {dimension_semantics = [#tpu.dimension_semantics<parallel>, #tpu.dimension_semantics<arbitrary>], iteration_bounds = array<i64: 1, 1>, scalar_prefetch = 0 : i64, scratch_operands = 4 : i64, tpu.core_type = #tpu.core_type<tc>, window_params = [{transform_indices = @transform_0, window_bounds = array<i64: 8, 4, 8, 128>}, {transform_indices = @transform_1, window_bounds = array<i64: 8, 128>}, {transform_indices = @transform_2, window_bounds = array<i64: 8, 128>}, {transform_indices = @transform_3, window_bounds = array<i64: 4, 8, 128>}, {}, {transform_indices = @transform_5, window_bounds = array<i64: 8, 8, 128>}, {transform_indices = @transform_6, window_bounds = array<i64: 8, 128>}, {transform_indices = @transform_7, window_bounds = array<i64: 8, 128>}]} {
    %c0_i32 = arith.constant 0 : i32
    %0 = arith.cmpi eq, %arg1, %c0_i32 : i32
    %1 = arith.extui %0 : i1 to i32
    %c0_i32_0 = arith.constant 0 : i32
    %2 = arith.cmpi ne, %1, %c0_i32_0 : i32
    scf.if %2 {
      tpu.enqueue_dma source(%arg6 : memref<4x128x128xf32, #tpu.memory_space<any>>) target(%arg12 : memref<4x128x128xf32, #tpu.memory_space<vmem>>) target_semaphore(%arg13 : memref<!tpu.dma_semaphore, #tpu.memory_space<semaphore_mem>>)
      %c0_96 = arith.constant 0 : index
      %c0_97 = arith.constant 0 : index
      %324 = vector.load %arg3[%c0_96, %c0_97] : memref<8x128xf32, #tpu.memory_space<vmem>>, vector<8x128xf32>
      %c0_98 = arith.constant 0 : index
      %c0_99 = arith.constant 0 : index
      %325 = vector.load %arg10[%c0_98, %c0_99] : memref<8x128xf32, #tpu.memory_space<vmem>>, vector<8x128xf32>
      tpu.vector_store %arg10[%c0_98, %c0_99], %324 {strides = array<i32>} : memref<8x128xf32, #tpu.memory_space<vmem>>, vector<8x128xf32>,
      %c0_100 = arith.constant 0 : index
      %c0_101 = arith.constant 0 : index
      %326 = vector.load %arg4[%c0_100, %c0_101] : memref<8x128xf32, #tpu.memory_space<vmem>>, vector<8x128xf32>
      %c0_102 = arith.constant 0 : index
      %c0_103 = arith.constant 0 : index
      %327 = vector.load %arg11[%c0_102, %c0_103] : memref<8x128xf32, #tpu.memory_space<vmem>>, vector<8x128xf32>
      tpu.vector_store %arg11[%c0_102, %c0_103], %326 {strides = array<i32>} : memref<8x128xf32, #tpu.memory_space<vmem>>, vector<8x128xf32>,
      tpu.wait_dma2 semaphore(%arg13 : memref<!tpu.dma_semaphore, #tpu.memory_space<semaphore_mem>>) src(%arg6 : memref<4x128x128xf32, #tpu.memory_space<any>>) dst(%arg12 : memref<4x128x128xf32, #tpu.memory_space<vmem>>)
    } else {
    }
    %c0 = arith.constant 0 : index
    %c0_1 = arith.constant 0 : index
    %c0_2 = arith.constant 0 : index
    %3 = vector.load %arg12[%c0, %c0_1, %c0_2] : memref<4x128x128xf32, #tpu.memory_space<vmem>>, vector<4x128x128xf32>
    %c0_3 = arith.constant 0 : index
    %c0_4 = arith.constant 0 : index
    %c0_5 = arith.constant 0 : index
    %4 = vector.load %arg5[%c0_3, %c0_4, %c0_5] : memref<4x8x128xf32, #tpu.memory_space<vmem>>, vector<4x8x128xf32>
    %c0_6 = arith.constant 0 : index
    %c0_7 = arith.constant 0 : index
    %5 = vector.load %arg10[%c0_6, %c0_7] : memref<8x128xf32, #tpu.memory_space<vmem>>, vector<8x128xf32>
    %c0_8 = arith.constant 0 : index
    %c0_9 = arith.constant 0 : index
    %6 = vector.load %arg11[%c0_8, %c0_9] : memref<8x128xf32, #tpu.memory_space<vmem>>, vector<8x128xf32>
    %7 = vector.shape_cast %5 : vector<8x128xf32> to vector<1x8x128xf32>
    %8 = vector.broadcast %7 : vector<1x8x128xf32> to vector<4x8x128xf32>
    %9 = arith.mulf %8, %4 : vector<4x8x128xf32>
    %cst = arith.constant dense<0.000000e+00> : vector<4x8x128xf32>
    %10 = tpu.matmul %9, %3, %cst {dimension_numbers = #tpu.dot_dimension_numbers<[2], [1], [1], [2], [0, 0, 0, 1, 1, 2], [0], [0]>} : vector<4x8x128xf32>, vector<4x128x128xf32>, vector<4x8x128xf32> -> vector<4x8x128xf32>
    %c0_10 = arith.constant 0 : index
    %c0_11 = arith.constant 0 : index
    %c0_12 = arith.constant 0 : index
    %c0_13 = arith.constant 0 : index
    %11 = vector.load %arg2[%c0_10, %c0_11, %c0_12, %c0_13] : memref<8x4x8x128xf32, #tpu.memory_space<vmem>>, vector<1x4x8x128xf32>
    %12 = vector.shape_cast %11 : vector<1x4x8x128xf32> to vector<4x8x128xf32>
    %13 = arith.addf %10, %12 : vector<4x8x128xf32>
    %14 = vector.extract_strided_slice %13 {offsets = [0, 0, 0], sizes = [1, 8, 128], strides = [1, 1, 1]} : vector<4x8x128xf32> to vector<1x8x128xf32>
    %15 = vector.shape_cast %14 : vector<1x8x128xf32> to vector<8x128xf32>
    %16 = arith.negf %15 : vector<8x128xf32>
    %17 = math.exp %16 : vector<8x128xf32>
    %cst_14 = arith.constant 1.000000e+00 : f32
    %18 = vector.broadcast %cst_14 : f32 to vector<8x128xf32>
    %19 = arith.addf %18, %17 : vector<8x128xf32>
    %20 = arith.divf %18, %19 : vector<8x128xf32>
    %21 = vector.extract_strided_slice %13 {offsets = [1, 0, 0], sizes = [1, 8, 128], strides = [1, 1, 1]} : vector<4x8x128xf32> to vector<1x8x128xf32>
    %22 = vector.shape_cast %21 : vector<1x8x128xf32> to vector<8x128xf32>
    %23 = arith.negf %22 : vector<8x128xf32>
    %24 = math.exp %23 : vector<8x128xf32>
    %cst_15 = arith.constant 1.000000e+00 : f32
    %25 = vector.broadcast %cst_15 : f32 to vector<8x128xf32>
    %26 = arith.addf %25, %24 : vector<8x128xf32>
    %27 = arith.divf %25, %26 : vector<8x128xf32>
    %28 = vector.extract_strided_slice %13 {offsets = [2, 0, 0], sizes = [1, 8, 128], strides = [1, 1, 1]} : vector<4x8x128xf32> to vector<1x8x128xf32>
    %29 = vector.shape_cast %28 : vector<1x8x128xf32> to vector<8x128xf32>
    %30 = arith.negf %29 : vector<8x128xf32>
    %31 = math.exp %30 : vector<8x128xf32>
    %cst_16 = arith.constant 1.000000e+00 : f32
    %32 = vector.broadcast %cst_16 : f32 to vector<8x128xf32>
    %33 = arith.addf %32, %31 : vector<8x128xf32>
    %34 = arith.divf %32, %33 : vector<8x128xf32>
    %35 = vector.extract_strided_slice %13 {offsets = [3, 0, 0], sizes = [1, 8, 128], strides = [1, 1, 1]} : vector<4x8x128xf32> to vector<1x8x128xf32>
    %36 = vector.shape_cast %35 : vector<1x8x128xf32> to vector<8x128xf32>
    %37 = math.tanh %36 : vector<8x128xf32>
    %38 = arith.mulf %27, %6 : vector<8x128xf32>
    %39 = arith.mulf %20, %37 : vector<8x128xf32>
    %40 = arith.addf %38, %39 : vector<8x128xf32>
    %41 = math.tanh %40 : vector<8x128xf32>
    %42 = arith.mulf %34, %41 : vector<8x128xf32>
    %c0_17 = arith.constant 0 : index
    %c0_18 = arith.constant 0 : index
    %c0_19 = arith.constant 0 : index
    %43 = vector.load %arg7[%c0_17, %c0_18, %c0_19] : memref<8x8x128xf32, #tpu.memory_space<vmem>>, vector<1x8x128xf32>
    %44 = vector.shape_cast %43 : vector<1x8x128xf32> to vector<8x128xf32>
    %45 = vector.shape_cast %42 : vector<8x128xf32> to vector<1x8x128xf32>
    tpu.vector_store %arg7[%c0_17, %c0_18, %c0_19], %45 {strides = array<i32>} : memref<8x8x128xf32, #tpu.memory_space<vmem>>, vector<1x8x128xf32>,
    %46 = vector.shape_cast %42 : vector<8x128xf32> to vector<1x8x128xf32>
    %47 = vector.broadcast %46 : vector<1x8x128xf32> to vector<4x8x128xf32>
    %48 = arith.mulf %47, %4 : vector<4x8x128xf32>
    %cst_20 = arith.constant dense<0.000000e+00> : vector<4x8x128xf32>
    %49 = tpu.matmul %48, %3, %cst_20 {dimension_numbers = #tpu.dot_dimension_numbers<[2], [1], [1], [2], [0, 0, 0, 1, 1, 2], [0], [0]>} : vector<4x8x128xf32>, vector<4x128x128xf32>, vector<4x8x128xf32> -> vector<4x8x128xf32>
    %c1 = arith.constant 1 : index
    %c0_21 = arith.constant 0 : index
    %c0_22 = arith.constant 0 : index
    %c0_23 = arith.constant 0 : index
    %50 = vector.load %arg2[%c1, %c0_21, %c0_22, %c0_23] : memref<8x4x8x128xf32, #tpu.memory_space<vmem>>, vector<1x4x8x128xf32>
    %51 = vector.shape_cast %50 : vector<1x4x8x128xf32> to vector<4x8x128xf32>
    %52 = arith.addf %49, %51 : vector<4x8x128xf32>
    %53 = vector.extract_strided_slice %52 {offsets = [0, 0, 0], sizes = [1, 8, 128], strides = [1, 1, 1]} : vector<4x8x128xf32> to vector<1x8x128xf32>
    %54 = vector.shape_cast %53 : vector<1x8x128xf32> to vector<8x128xf32>
    %55 = arith.negf %54 : vector<8x128xf32>
    %56 = math.exp %55 : vector<8x128xf32>
    %cst_24 = arith.constant 1.000000e+00 : f32
    %57 = vector.broadcast %cst_24 : f32 to vector<8x128xf32>
    %58 = arith.addf %57, %56 : vector<8x128xf32>
    %59 = arith.divf %57, %58 : vector<8x128xf32>
    %60 = vector.extract_strided_slice %52 {offsets = [1, 0, 0], sizes = [1, 8, 128], strides = [1, 1, 1]} : vector<4x8x128xf32> to vector<1x8x128xf32>
    %61 = vector.shape_cast %60 : vector<1x8x128xf32> to vector<8x128xf32>
    %62 = arith.negf %61 : vector<8x128xf32>
    %63 = math.exp %62 : vector<8x128xf32>
    %cst_25 = arith.constant 1.000000e+00 : f32
    %64 = vector.broadcast %cst_25 : f32 to vector<8x128xf32>
    %65 = arith.addf %64, %63 : vector<8x128xf32>
    %66 = arith.divf %64, %65 : vector<8x128xf32>
    %67 = vector.extract_strided_slice %52 {offsets = [2, 0, 0], sizes = [1, 8, 128], strides = [1, 1, 1]} : vector<4x8x128xf32> to vector<1x8x128xf32>
    %68 = vector.shape_cast %67 : vector<1x8x128xf32> to vector<8x128xf32>
    %69 = arith.negf %68 : vector<8x128xf32>
    %70 = math.exp %69 : vector<8x128xf32>
    %cst_26 = arith.constant 1.000000e+00 : f32
    %71 = vector.broadcast %cst_26 : f32 to vector<8x128xf32>
    %72 = arith.addf %71, %70 : vector<8x128xf32>
    %73 = arith.divf %71, %72 : vector<8x128xf32>
    %74 = vector.extract_strided_slice %52 {offsets = [3, 0, 0], sizes = [1, 8, 128], strides = [1, 1, 1]} : vector<4x8x128xf32> to vector<1x8x128xf32>
    %75 = vector.shape_cast %74 : vector<1x8x128xf32> to vector<8x128xf32>
    %76 = math.tanh %75 : vector<8x128xf32>
    %77 = arith.mulf %66, %40 : vector<8x128xf32>
    %78 = arith.mulf %59, %76 : vector<8x128xf32>
    %79 = arith.addf %77, %78 : vector<8x128xf32>
    %80 = math.tanh %79 : vector<8x128xf32>
    %81 = arith.mulf %73, %80 : vector<8x128xf32>
    %c1_27 = arith.constant 1 : index
    %c0_28 = arith.constant 0 : index
    %c0_29 = arith.constant 0 : index
    %82 = vector.load %arg7[%c1_27, %c0_28, %c0_29] : memref<8x8x128xf32, #tpu.memory_space<vmem>>, vector<1x8x128xf32>
    %83 = vector.shape_cast %82 : vector<1x8x128xf32> to vector<8x128xf32>
    %84 = vector.shape_cast %81 : vector<8x128xf32> to vector<1x8x128xf32>
    tpu.vector_store %arg7[%c1_27, %c0_28, %c0_29], %84 {strides = array<i32>} : memref<8x8x128xf32, #tpu.memory_space<vmem>>, vector<1x8x128xf32>,
    %85 = vector.shape_cast %81 : vector<8x128xf32> to vector<1x8x128xf32>
    %86 = vector.broadcast %85 : vector<1x8x128xf32> to vector<4x8x128xf32>
    %87 = arith.mulf %86, %4 : vector<4x8x128xf32>
    %cst_30 = arith.constant dense<0.000000e+00> : vector<4x8x128xf32>
    %88 = tpu.matmul %87, %3, %cst_30 {dimension_numbers = #tpu.dot_dimension_numbers<[2], [1], [1], [2], [0, 0, 0, 1, 1, 2], [0], [0]>} : vector<4x8x128xf32>, vector<4x128x128xf32>, vector<4x8x128xf32> -> vector<4x8x128xf32>
    %c2 = arith.constant 2 : index
    %c0_31 = arith.constant 0 : index
    %c0_32 = arith.constant 0 : index
    %c0_33 = arith.constant 0 : index
    %89 = vector.load %arg2[%c2, %c0_31, %c0_32, %c0_33] : memref<8x4x8x128xf32, #tpu.memory_space<vmem>>, vector<1x4x8x128xf32>
    %90 = vector.shape_cast %89 : vector<1x4x8x128xf32> to vector<4x8x128xf32>
    %91 = arith.addf %88, %90 : vector<4x8x128xf32>
    %92 = vector.extract_strided_slice %91 {offsets = [0, 0, 0], sizes = [1, 8, 128], strides = [1, 1, 1]} : vector<4x8x128xf32> to vector<1x8x128xf32>
    %93 = vector.shape_cast %92 : vector<1x8x128xf32> to vector<8x128xf32>
    %94 = arith.negf %93 : vector<8x128xf32>
    %95 = math.exp %94 : vector<8x128xf32>
    %cst_34 = arith.constant 1.000000e+00 : f32
    %96 = vector.broadcast %cst_34 : f32 to vector<8x128xf32>
    %97 = arith.addf %96, %95 : vector<8x128xf32>
    %98 = arith.divf %96, %97 : vector<8x128xf32>
    %99 = vector.extract_strided_slice %91 {offsets = [1, 0, 0], sizes = [1, 8, 128], strides = [1, 1, 1]} : vector<4x8x128xf32> to vector<1x8x128xf32>
    %100 = vector.shape_cast %99 : vector<1x8x128xf32> to vector<8x128xf32>
    %101 = arith.negf %100 : vector<8x128xf32>
    %102 = math.exp %101 : vector<8x128xf32>
    %cst_35 = arith.constant 1.000000e+00 : f32
    %103 = vector.broadcast %cst_35 : f32 to vector<8x128xf32>
    %104 = arith.addf %103, %102 : vector<8x128xf32>
    %105 = arith.divf %103, %104 : vector<8x128xf32>
    %106 = vector.extract_strided_slice %91 {offsets = [2, 0, 0], sizes = [1, 8, 128], strides = [1, 1, 1]} : vector<4x8x128xf32> to vector<1x8x128xf32>
    %107 = vector.shape_cast %106 : vector<1x8x128xf32> to vector<8x128xf32>
    %108 = arith.negf %107 : vector<8x128xf32>
    %109 = math.exp %108 : vector<8x128xf32>
    %cst_36 = arith.constant 1.000000e+00 : f32
    %110 = vector.broadcast %cst_36 : f32 to vector<8x128xf32>
    %111 = arith.addf %110, %109 : vector<8x128xf32>
    %112 = arith.divf %110, %111 : vector<8x128xf32>
    %113 = vector.extract_strided_slice %91 {offsets = [3, 0, 0], sizes = [1, 8, 128], strides = [1, 1, 1]} : vector<4x8x128xf32> to vector<1x8x128xf32>
    %114 = vector.shape_cast %113 : vector<1x8x128xf32> to vector<8x128xf32>
    %115 = math.tanh %114 : vector<8x128xf32>
    %116 = arith.mulf %105, %79 : vector<8x128xf32>
    %117 = arith.mulf %98, %115 : vector<8x128xf32>
    %118 = arith.addf %116, %117 : vector<8x128xf32>
    %119 = math.tanh %118 : vector<8x128xf32>
    %120 = arith.mulf %112, %119 : vector<8x128xf32>
    %c2_37 = arith.constant 2 : index
    %c0_38 = arith.constant 0 : index
    %c0_39 = arith.constant 0 : index
    %121 = vector.load %arg7[%c2_37, %c0_38, %c0_39] : memref<8x8x128xf32, #tpu.memory_space<vmem>>, vector<1x8x128xf32>
    %122 = vector.shape_cast %121 : vector<1x8x128xf32> to vector<8x128xf32>
    %123 = vector.shape_cast %120 : vector<8x128xf32> to vector<1x8x128xf32>
    tpu.vector_store %arg7[%c2_37, %c0_38, %c0_39], %123 {strides = array<i32>} : memref<8x8x128xf32, #tpu.memory_space<vmem>>, vector<1x8x128xf32>,
    %124 = vector.shape_cast %120 : vector<8x128xf32> to vector<1x8x128xf32>
    %125 = vector.broadcast %124 : vector<1x8x128xf32> to vector<4x8x128xf32>
    %126 = arith.mulf %125, %4 : vector<4x8x128xf32>
    %cst_40 = arith.constant dense<0.000000e+00> : vector<4x8x128xf32>
    %127 = tpu.matmul %126, %3, %cst_40 {dimension_numbers = #tpu.dot_dimension_numbers<[2], [1], [1], [2], [0, 0, 0, 1, 1, 2], [0], [0]>} : vector<4x8x128xf32>, vector<4x128x128xf32>, vector<4x8x128xf32> -> vector<4x8x128xf32>
    %c3 = arith.constant 3 : index
    %c0_41 = arith.constant 0 : index
    %c0_42 = arith.constant 0 : index
    %c0_43 = arith.constant 0 : index
    %128 = vector.load %arg2[%c3, %c0_41, %c0_42, %c0_43] : memref<8x4x8x128xf32, #tpu.memory_space<vmem>>, vector<1x4x8x128xf32>
    %129 = vector.shape_cast %128 : vector<1x4x8x128xf32> to vector<4x8x128xf32>
    %130 = arith.addf %127, %129 : vector<4x8x128xf32>
    %131 = vector.extract_strided_slice %130 {offsets = [0, 0, 0], sizes = [1, 8, 128], strides = [1, 1, 1]} : vector<4x8x128xf32> to vector<1x8x128xf32>
    %132 = vector.shape_cast %131 : vector<1x8x128xf32> to vector<8x128xf32>
    %133 = arith.negf %132 : vector<8x128xf32>
    %134 = math.exp %133 : vector<8x128xf32>
    %cst_44 = arith.constant 1.000000e+00 : f32
    %135 = vector.broadcast %cst_44 : f32 to vector<8x128xf32>
    %136 = arith.addf %135, %134 : vector<8x128xf32>
    %137 = arith.divf %135, %136 : vector<8x128xf32>
    %138 = vector.extract_strided_slice %130 {offsets = [1, 0, 0], sizes = [1, 8, 128], strides = [1, 1, 1]} : vector<4x8x128xf32> to vector<1x8x128xf32>
    %139 = vector.shape_cast %138 : vector<1x8x128xf32> to vector<8x128xf32>
    %140 = arith.negf %139 : vector<8x128xf32>
    %141 = math.exp %140 : vector<8x128xf32>
    %cst_45 = arith.constant 1.000000e+00 : f32
    %142 = vector.broadcast %cst_45 : f32 to vector<8x128xf32>
    %143 = arith.addf %142, %141 : vector<8x128xf32>
    %144 = arith.divf %142, %143 : vector<8x128xf32>
    %145 = vector.extract_strided_slice %130 {offsets = [2, 0, 0], sizes = [1, 8, 128], strides = [1, 1, 1]} : vector<4x8x128xf32> to vector<1x8x128xf32>
    %146 = vector.shape_cast %145 : vector<1x8x128xf32> to vector<8x128xf32>
    %147 = arith.negf %146 : vector<8x128xf32>
    %148 = math.exp %147 : vector<8x128xf32>
    %cst_46 = arith.constant 1.000000e+00 : f32
    %149 = vector.broadcast %cst_46 : f32 to vector<8x128xf32>
    %150 = arith.addf %149, %148 : vector<8x128xf32>
    %151 = arith.divf %149, %150 : vector<8x128xf32>
    %152 = vector.extract_strided_slice %130 {offsets = [3, 0, 0], sizes = [1, 8, 128], strides = [1, 1, 1]} : vector<4x8x128xf32> to vector<1x8x128xf32>
    %153 = vector.shape_cast %152 : vector<1x8x128xf32> to vector<8x128xf32>
    %154 = math.tanh %153 : vector<8x128xf32>
    %155 = arith.mulf %144, %118 : vector<8x128xf32>
    %156 = arith.mulf %137, %154 : vector<8x128xf32>
    %157 = arith.addf %155, %156 : vector<8x128xf32>
    %158 = math.tanh %157 : vector<8x128xf32>
    %159 = arith.mulf %151, %158 : vector<8x128xf32>
    %c3_47 = arith.constant 3 : index
    %c0_48 = arith.constant 0 : index
    %c0_49 = arith.constant 0 : index
    %160 = vector.load %arg7[%c3_47, %c0_48, %c0_49] : memref<8x8x128xf32, #tpu.memory_space<vmem>>, vector<1x8x128xf32>
    %161 = vector.shape_cast %160 : vector<1x8x128xf32> to vector<8x128xf32>
    %162 = vector.shape_cast %159 : vector<8x128xf32> to vector<1x8x128xf32>
    tpu.vector_store %arg7[%c3_47, %c0_48, %c0_49], %162 {strides = array<i32>} : memref<8x8x128xf32, #tpu.memory_space<vmem>>, vector<1x8x128xf32>,
    %163 = vector.shape_cast %159 : vector<8x128xf32> to vector<1x8x128xf32>
    %164 = vector.broadcast %163 : vector<1x8x128xf32> to vector<4x8x128xf32>
    %165 = arith.mulf %164, %4 : vector<4x8x128xf32>
    %cst_50 = arith.constant dense<0.000000e+00> : vector<4x8x128xf32>
    %166 = tpu.matmul %165, %3, %cst_50 {dimension_numbers = #tpu.dot_dimension_numbers<[2], [1], [1], [2], [0, 0, 0, 1, 1, 2], [0], [0]>} : vector<4x8x128xf32>, vector<4x128x128xf32>, vector<4x8x128xf32> -> vector<4x8x128xf32>
    %c4 = arith.constant 4 : index
    %c0_51 = arith.constant 0 : index
    %c0_52 = arith.constant 0 : index
    %c0_53 = arith.constant 0 : index
    %167 = vector.load %arg2[%c4, %c0_51, %c0_52, %c0_53] : memref<8x4x8x128xf32, #tpu.memory_space<vmem>>, vector<1x4x8x128xf32>
    %168 = vector.shape_cast %167 : vector<1x4x8x128xf32> to vector<4x8x128xf32>
    %169 = arith.addf %166, %168 : vector<4x8x128xf32>
    %170 = vector.extract_strided_slice %169 {offsets = [0, 0, 0], sizes = [1, 8, 128], strides = [1, 1, 1]} : vector<4x8x128xf32> to vector<1x8x128xf32>
    %171 = vector.shape_cast %170 : vector<1x8x128xf32> to vector<8x128xf32>
    %172 = arith.negf %171 : vector<8x128xf32>
    %173 = math.exp %172 : vector<8x128xf32>
    %cst_54 = arith.constant 1.000000e+00 : f32
    %174 = vector.broadcast %cst_54 : f32 to vector<8x128xf32>
    %175 = arith.addf %174, %173 : vector<8x128xf32>
    %176 = arith.divf %174, %175 : vector<8x128xf32>
    %177 = vector.extract_strided_slice %169 {offsets = [1, 0, 0], sizes = [1, 8, 128], strides = [1, 1, 1]} : vector<4x8x128xf32> to vector<1x8x128xf32>
    %178 = vector.shape_cast %177 : vector<1x8x128xf32> to vector<8x128xf32>
    %179 = arith.negf %178 : vector<8x128xf32>
    %180 = math.exp %179 : vector<8x128xf32>
    %cst_55 = arith.constant 1.000000e+00 : f32
    %181 = vector.broadcast %cst_55 : f32 to vector<8x128xf32>
    %182 = arith.addf %181, %180 : vector<8x128xf32>
    %183 = arith.divf %181, %182 : vector<8x128xf32>
    %184 = vector.extract_strided_slice %169 {offsets = [2, 0, 0], sizes = [1, 8, 128], strides = [1, 1, 1]} : vector<4x8x128xf32> to vector<1x8x128xf32>
    %185 = vector.shape_cast %184 : vector<1x8x128xf32> to vector<8x128xf32>
    %186 = arith.negf %185 : vector<8x128xf32>
    %187 = math.exp %186 : vector<8x128xf32>
    %cst_56 = arith.constant 1.000000e+00 : f32
    %188 = vector.broadcast %cst_56 : f32 to vector<8x128xf32>
    %189 = arith.addf %188, %187 : vector<8x128xf32>
    %190 = arith.divf %188, %189 : vector<8x128xf32>
    %191 = vector.extract_strided_slice %169 {offsets = [3, 0, 0], sizes = [1, 8, 128], strides = [1, 1, 1]} : vector<4x8x128xf32> to vector<1x8x128xf32>
    %192 = vector.shape_cast %191 : vector<1x8x128xf32> to vector<8x128xf32>
    %193 = math.tanh %192 : vector<8x128xf32>
    %194 = arith.mulf %183, %157 : vector<8x128xf32>
    %195 = arith.mulf %176, %193 : vector<8x128xf32>
    %196 = arith.addf %194, %195 : vector<8x128xf32>
    %197 = math.tanh %196 : vector<8x128xf32>
    %198 = arith.mulf %190, %197 : vector<8x128xf32>
    %c4_57 = arith.constant 4 : index
    %c0_58 = arith.constant 0 : index
    %c0_59 = arith.constant 0 : index
    %199 = vector.load %arg7[%c4_57, %c0_58, %c0_59] : memref<8x8x128xf32, #tpu.memory_space<vmem>>, vector<1x8x128xf32>
    %200 = vector.shape_cast %199 : vector<1x8x128xf32> to vector<8x128xf32>
    %201 = vector.shape_cast %198 : vector<8x128xf32> to vector<1x8x128xf32>
    tpu.vector_store %arg7[%c4_57, %c0_58, %c0_59], %201 {strides = array<i32>} : memref<8x8x128xf32, #tpu.memory_space<vmem>>, vector<1x8x128xf32>,
    %202 = vector.shape_cast %198 : vector<8x128xf32> to vector<1x8x128xf32>
    %203 = vector.broadcast %202 : vector<1x8x128xf32> to vector<4x8x128xf32>
    %204 = arith.mulf %203, %4 : vector<4x8x128xf32>
    %cst_60 = arith.constant dense<0.000000e+00> : vector<4x8x128xf32>
    %205 = tpu.matmul %204, %3, %cst_60 {dimension_numbers = #tpu.dot_dimension_numbers<[2], [1], [1], [2], [0, 0, 0, 1, 1, 2], [0], [0]>} : vector<4x8x128xf32>, vector<4x128x128xf32>, vector<4x8x128xf32> -> vector<4x8x128xf32>
    %c5 = arith.constant 5 : index
    %c0_61 = arith.constant 0 : index
    %c0_62 = arith.constant 0 : index
    %c0_63 = arith.constant 0 : index
    %206 = vector.load %arg2[%c5, %c0_61, %c0_62, %c0_63] : memref<8x4x8x128xf32, #tpu.memory_space<vmem>>, vector<1x4x8x128xf32>
    %207 = vector.shape_cast %206 : vector<1x4x8x128xf32> to vector<4x8x128xf32>
    %208 = arith.addf %205, %207 : vector<4x8x128xf32>
    %209 = vector.extract_strided_slice %208 {offsets = [0, 0, 0], sizes = [1, 8, 128], strides = [1, 1, 1]} : vector<4x8x128xf32> to vector<1x8x128xf32>
    %210 = vector.shape_cast %209 : vector<1x8x128xf32> to vector<8x128xf32>
    %211 = arith.negf %210 : vector<8x128xf32>
    %212 = math.exp %211 : vector<8x128xf32>
    %cst_64 = arith.constant 1.000000e+00 : f32
    %213 = vector.broadcast %cst_64 : f32 to vector<8x128xf32>
    %214 = arith.addf %213, %212 : vector<8x128xf32>
    %215 = arith.divf %213, %214 : vector<8x128xf32>
    %216 = vector.extract_strided_slice %208 {offsets = [1, 0, 0], sizes = [1, 8, 128], strides = [1, 1, 1]} : vector<4x8x128xf32> to vector<1x8x128xf32>
    %217 = vector.shape_cast %216 : vector<1x8x128xf32> to vector<8x128xf32>
    %218 = arith.negf %217 : vector<8x128xf32>
    %219 = math.exp %218 : vector<8x128xf32>
    %cst_65 = arith.constant 1.000000e+00 : f32
    %220 = vector.broadcast %cst_65 : f32 to vector<8x128xf32>
    %221 = arith.addf %220, %219 : vector<8x128xf32>
    %222 = arith.divf %220, %221 : vector<8x128xf32>
    %223 = vector.extract_strided_slice %208 {offsets = [2, 0, 0], sizes = [1, 8, 128], strides = [1, 1, 1]} : vector<4x8x128xf32> to vector<1x8x128xf32>
    %224 = vector.shape_cast %223 : vector<1x8x128xf32> to vector<8x128xf32>
    %225 = arith.negf %224 : vector<8x128xf32>
    %226 = math.exp %225 : vector<8x128xf32>
    %cst_66 = arith.constant 1.000000e+00 : f32
    %227 = vector.broadcast %cst_66 : f32 to vector<8x128xf32>
    %228 = arith.addf %227, %226 : vector<8x128xf32>
    %229 = arith.divf %227, %228 : vector<8x128xf32>
    %230 = vector.extract_strided_slice %208 {offsets = [3, 0, 0], sizes = [1, 8, 128], strides = [1, 1, 1]} : vector<4x8x128xf32> to vector<1x8x128xf32>
    %231 = vector.shape_cast %230 : vector<1x8x128xf32> to vector<8x128xf32>
    %232 = math.tanh %231 : vector<8x128xf32>
    %233 = arith.mulf %222, %196 : vector<8x128xf32>
    %234 = arith.mulf %215, %232 : vector<8x128xf32>
    %235 = arith.addf %233, %234 : vector<8x128xf32>
    %236 = math.tanh %235 : vector<8x128xf32>
    %237 = arith.mulf %229, %236 : vector<8x128xf32>
    %c5_67 = arith.constant 5 : index
    %c0_68 = arith.constant 0 : index
    %c0_69 = arith.constant 0 : index
    %238 = vector.load %arg7[%c5_67, %c0_68, %c0_69] : memref<8x8x128xf32, #tpu.memory_space<vmem>>, vector<1x8x128xf32>
    %239 = vector.shape_cast %238 : vector<1x8x128xf32> to vector<8x128xf32>
    %240 = vector.shape_cast %237 : vector<8x128xf32> to vector<1x8x128xf32>
    tpu.vector_store %arg7[%c5_67, %c0_68, %c0_69], %240 {strides = array<i32>} : memref<8x8x128xf32, #tpu.memory_space<vmem>>, vector<1x8x128xf32>,
    %241 = vector.shape_cast %237 : vector<8x128xf32> to vector<1x8x128xf32>
    %242 = vector.broadcast %241 : vector<1x8x128xf32> to vector<4x8x128xf32>
    %243 = arith.mulf %242, %4 : vector<4x8x128xf32>
    %cst_70 = arith.constant dense<0.000000e+00> : vector<4x8x128xf32>
    %244 = tpu.matmul %243, %3, %cst_70 {dimension_numbers = #tpu.dot_dimension_numbers<[2], [1], [1], [2], [0, 0, 0, 1, 1, 2], [0], [0]>} : vector<4x8x128xf32>, vector<4x128x128xf32>, vector<4x8x128xf32> -> vector<4x8x128xf32>
    %c6 = arith.constant 6 : index
    %c0_71 = arith.constant 0 : index
    %c0_72 = arith.constant 0 : index
    %c0_73 = arith.constant 0 : index
    %245 = vector.load %arg2[%c6, %c0_71, %c0_72, %c0_73] : memref<8x4x8x128xf32, #tpu.memory_space<vmem>>, vector<1x4x8x128xf32>
    %246 = vector.shape_cast %245 : vector<1x4x8x128xf32> to vector<4x8x128xf32>
    %247 = arith.addf %244, %246 : vector<4x8x128xf32>
    %248 = vector.extract_strided_slice %247 {offsets = [0, 0, 0], sizes = [1, 8, 128], strides = [1, 1, 1]} : vector<4x8x128xf32> to vector<1x8x128xf32>
    %249 = vector.shape_cast %248 : vector<1x8x128xf32> to vector<8x128xf32>
    %250 = arith.negf %249 : vector<8x128xf32>
    %251 = math.exp %250 : vector<8x128xf32>
    %cst_74 = arith.constant 1.000000e+00 : f32
    %252 = vector.broadcast %cst_74 : f32 to vector<8x128xf32>
    %253 = arith.addf %252, %251 : vector<8x128xf32>
    %254 = arith.divf %252, %253 : vector<8x128xf32>
    %255 = vector.extract_strided_slice %247 {offsets = [1, 0, 0], sizes = [1, 8, 128], strides = [1, 1, 1]} : vector<4x8x128xf32> to vector<1x8x128xf32>
    %256 = vector.shape_cast %255 : vector<1x8x128xf32> to vector<8x128xf32>
    %257 = arith.negf %256 : vector<8x128xf32>
    %258 = math.exp %257 : vector<8x128xf32>
    %cst_75 = arith.constant 1.000000e+00 : f32
    %259 = vector.broadcast %cst_75 : f32 to vector<8x128xf32>
    %260 = arith.addf %259, %258 : vector<8x128xf32>
    %261 = arith.divf %259, %260 : vector<8x128xf32>
    %262 = vector.extract_strided_slice %247 {offsets = [2, 0, 0], sizes = [1, 8, 128], strides = [1, 1, 1]} : vector<4x8x128xf32> to vector<1x8x128xf32>
    %263 = vector.shape_cast %262 : vector<1x8x128xf32> to vector<8x128xf32>
    %264 = arith.negf %263 : vector<8x128xf32>
    %265 = math.exp %264 : vector<8x128xf32>
    %cst_76 = arith.constant 1.000000e+00 : f32
    %266 = vector.broadcast %cst_76 : f32 to vector<8x128xf32>
    %267 = arith.addf %266, %265 : vector<8x128xf32>
    %268 = arith.divf %266, %267 : vector<8x128xf32>
    %269 = vector.extract_strided_slice %247 {offsets = [3, 0, 0], sizes = [1, 8, 128], strides = [1, 1, 1]} : vector<4x8x128xf32> to vector<1x8x128xf32>
    %270 = vector.shape_cast %269 : vector<1x8x128xf32> to vector<8x128xf32>
    %271 = math.tanh %270 : vector<8x128xf32>
    %272 = arith.mulf %261, %235 : vector<8x128xf32>
    %273 = arith.mulf %254, %271 : vector<8x128xf32>
    %274 = arith.addf %272, %273 : vector<8x128xf32>
    %275 = math.tanh %274 : vector<8x128xf32>
    %276 = arith.mulf %268, %275 : vector<8x128xf32>
    %c6_77 = arith.constant 6 : index
    %c0_78 = arith.constant 0 : index
    %c0_79 = arith.constant 0 : index
    %277 = vector.load %arg7[%c6_77, %c0_78, %c0_79] : memref<8x8x128xf32, #tpu.memory_space<vmem>>, vector<1x8x128xf32>
    %278 = vector.shape_cast %277 : vector<1x8x128xf32> to vector<8x128xf32>
    %279 = vector.shape_cast %276 : vector<8x128xf32> to vector<1x8x128xf32>
    tpu.vector_store %arg7[%c6_77, %c0_78, %c0_79], %279 {strides = array<i32>} : memref<8x8x128xf32, #tpu.memory_space<vmem>>, vector<1x8x128xf32>,
    %280 = vector.shape_cast %276 : vector<8x128xf32> to vector<1x8x128xf32>
    %281 = vector.broadcast %280 : vector<1x8x128xf32> to vector<4x8x128xf32>
    %282 = arith.mulf %281, %4 : vector<4x8x128xf32>
    %cst_80 = arith.constant dense<0.000000e+00> : vector<4x8x128xf32>
    %283 = tpu.matmul %282, %3, %cst_80 {dimension_numbers = #tpu.dot_dimension_numbers<[2], [1], [1], [2], [0, 0, 0, 1, 1, 2], [0], [0]>} : vector<4x8x128xf32>, vector<4x128x128xf32>, vector<4x8x128xf32> -> vector<4x8x128xf32>
    %c7 = arith.constant 7 : index
    %c0_81 = arith.constant 0 : index
    %c0_82 = arith.constant 0 : index
    %c0_83 = arith.constant 0 : index
    %284 = vector.load %arg2[%c7, %c0_81, %c0_82, %c0_83] : memref<8x4x8x128xf32, #tpu.memory_space<vmem>>, vector<1x4x8x128xf32>
    %285 = vector.shape_cast %284 : vector<1x4x8x128xf32> to vector<4x8x128xf32>
    %286 = arith.addf %283, %285 : vector<4x8x128xf32>
    %287 = vector.extract_strided_slice %286 {offsets = [0, 0, 0], sizes = [1, 8, 128], strides = [1, 1, 1]} : vector<4x8x128xf32> to vector<1x8x128xf32>
    %288 = vector.shape_cast %287 : vector<1x8x128xf32> to vector<8x128xf32>
    %289 = arith.negf %288 : vector<8x128xf32>
    %290 = math.exp %289 : vector<8x128xf32>
    %cst_84 = arith.constant 1.000000e+00 : f32
    %291 = vector.broadcast %cst_84 : f32 to vector<8x128xf32>
    %292 = arith.addf %291, %290 : vector<8x128xf32>
    %293 = arith.divf %291, %292 : vector<8x128xf32>
    %294 = vector.extract_strided_slice %286 {offsets = [1, 0, 0], sizes = [1, 8, 128], strides = [1, 1, 1]} : vector<4x8x128xf32> to vector<1x8x128xf32>
    %295 = vector.shape_cast %294 : vector<1x8x128xf32> to vector<8x128xf32>
    %296 = arith.negf %295 : vector<8x128xf32>
    %297 = math.exp %296 : vector<8x128xf32>
    %cst_85 = arith.constant 1.000000e+00 : f32
    %298 = vector.broadcast %cst_85 : f32 to vector<8x128xf32>
    %299 = arith.addf %298, %297 : vector<8x128xf32>
    %300 = arith.divf %298, %299 : vector<8x128xf32>
    %301 = vector.extract_strided_slice %286 {offsets = [2, 0, 0], sizes = [1, 8, 128], strides = [1, 1, 1]} : vector<4x8x128xf32> to vector<1x8x128xf32>
    %302 = vector.shape_cast %301 : vector<1x8x128xf32> to vector<8x128xf32>
    %303 = arith.negf %302 : vector<8x128xf32>
    %304 = math.exp %303 : vector<8x128xf32>
    %cst_86 = arith.constant 1.000000e+00 : f32
    %305 = vector.broadcast %cst_86 : f32 to vector<8x128xf32>
    %306 = arith.addf %305, %304 : vector<8x128xf32>
    %307 = arith.divf %305, %306 : vector<8x128xf32>
    %308 = vector.extract_strided_slice %286 {offsets = [3, 0, 0], sizes = [1, 8, 128], strides = [1, 1, 1]} : vector<4x8x128xf32> to vector<1x8x128xf32>
    %309 = vector.shape_cast %308 : vector<1x8x128xf32> to vector<8x128xf32>
    %310 = math.tanh %309 : vector<8x128xf32>
    %311 = arith.mulf %300, %274 : vector<8x128xf32>
    %312 = arith.mulf %293, %310 : vector<8x128xf32>
    %313 = arith.addf %311, %312 : vector<8x128xf32>
    %314 = math.tanh %313 : vector<8x128xf32>
    %315 = arith.mulf %307, %314 : vector<8x128xf32>
    %c7_87 = arith.constant 7 : index
    %c0_88 = arith.constant 0 : index
    %c0_89 = arith.constant 0 : index
    %316 = vector.load %arg7[%c7_87, %c0_88, %c0_89] : memref<8x8x128xf32, #tpu.memory_space<vmem>>, vector<1x8x128xf32>
    %317 = vector.shape_cast %316 : vector<1x8x128xf32> to vector<8x128xf32>
    %318 = vector.shape_cast %315 : vector<8x128xf32> to vector<1x8x128xf32>
    tpu.vector_store %arg7[%c7_87, %c0_88, %c0_89], %318 {strides = array<i32>} : memref<8x8x128xf32, #tpu.memory_space<vmem>>, vector<1x8x128xf32>,
    %c0_90 = arith.constant 0 : index
    %c0_91 = arith.constant 0 : index
    %319 = vector.load %arg10[%c0_90, %c0_91] : memref<8x128xf32, #tpu.memory_space<vmem>>, vector<8x128xf32>
    tpu.vector_store %arg10[%c0_90, %c0_91], %315 {strides = array<i32>} : memref<8x128xf32, #tpu.memory_space<vmem>>, vector<8x128xf32>,
    %c0_92 = arith.constant 0 : index
    %c0_93 = arith.constant 0 : index
    %320 = vector.load %arg11[%c0_92, %c0_93] : memref<8x128xf32, #tpu.memory_space<vmem>>, vector<8x128xf32>
    tpu.vector_store %arg11[%c0_92, %c0_93], %313 {strides = array<i32>} : memref<8x128xf32, #tpu.memory_space<vmem>>, vector<8x128xf32>,
    %c0_i32_94 = arith.constant 0 : i32
    %321 = arith.cmpi eq, %arg1, %c0_i32_94 : i32
    %322 = arith.extui %321 : i1 to i32
    %c0_i32_95 = arith.constant 0 : i32
    %323 = arith.cmpi ne, %322, %c0_i32_95 : i32
    scf.if %323 {
      %c0_96 = arith.constant 0 : index
      %c0_97 = arith.constant 0 : index
      %324 = vector.load %arg8[%c0_96, %c0_97] : memref<8x128xf32, #tpu.memory_space<vmem>>, vector<8x128xf32>
      tpu.vector_store %arg8[%c0_96, %c0_97], %315 {strides = array<i32>} : memref<8x128xf32, #tpu.memory_space<vmem>>, vector<8x128xf32>,
      %c0_98 = arith.constant 0 : index
      %c0_99 = arith.constant 0 : index
      %325 = vector.load %arg9[%c0_98, %c0_99] : memref<8x128xf32, #tpu.memory_space<vmem>>, vector<8x128xf32>
      tpu.vector_store %arg9[%c0_98, %c0_99], %313 {strides = array<i32>} : memref<8x128xf32, #tpu.memory_space<vmem>>, vector<8x128xf32>,
    } else {
    }
    return
  }
  func.func @transform_0(%arg0: i32, %arg1: i32) -> (i32, i32, i32, i32) {
    %c0_i32 = arith.constant 0 : i32
    %c0_i32_0 = arith.constant 0 : i32
    %c0_i32_1 = arith.constant 0 : i32
    return %arg1, %c0_i32, %arg0, %c0_i32_0 : i32, i32, i32, i32
  }
  func.func @transform_1(%arg0: i32, %arg1: i32) -> (i32, i32) {
    %c0_i32 = arith.constant 0 : i32
    %c0_i32_0 = arith.constant 0 : i32
    return %arg0, %c0_i32 : i32, i32
  }
  func.func @transform_2(%arg0: i32, %arg1: i32) -> (i32, i32) {
    %c0_i32 = arith.constant 0 : i32
    %c0_i32_0 = arith.constant 0 : i32
    return %arg0, %c0_i32 : i32, i32
  }
  func.func @transform_3(%arg0: i32, %arg1: i32) -> (i32, i32, i32) {
    %c0_i32 = arith.constant 0 : i32
    %c0_i32_0 = arith.constant 0 : i32
    %c0_i32_1 = arith.constant 0 : i32
    return %c0_i32, %arg0, %c0_i32_0 : i32, i32, i32
  }
  func.func @transform_5(%arg0: i32, %arg1: i32) -> (i32, i32, i32) {
    %c0_i32 = arith.constant 0 : i32
    %c0_i32_0 = arith.constant 0 : i32
    return %arg1, %arg0, %c0_i32 : i32, i32, i32
  }
  func.func @transform_6(%arg0: i32, %arg1: i32) -> (i32, i32) {
    %c0_i32 = arith.constant 0 : i32
    %c0_i32_0 = arith.constant 0 : i32
    return %arg0, %c0_i32 : i32, i32
  }
  func.func @transform_7(%arg0: i32, %arg1: i32) -> (i32, i32) {
    %c0_i32 = arith.constant 0 : i32
    %c0_i32_0 = arith.constant 0 : i32
    return %arg0, %c0_i32 : i32, i32
  }
}

</mosaic_0001>

<llo_original>
// kernel: tpu_custom_call.1
$region0: #{tpu_custom_call.1}
  #allocation0 [shape = 'u32[]', space=smem, size = 0x4, offset = 0x4, fixed_abs, tag = 'smem constant byte address 0x4 - core index']
  #allocation1 [shape = 'u32[144,128]{1,0:T(1,128)}', space=vmem, size = 0x12000, scoped, tag = 'internal scratch']
  #allocation2 [shape = 'f32[8,128]{1,0:T(8,128)}', space=vmem, size = 0x1000, scoped, tag = 'scratch operand']
  #allocation3 [shape = 'f32[8,128]{1,0:T(8,128)}', space=vmem, size = 0x1000, scoped, tag = 'scratch operand']
  #allocation4 [shape = 'f32[4,128,128]{2,1,0:T(8,128)}', space=vmem, size = 0x40000, scoped, tag = 'scratch operand']
  #allocation5 [shape = 's32[1]{0}', space=sflag, size = 0x4, scoped, tag = 'scratch operand']
  #allocation18 [shape = 's32[]', space=sflag, size = 0x4, offset = 0, fixed_abs, tag = 'sflag constant byte address 0x0 - dummy sync flag']
  #allocation19 [shape = 's32[]', space=sflag, size = 0x4, offset = 0, fixed_abs, tag = 'sflag constant byte address 0x0 - dummy sync flag']
  #allocation20 [shape = 'u32[]', space=smem, size = 0x4, offset = 0x44, fixed_abs, tag = 'smem constant byte address 0x44 - assertion arg 0']
  #allocation21 [shape = 'u32[]', space=smem, size = 0x4, offset = 0x48, fixed_abs, tag = 'smem constant byte address 0x48 - assertion arg 1']
  %s0 = inlined_call_operand.hbm [shape: f32[8,4,8,128], index: 0, kind: input, shape index: {}]
  %s1 = inlined_call_operand.hbm [shape: f32[8,128], index: 1, kind: input, shape index: {}]
  %s2 = inlined_call_operand.hbm [shape: f32[8,128], index: 2, kind: input, shape index: {}]
  %s3 = inlined_call_operand.hbm [shape: f32[4,8,128], index: 3, kind: input, shape index: {}]
  %s4 = inlined_call_operand.hbm [shape: f32[4,128,128], index: 4, kind: input, shape index: {}]
  %s5 = inlined_call_operand.hbm [shape: f32[8,8,128], index: 5, kind: output, shape index: {0}]
  %s6 = inlined_call_operand.hbm [shape: f32[8,128], index: 6, kind: output, shape index: {1}]
  %s7 = inlined_call_operand.hbm [shape: f32[8,128], index: 7, kind: output, shape index: {2}]
  %8 = xla_tuple %s5, %s6, %s7
  %s9 = sld [smem:[#allocation0]]
  $region70: #{tpu_custom_call.1} parent=0
    _
  %s11 = ssub.s32 1, %s9
  %s12 = scalar_select 0, %s11, %s9
  $region1: #{tpu_custom_call.1} parent=0
    #allocation6 [shape = 'u8[131072]{0}', space=vmem, size = 0x20000, scoped, tag = 'input window, operand 0, single buffered']
    #allocation7 [shape = 's32[1]{0}', space=sflag, size = 0x4, scoped, tag = 'scoped memory for tpu_custom_call.1']
    #allocation8 [shape = 's32[1]{0}', space=sflag, size = 0x4, scoped, tag = 'scoped memory for tpu_custom_call.1']
    #allocation9 [shape = 'u8[4096]{0}', space=vmem, size = 0x1000, scoped, tag = 'input window, operand 1, single buffered']
    #allocation10 [shape = 's32[1]{0}', space=sflag, size = 0x4, scoped, tag = 'scoped memory for tpu_custom_call.1']
    #allocation11 [shape = 'u8[4096]{0}', space=vmem, size = 0x1000, scoped, tag = 'input window, operand 2, single buffered']
    #allocation12 [shape = 'u8[16384]{0}', space=vmem, size = 0x4000, scoped, tag = 'input window, operand 3, single buffered']
    #allocation13 [shape = 's32[1]{0}', space=sflag, size = 0x4, scoped, tag = 'scoped memory for tpu_custom_call.1']
    #allocation14 [shape = 'u8[32768]{0}', space=vmem, size = 0x8000, scoped, tag = 'output window, operand 0, single buffered']
    #allocation15 [shape = 'u8[4096]{0}', space=vmem, size = 0x1000, scoped, tag = 'output window, operand 1, single buffered']
    #allocation16 [shape = 's32[1]{0}', space=sflag, size = 0x4, scoped, tag = 'scoped memory for tpu_custom_call.1']
    #allocation17 [shape = 'u8[4096]{0}', space=vmem, size = 0x1000, scoped, tag = 'output window, operand 2, single buffered']
    %13 = vsyncpa [#allocation7], 0
    %14 = vsyncpa [#allocation10], 0
    %15 = vsyncpa [#allocation13], 0
    %16 = vsyncpa [#allocation8], 0
    %17 = vsyncpa [#allocation16], 0
    // Predicated region
    $region2: #{tpu_custom_call.1} parent=1 // pred_check
      _
    $region3: #{tpu_custom_call.1} parent=1 // pred_check_branch
      %19 = sbr.rel (0) target = $region5
    $region4: #{tpu_custom_call.1} parent=1 // pred_region
      %s21 = ssub.s32 4096, 4096
      %22 = vsyncadd [#allocation7], %s21
      %s23 = sshll.u32 [#allocation6], 4
      %s24 = int_to_ptr.vmem [resolvable:$true] %s23
      %29 = dma.hbm_to_vmem [thread:$0]  %s0, 4096, %s24, [#allocation7], 128, 128, 8
    $region5: #{tpu_custom_call.1} parent=1 // pred_fallthru
      _
    // Predicated region
    $region6: #{tpu_custom_call.1} parent=1 // pred_check
      _
    $region7: #{tpu_custom_call.1} parent=1 // pred_check_branch
      %31 = sbr.rel (0) target = $region9
    $region8: #{tpu_custom_call.1} parent=1 // pred_region
      %s33 = ssub.s32 128, 128
      %34 = vsyncadd [#allocation10], %s33
      %s36 = sshll.u32 [#allocation9], 4
      %s37 = int_to_ptr.vmem [resolvable:$true] %s36
      %39 = dma.hbm_to_vmem [thread:$0]  %s1, 128, %s37, [#allocation10]
    $region9: #{tpu_custom_call.1} parent=1 // pred_fallthru
      _
    // Predicated region
    $region10: #{tpu_custom_call.1} parent=1 // pred_check
      _
    $region11: #{tpu_custom_call.1} parent=1 // pred_check_branch
      %41 = sbr.rel (0) target = $region13
    $region12: #{tpu_custom_call.1} parent=1 // pred_region
      %s43 = ssub.s32 128, 128
      %44 = vsyncadd [#allocation10], %s43
      %s46 = sshll.u32 [#allocation11], 4
      %s47 = int_to_ptr.vmem [resolvable:$true] %s46
      %49 = dma.hbm_to_vmem [thread:$0]  %s2, 128, %s47, [#allocation10]
    $region13: #{tpu_custom_call.1} parent=1 // pred_fallthru
      _
    // Predicated region
    $region14: #{tpu_custom_call.1} parent=1 // pred_check
      _
    $region15: #{tpu_custom_call.1} parent=1 // pred_check_branch
      %51 = sbr.rel (0) target = $region17
    $region16: #{tpu_custom_call.1} parent=1 // pred_region
      %s53 = ssub.s32 512, 512
      %54 = vsyncadd [#allocation13], %s53
      %s55 = sshll.u32 [#allocation12], 4
      %s56 = int_to_ptr.vmem [resolvable:$true] %s55
      %61 = dma.hbm_to_vmem [thread:$0]  %s3, 512, %s56, [#allocation13], 128, 128, 8
    $region17: #{tpu_custom_call.1} parent=1 // pred_fallthru
      _
    // Predicated region
    $region18: #{tpu_custom_call.1} parent=1 // pred_check
      _
    $region19: #{tpu_custom_call.1} parent=1 // pred_check_branch
      %63 = sbr.rel (0) target = $region21
    $region20: #{tpu_custom_call.1} parent=1 // pred_region
      %64 = dma.done [#allocation7], 4096
    $region21: #{tpu_custom_call.1} parent=1 // pred_fallthru
      _
    // Predicated region
    $region22: #{tpu_custom_call.1} parent=1 // pred_check
      _
    $region23: #{tpu_custom_call.1} parent=1 // pred_check_branch
      %66 = sbr.rel (0) target = $region25
    $region24: #{tpu_custom_call.1} parent=1 // pred_region
      %67 = dma.done [#allocation10], 128
    $region25: #{tpu_custom_call.1} parent=1 // pred_fallthru
      _
    // Predicated region
    $region26: #{tpu_custom_call.1} parent=1 // pred_check
      _
    $region27: #{tpu_custom_call.1} parent=1 // pred_check_branch
      %69 = sbr.rel (0) target = $region29
    $region28: #{tpu_custom_call.1} parent=1 // pred_region
      %70 = dma.done [#allocation10], 128
    $region29: #{tpu_custom_call.1} parent=1 // pred_fallthru
      _
    // Predicated region
    $region30: #{tpu_custom_call.1} parent=1 // pred_check
      _
    $region31: #{tpu_custom_call.1} parent=1 // pred_check_branch
      %72 = sbr.rel (0) target = $region33
    $region32: #{tpu_custom_call.1} parent=1 // pred_region
      %73 = dma.done [#allocation13], 512
    $region33: #{tpu_custom_call.1} parent=1 // pred_fallthru
      _
    %p74 = scmp.eq.s32.totalorder 0, 0
    // Predicated region
    $region34: #{tpu_custom_call.1} parent=1 // pred_check
      %p75 = pneg %p74
    $region35: #{tpu_custom_call.1} parent=1 // pred_check_branch
      %77 = sbr.rel (%p75) target = $region37
    $region36: #{tpu_custom_call.1} parent=1 // pred_region
      // Predicated region
      $region38: #{tpu_custom_call.1} parent=36 // pred_check
        _
      $region39: #{tpu_custom_call.1} parent=36 // pred_check_branch
        %79 = sbr.rel target = $region41
      $region40: #{tpu_custom_call.1} parent=36 // pred_region
        %80 = sst [smem:[#allocation20]] [#allocation19]
        %81 = sst [smem:[#allocation21]] [#allocation18]
      $region41: #{tpu_custom_call.1} parent=36 // pred_fallthru
        _
      %83 = shalt.err (0)
      %s85 = sshll.u32 [#allocation4], 4
      %s86 = int_to_ptr.vmem [resolvable:$true] %s85
      %88 = dma.hbm_to_vmem [thread:$0]  %s4, 8192, %s86, [#allocation5]
      %v89 = vld [vmem:[#allocation9] sm:$0xff]
      %90 = vst [vmem:[#allocation2] sm:$0xff] %v89
      %v91 = vld [vmem:[#allocation11] sm:$0xff]
      %92 = vst [vmem:[#allocation3] sm:$0xff] %v91
      %s93 = smul.u32 4, 128
      %s94 = smul.u32 %s93, 1
      %s95 = sshll.u32 %s94, 4
      %96 = dma.done [#allocation5], %s95
    $region37: #{tpu_custom_call.1} parent=1 // pred_fallthru
      _
    %v97 = vld [vmem:[#allocation4] sm:$0xff]
    %v98 = vld [vmem:[#allocation4 + $0x8] sm:$0xff]
    %v99 = vld [vmem:[#allocation4 + $0x10] sm:$0xff]
    %v100 = vld [vmem:[#allocation4 + $0x18] sm:$0xff]
    %v101 = vld [vmem:[#allocation4 + $0x20] sm:$0xff]
    %v102 = vld [vmem:[#allocation4 + $0x28] sm:$0xff]
    %v103 = vld [vmem:[#allocation4 + $0x30] sm:$0xff]
    %v104 = vld [vmem:[#allocation4 + $0x38] sm:$0xff]
    %v105 = vld [vmem:[#allocation4 + $0x40] sm:$0xff]
    %v106 = vld [vmem:[#allocation4 + $0x48] sm:$0xff]
    %v107 = vld [vmem:[#allocation4 + $0x50] sm:$0xff]
    %v108 = vld [vmem:[#allocation4 + $0x58] sm:$0xff]
    %v109 = vld [vmem:[#allocation4 + $0x60] sm:$0xff]
    %v110 = vld [vmem:[#allocation4 + $0x68] sm:$0xff]
    %v111 = vld [vmem:[#allocation4 + $0x70] sm:$0xff]
    %v112 = vld [vmem:[#allocation4 + $0x78] sm:$0xff]
    %v113 = vld [vmem:[#allocation4 + $0x80] sm:$0xff]
    %v114 = vld [vmem:[#allocation4 + $0x88] sm:$0xff]
    %v115 = vld [vmem:[#allocation4 + $0x90] sm:$0xff]
    %v116 = vld [vmem:[#allocation4 + $0x98] sm:$0xff]
    %v117 = vld [vmem:[#allocation4 + $0xa0] sm:$0xff]
    %v118 = vld [vmem:[#allocation4 + $0xa8] sm:$0xff]
    %v119 = vld [vmem:[#allocation4 + $0xb0] sm:$0xff]
    %v120 = vld [vmem:[#allocation4 + $0xb8] sm:$0xff]
    %v121 = vld [vmem:[#allocation4 + $0xc0] sm:$0xff]
    %v122 = vld [vmem:[#allocation4 + $0xc8] sm:$0xff]
    %v123 = vld [vmem:[#allocation4 + $0xd0] sm:$0xff]
    %v124 = vld [vmem:[#allocation4 + $0xd8] sm:$0xff]
    %v125 = vld [vmem:[#allocation4 + $0xe0] sm:$0xff]
    %v126 = vld [vmem:[#allocation4 + $0xe8] sm:$0xff]
    %v127 = vld [vmem:[#allocation4 + $0xf0] sm:$0xff]
    %v128 = vld [vmem:[#allocation4 + $0xf8] sm:$0xff]
    %v129 = vld [vmem:[#allocation4 + $0x100] sm:$0xff]
    %v130 = vld [vmem:[#allocation4 + $0x108] sm:$0xff]
    %v131 = vld [vmem:[#allocation4 + $0x110] sm:$0xff]
    %v132 = vld [vmem:[#allocation4 + $0x118] sm:$0xff]
    %v133 = vld [vmem:[#allocation4 + $0x120] sm:$0xff]
    %v134 = vld [vmem:[#allocation4 + $0x128] sm:$0xff]
    %v135 = vld [vmem:[#allocation4 + $0x130] sm:$0xff]
    %v136 = vld [vmem:[#allocation4 + $0x138] sm:$0xff]
    %v137 = vld [vmem:[#allocation4 + $0x140] sm:$0xff]
    %v138 = vld [vmem:[#allocation4 + $0x148] sm:$0xff]
    %v139 = vld [vmem:[#allocation4 + $0x150] sm:$0xff]
    %v140 = vld [vmem:[#allocation4 + $0x158] sm:$0xff]
    %v141 = vld [vmem:[#allocation4 + $0x160] sm:$0xff]
    %v142 = vld [vmem:[#allocation4 + $0x168] sm:$0xff]
    %v143 = vld [vmem:[#allocation4 + $0x170] sm:$0xff]
    %v144 = vld [vmem:[#allocation4 + $0x178] sm:$0xff]
    %v145 = vld [vmem:[#allocation4 + $0x180] sm:$0xff]
    %v146 = vld [vmem:[#allocation4 + $0x188] sm:$0xff]
    %v147 = vld [vmem:[#allocation4 + $0x190] sm:$0xff]
    %v148 = vld [vmem:[#allocation4 + $0x198] sm:$0xff]
    %v149 = vld [vmem:[#allocation4 + $0x1a0] sm:$0xff]
    %v150 = vld [vmem:[#allocation4 + $0x1a8] sm:$0xff]
    %v151 = vld [vmem:[#allocation4 + $0x1b0] sm:$0xff]
    %v152 = vld [vmem:[#allocation4 + $0x1b8] sm:$0xff]
    %v153 = vld [vmem:[#allocation4 + $0x1c0] sm:$0xff]
    %v154 = vld [vmem:[#allocation4 + $0x1c8] sm:$0xff]
    %v155 = vld [vmem:[#allocation4 + $0x1d0] sm:$0xff]
    %v156 = vld [vmem:[#allocation4 + $0x1d8] sm:$0xff]
    %v157 = vld [vmem:[#allocation4 + $0x1e0] sm:$0xff]
    %v158 = vld [vmem:[#allocation4 + $0x1e8] sm:$0xff]
    %v159 = vld [vmem:[#allocation4 + $0x1f0] sm:$0xff]
    %v160 = vld [vmem:[#allocation4 + $0x1f8] sm:$0xff]
    %v161 = vld [vmem:[#allocation12] sm:$0xff]
    %v162 = vld [vmem:[#allocation12 + $0x8] sm:$0xff]
    %v163 = vld [vmem:[#allocation12 + $0x10] sm:$0xff]
    %v164 = vld [vmem:[#allocation12 + $0x18] sm:$0xff]
    %v165 = vld [vmem:[#allocation2] sm:$0xff]
    %v166 = vld [vmem:[#allocation3] sm:$0xff]
    %v167 = vmul.f32 %v165, %v161
    %v168 = vmul.f32 %v165, %v162
    %v169 = vmul.f32 %v165, %v163
    %v170 = vmul.f32 %v165, %v164
    %v171 = vld [vmem:[#allocation6] sm:$0xff]
    %v172 = vld [vmem:[#allocation6 + $0x8] sm:$0xff]
    %v173 = vld [vmem:[#allocation6 + $0x10] sm:$0xff]
    %v174 = vld [vmem:[#allocation6 + $0x18] sm:$0xff]
    %175 = vmatprep.subr.mxu0 0.0
    %176 = vmatpush1.msra.mxu0 %v97
    %177 = vmatprep.subr.mxu0 0.0
    %178 = vmatpush1.msra.mxu0 %v98
    %179 = vmatprep.subr.mxu0 0.0
    %180 = vmatpush1.msra.mxu0 %v99
    %181 = vmatprep.subr.mxu0 0.0
    %182 = vmatpush1.msra.mxu0 %v100
    %183 = vmatprep.subr.mxu0 0.0
    %184 = vmatpush1.msra.mxu0 %v101
    %185 = vmatprep.subr.mxu0 0.0
    %186 = vmatpush1.msra.mxu0 %v102
    %187 = vmatprep.subr.mxu0 0.0
    %188 = vmatpush1.msra.mxu0 %v103
    %189 = vmatprep.subr.mxu0 0.0
    %190 = vmatpush1.msra.mxu0 %v104
    %191 = vmatprep.subr.mxu0 0.0
    %192 = vmatpush1.msra.mxu0 %v105
    %193 = vmatprep.subr.mxu0 0.0
    %194 = vmatpush1.msra.mxu0 %v106
    %195 = vmatprep.subr.mxu0 0.0
    %196 = vmatpush1.msra.mxu0 %v107
    %197 = vmatprep.subr.mxu0 0.0
    %198 = vmatpush1.msra.mxu0 %v108
    %199 = vmatprep.subr.mxu0 0.0
    %200 = vmatpush1.msra.mxu0 %v109
    %201 = vmatprep.subr.mxu0 0.0
    %202 = vmatpush1.msra.mxu0 %v110
    %203 = vmatprep.subr.mxu0 0.0
    %204 = vmatpush1.msra.mxu0 %v111
    %205 = vmatprep.subr.mxu0 0.0
    %206 = vmatpush1.msra.mxu0 %v112
    %207 = vmatprep.subr.mxu0 0.0
    %208 = vmatpush1.msra.mxu0 0.0
    %209 = vmatprep.subr.mxu0 0.0
    %210 = vmatpush1.msra.mxu0 0.0
    %211 = vmatprep.subr.mxu0 0.0
    %212 = vmatpush1.msra.mxu0 0.0
    %213 = vmatprep.subr.mxu0 0.0
    %214 = vmatpush1.msra.mxu0 0.0
    %215 = vmatprep.subr.mxu0 0.0
    %216 = vmatpush1.msra.mxu0 0.0
    %217 = vmatprep.subr.mxu0 0.0
    %218 = vmatpush1.msra.mxu0 0.0
    %219 = vmatprep.subr.mxu0 0.0
    %220 = vmatpush1.msra.mxu0 0.0
    %221 = vmatprep.subr.mxu0 0.0
    %222 = vmatpush1.msra.mxu0 0.0
    %223 = vmatprep.subr.mxu0 0.0
    %224 = vmatpush1.msra.mxu0 0.0
    %225 = vmatprep.subr.mxu0 0.0
    %226 = vmatpush1.msra.mxu0 0.0
    %227 = vmatprep.subr.mxu0 0.0
    %228 = vmatpush1.msra.mxu0 0.0
    %229 = vmatprep.subr.mxu0 0.0
    %230 = vmatpush1.msra.mxu0 0.0
    %231 = vmatprep.subr.mxu0 0.0
    %232 = vmatpush1.msra.mxu0 0.0
    %233 = vmatprep.subr.mxu0 0.0
    %234 = vmatpush1.msra.mxu0 0.0
    %235 = vmatprep.subr.mxu0 0.0
    %236 = vmatpush1.msra.mxu0 0.0
    %237 = vmatprep.subr.mxu0 0.0
    %238 = vmatpush1.msra.mxu0 0.0
    %239 = vmatprep.mubr.f32.mxu0 0.0
    %240 = vmatmul.mubr.f32.gmra.mrb[0].mxu0 %v167
    %v241 = vpop.f32.mrb[0].mxu0
    %v242 = vadd.f32 %v171, %v241
    %v243 = vpop.f32.mrb[0].mxu0
    %244 = vdwg.mxu0
    %245 = vmatprep.subr.mxu0 0.0
    %246 = vmatpush1.msra.mxu0 %v113
    %247 = vmatprep.subr.mxu0 0.0
    %248 = vmatpush1.msra.mxu0 %v114
    %249 = vmatprep.subr.mxu0 0.0
    %250 = vmatpush1.msra.mxu0 %v115
    %251 = vmatprep.subr.mxu0 0.0
    %252 = vmatpush1.msra.mxu0 %v116
    %253 = vmatprep.subr.mxu0 0.0
    %254 = vmatpush1.msra.mxu0 %v117
    %255 = vmatprep.subr.mxu0 0.0
    %256 = vmatpush1.msra.mxu0 %v118
    %257 = vmatprep.subr.mxu0 0.0
    %258 = vmatpush1.msra.mxu0 %v119
    %259 = vmatprep.subr.mxu0 0.0
    %260 = vmatpush1.msra.mxu0 %v120
    %261 = vmatprep.subr.mxu0 0.0
    %262 = vmatpush1.msra.mxu0 %v121
    %263 = vmatprep.subr.mxu0 0.0
    %264 = vmatpush1.msra.mxu0 %v122
    %265 = vmatprep.subr.mxu0 0.0
    %266 = vmatpush1.msra.mxu0 %v123
    %267 = vmatprep.subr.mxu0 0.0
    %268 = vmatpush1.msra.mxu0 %v124
    %269 = vmatprep.subr.mxu0 0.0
    %270 = vmatpush1.msra.mxu0 %v125
    %271 = vmatprep.subr.mxu0 0.0
    %272 = vmatpush1.msra.mxu0 %v126
    %273 = vmatprep.subr.mxu0 0.0
    %274 = vmatpush1.msra.mxu0 %v127
    %275 = vmatprep.subr.mxu0 0.0
    %276 = vmatpush1.msra.mxu0 %v128
    %277 = vmatprep.subr.mxu0 0.0
    %278 = vmatpush1.msra.mxu0 0.0
    %279 = vmatprep.subr.mxu0 0.0
    %280 = vmatpush1.msra.mxu0 0.0
    %281 = vmatprep.subr.mxu0 0.0
    %282 = vmatpush1.msra.mxu0 0.0
    %283 = vmatprep.subr.mxu0 0.0
    %284 = vmatpush1.msra.mxu0 0.0
    %285 = vmatprep.subr.mxu0 0.0
    %286 = vmatpush1.msra.mxu0 0.0
    %287 = vmatprep.subr.mxu0 0.0
    %288 = vmatpush1.msra.mxu0 0.0
    %289 = vmatprep.subr.mxu0 0.0
    %290 = vmatpush1.msra.mxu0 0.0
    %291 = vmatprep.subr.mxu0 0.0
    %292 = vmatpush1.msra.mxu0 0.0
    %293 = vmatprep.subr.mxu0 0.0
    %294 = vmatpush1.msra.mxu0 0.0
    %295 = vmatprep.subr.mxu0 0.0
    %296 = vmatpush1.msra.mxu0 0.0
    %297 = vmatprep.subr.mxu0 0.0
    %298 = vmatpush1.msra.mxu0 0.0
    %299 = vmatprep.subr.mxu0 0.0
    %300 = vmatpush1.msra.mxu0 0.0
    %301 = vmatprep.subr.mxu0 0.0
    %302 = vmatpush1.msra.mxu0 0.0
    %303 = vmatprep.subr.mxu0 0.0
    %304 = vmatpush1.msra.mxu0 0.0
    %305 = vmatprep.subr.mxu0 0.0
    %306 = vmatpush1.msra.mxu0 0.0
    %307 = vmatprep.subr.mxu0 0.0
    %308 = vmatpush1.msra.mxu0 0.0
    %309 = vmatprep.mubr.f32.mxu0 0.0
    %310 = vmatmul.mubr.f32.gmra.mrb[0].mxu0 %v168
    %v311 = vpop.f32.mrb[0].mxu0
    %v312 = vadd.f32 %v172, %v311
    %v313 = vpop.f32.mrb[0].mxu0
    %314 = vdwg.mxu0
    %315 = vmatprep.subr.mxu0 0.0
    %316 = vmatpush1.msra.mxu0 %v129
    %317 = vmatprep.subr.mxu0 0.0
    %318 = vmatpush1.msra.mxu0 %v130
    %319 = vmatprep.subr.mxu0 0.0
    %320 = vmatpush1.msra.mxu0 %v131
    %321 = vmatprep.subr.mxu0 0.0
    %322 = vmatpush1.msra.mxu0 %v132
    %323 = vmatprep.subr.mxu0 0.0
    %324 = vmatpush1.msra.mxu0 %v133
    %325 = vmatprep.subr.mxu0 0.0
    %326 = vmatpush1.msra.mxu0 %v134
    %327 = vmatprep.subr.mxu0 0.0
    %328 = vmatpush1.msra.mxu0 %v135
    %329 = vmatprep.subr.mxu0 0.0
    %330 = vmatpush1.msra.mxu0 %v136
    %331 = vmatprep.subr.mxu0 0.0
    %332 = vmatpush1.msra.mxu0 %v137
    %333 = vmatprep.subr.mxu0 0.0
    %334 = vmatpush1.msra.mxu0 %v138
    %335 = vmatprep.subr.mxu0 0.0
    %336 = vmatpush1.msra.mxu0 %v139
    %337 = vmatprep.subr.mxu0 0.0
    %338 = vmatpush1.msra.mxu0 %v140
    %339 = vmatprep.subr.mxu0 0.0
    %340 = vmatpush1.msra.mxu0 %v141
    %341 = vmatprep.subr.mxu0 0.0
    %342 = vmatpush1.msra.mxu0 %v142
    %343 = vmatprep.subr.mxu0 0.0
    %344 = vmatpush1.msra.mxu0 %v143
    %345 = vmatprep.subr.mxu0 0.0
    %346 = vmatpush1.msra.mxu0 %v144
    %347 = vmatprep.subr.mxu0 0.0
    %348 = vmatpush1.msra.mxu0 0.0
    %349 = vmatprep.subr.mxu0 0.0
    %350 = vmatpush1.msra.mxu0 0.0
    %351 = vmatprep.subr.mxu0 0.0
    %352 = vmatpush1.msra.mxu0 0.0
    %353 = vmatprep.subr.mxu0 0.0
    %354 = vmatpush1.msra.mxu0 0.0
    %355 = vmatprep.subr.mxu0 0.0
    %356 = vmatpush1.msra.mxu0 0.0
    %357 = vmatprep.subr.mxu0 0.0
    %358 = vmatpush1.msra.mxu0 0.0
    %359 = vmatprep.subr.mxu0 0.0
    %360 = vmatpush1.msra.mxu0 0.0
    %361 = vmatprep.subr.mxu0 0.0
    %362 = vmatpush1.msra.mxu0 0.0
    %363 = vmatprep.subr.mxu0 0.0
    %364 = vmatpush1.msra.mxu0 0.0
    %365 = vmatprep.subr.mxu0 0.0
    %366 = vmatpush1.msra.mxu0 0.0
    %367 = vmatprep.subr.mxu0 0.0
    %368 = vmatpush1.msra.mxu0 0.0
    %369 = vmatprep.subr.mxu0 0.0
    %370 = vmatpush1.msra.mxu0 0.0
    %371 = vmatprep.subr.mxu0 0.0
    %372 = vmatpush1.msra.mxu0 0.0
    %373 = vmatprep.subr.mxu0 0.0
    %374 = vmatpush1.msra.mxu0 0.0
    %375 = vmatprep.subr.mxu0 0.0
    %376 = vmatpush1.msra.mxu0 0.0
    %377 = vmatprep.subr.mxu0 0.0
    %378 = vmatpush1.msra.mxu0 0.0
    %379 = vmatprep.mubr.f32.mxu0 0.0
    %380 = vmatmul.mubr.f32.gmra.mrb[0].mxu0 %v169
    %v381 = vpop.f32.mrb[0].mxu0
    %v382 = vadd.f32 %v173, %v381
    %v383 = vpop.f32.mrb[0].mxu0
    %384 = vdwg.mxu0
    %385 = vmatprep.subr.mxu0 0.0
    %386 = vmatpush1.msra.mxu0 %v145
    %387 = vmatprep.subr.mxu0 0.0
    %388 = vmatpush1.msra.mxu0 %v146
    %389 = vmatprep.subr.mxu0 0.0
    %390 = vmatpush1.msra.mxu0 %v147
    %391 = vmatprep.subr.mxu0 0.0
    %392 = vmatpush1.msra.mxu0 %v148
    %393 = vmatprep.subr.mxu0 0.0
    %394 = vmatpush1.msra.mxu0 %v149
    %395 = vmatprep.subr.mxu0 0.0
    %396 = vmatpush1.msra.mxu0 %v150
    %397 = vmatprep.subr.mxu0 0.0
    %398 = vmatpush1.msra.mxu0 %v151
    %399 = vmatprep.subr.mxu0 0.0
    %400 = vmatpush1.msra.mxu0 %v152
    %401 = vmatprep.subr.mxu0 0.0
    %402 = vmatpush1.msra.mxu0 %v153
    %403 = vmatprep.subr.mxu0 0.0
    %404 = vmatpush1.msra.mxu0 %v154
    %405 = vmatprep.subr.mxu0 0.0
    %406 = vmatpush1.msra.mxu0 %v155
    %407 = vmatprep.subr.mxu0 0.0
    %408 = vmatpush1.msra.mxu0 %v156
    %409 = vmatprep.subr.mxu0 0.0
    %410 = vmatpush1.msra.mxu0 %v157
    %411 = vmatprep.subr.mxu0 0.0
    %412 = vmatpush1.msra.mxu0 %v158
    %413 = vmatprep.subr.mxu0 0.0
    %414 = vmatpush1.msra.mxu0 %v159
    %415 = vmatprep.subr.mxu0 0.0
    %416 = vmatpush1.msra.mxu0 %v160
    %417 = vmatprep.subr.mxu0 0.0
    %418 = vmatpush1.msra.mxu0 0.0
    %419 = vmatprep.subr.mxu0 0.0
    %420 = vmatpush1.msra.mxu0 0.0
    %421 = vmatprep.subr.mxu0 0.0
    %422 = vmatpush1.msra.mxu0 0.0
    %423 = vmatprep.subr.mxu0 0.0
    %424 = vmatpush1.msra.mxu0 0.0
    %425 = vmatprep.subr.mxu0 0.0
    %426 = vmatpush1.msra.mxu0 0.0
    %427 = vmatprep.subr.mxu0 0.0
    %428 = vmatpush1.msra.mxu0 0.0
    %429 = vmatprep.subr.mxu0 0.0
    %430 = vmatpush1.msra.mxu0 0.0
    %431 = vmatprep.subr.mxu0 0.0
    %432 = vmatpush1.msra.mxu0 0.0
    %433 = vmatprep.subr.mxu0 0.0
    %434 = vmatpush1.msra.mxu0 0.0
    %435 = vmatprep.subr.mxu0 0.0
    %436 = vmatpush1.msra.mxu0 0.0
    %437 = vmatprep.subr.mxu0 0.0
    %438 = vmatpush1.msra.mxu0 0.0
    %439 = vmatprep.subr.mxu0 0.0
    %440 = vmatpush1.msra.mxu0 0.0
    %441 = vmatprep.subr.mxu0 0.0
    %442 = vmatpush1.msra.mxu0 0.0
    %443 = vmatprep.subr.mxu0 0.0
    %444 = vmatpush1.msra.mxu0 0.0
    %445 = vmatprep.subr.mxu0 0.0
    %446 = vmatpush1.msra.mxu0 0.0
    %447 = vmatprep.subr.mxu0 0.0
    %448 = vmatpush1.msra.mxu0 0.0
    %449 = vmatprep.mubr.f32.mxu0 0.0
    %450 = vmatmul.mubr.f32.gmra.mrb[0].mxu0 %v170
    %v451 = vpop.f32.mrb[0].mxu0
    %v452 = vadd.f32 %v174, %v451
    %v453 = vpop.f32.mrb[0].mxu0
    %454 = vdwg.mxu0
    %v455 = vxor.u32 %v242, 2147483648
    %v456 = vmul.f32 %v455, 1.442695
    %v457 = vpow.pop %v456
    %v458 = vadd.f32 %v457, 1.0
    %v459 = vrcp.pop %v458
    %v460 = vmul.f32 1.0, %v459
    %v461 = vxor.u32 %v312, 2147483648
    %v462 = vmul.f32 %v461, 1.442695
    %v463 = vpow.pop %v462
    %v464 = vadd.f32 %v463, 1.0
    %v465 = vrcp.pop %v464
    %v466 = vmul.f32 1.0, %v465
    %v467 = vxor.u32 %v382, 2147483648
    %v468 = vmul.f32 %v467, 1.442695
    %v469 = vpow.pop %v468
    %v470 = vadd.f32 %v469, 1.0
    %v471 = vrcp.pop %v470
    %v472 = vmul.f32 1.0, %v471
    %v473 = vtanh.pop %v452
    %v474 = vmul.f32 %v466, %v166
    %v475 = vmul.f32 %v460, %v473
    %v476 = vadd.f32 %v474, %v475
    %v477 = vtanh.pop %v476
    %v478 = vmul.f32 %v472, %v477
    %479 = vst [vmem:[#allocation14] sm:$0xff] %v478
    %v480 = vmul.f32 %v478, %v161
    %v481 = vmul.f32 %v478, %v162
    %v482 = vmul.f32 %v478, %v163
    %v483 = vmul.f32 %v478, %v164
    %s484 = scalar_lea.vmem [#allocation6], 32
    %v485 = vld [vmem:[%s484] sm:$0xff]
    %v486 = vld [vmem:[%s484 + $0x8] sm:$0xff]
    %v487 = vld [vmem:[%s484 + $0x10] sm:$0xff]
    %v488 = vld [vmem:[%s484 + $0x18] sm:$0xff]
    %489 = vmatprep.subr.mxu0 0.0
    %490 = vmatpush1.msra.mxu0 %v97
    %491 = vmatprep.subr.mxu0 0.0
    %492 = vmatpush1.msra.mxu0 %v98
    %493 = vmatprep.subr.mxu0 0.0
    %494 = vmatpush1.msra.mxu0 %v99
    %495 = vmatprep.subr.mxu0 0.0
    %496 = vmatpush1.msra.mxu0 %v100
    %497 = vmatprep.subr.mxu0 0.0
    %498 = vmatpush1.msra.mxu0 %v101
    %499 = vmatprep.subr.mxu0 0.0
    %500 = vmatpush1.msra.mxu0 %v102
    %501 = vmatprep.subr.mxu0 0.0
    %502 = vmatpush1.msra.mxu0 %v103
    %503 = vmatprep.subr.mxu0 0.0
    %504 = vmatpush1.msra.mxu0 %v104
    %505 = vmatprep.subr.mxu0 0.0
    %506 = vmatpush1.msra.mxu0 %v105
    %507 = vmatprep.subr.mxu0 0.0
    %508 = vmatpush1.msra.mxu0 %v106
    %509 = vmatprep.subr.mxu0 0.0
    %510 = vmatpush1.msra.mxu0 %v107
    %511 = vmatprep.subr.mxu0 0.0
    %512 = vmatpush1.msra.mxu0 %v108
    %513 = vmatprep.subr.mxu0 0.0
    %514 = vmatpush1.msra.mxu0 %v109
    %515 = vmatprep.subr.mxu0 0.0
    %516 = vmatpush1.msra.mxu0 %v110
    %517 = vmatprep.subr.mxu0 0.0
    %518 = vmatpush1.msra.mxu0 %v111
    %519 = vmatprep.subr.mxu0 0.0
    %520 = vmatpush1.msra.mxu0 %v112
    %521 = vmatprep.subr.mxu0 0.0
    %522 = vmatpush1.msra.mxu0 0.0
    %523 = vmatprep.subr.mxu0 0.0
    %524 = vmatpush1.msra.mxu0 0.0
    %525 = vmatprep.subr.mxu0 0.0
    %526 = vmatpush1.msra.mxu0 0.0
    %527 = vmatprep.subr.mxu0 0.0
    %528 = vmatpush1.msra.mxu0 0.0
    %529 = vmatprep.subr.mxu0 0.0
    %530 = vmatpush1.msra.mxu0 0.0
    %531 = vmatprep.subr.mxu0 0.0
    %532 = vmatpush1.msra.mxu0 0.0
    %533 = vmatprep.subr.mxu0 0.0
    %534 = vmatpush1.msra.mxu0 0.0
    %535 = vmatprep.subr.mxu0 0.0
    %536 = vmatpush1.msra.mxu0 0.0
    %537 = vmatprep.subr.mxu0 0.0
    %538 = vmatpush1.msra.mxu0 0.0
    %539 = vmatprep.subr.mxu0 0.0
    %540 = vmatpush1.msra.mxu0 0.0
    %541 = vmatprep.subr.mxu0 0.0
    %542 = vmatpush1.msra.mxu0 0.0
    %543 = vmatprep.subr.mxu0 0.0
    %544 = vmatpush1.msra.mxu0 0.0
    %545 = vmatprep.subr.mxu0 0.0
    %546 = vmatpush1.msra.mxu0 0.0
    %547 = vmatprep.subr.mxu0 0.0
    %548 = vmatpush1.msra.mxu0 0.0
    %549 = vmatprep.subr.mxu0 0.0
    %550 = vmatpush1.msra.mxu0 0.0
    %551 = vmatprep.subr.mxu0 0.0
    %552 = vmatpush1.msra.mxu0 0.0
    %553 = vmatprep.mubr.f32.mxu0 0.0
    %554 = vmatmul.mubr.f32.gmra.mrb[0].mxu0 %v480
    %v555 = vpop.f32.mrb[0].mxu0
    %v556 = vadd.f32 %v485, %v555
    %v557 = vpop.f32.mrb[0].mxu0
    %558 = vdwg.mxu0
    %559 = vmatprep.subr.mxu0 0.0
    %560 = vmatpush1.msra.mxu0 %v113
    %561 = vmatprep.subr.mxu0 0.0
    %562 = vmatpush1.msra.mxu0 %v114
    %563 = vmatprep.subr.mxu0 0.0
    %564 = vmatpush1.msra.mxu0 %v115
    %565 = vmatprep.subr.mxu0 0.0
    %566 = vmatpush1.msra.mxu0 %v116
    %567 = vmatprep.subr.mxu0 0.0
    %568 = vmatpush1.msra.mxu0 %v117
    %569 = vmatprep.subr.mxu0 0.0
    %570 = vmatpush1.msra.mxu0 %v118
    %571 = vmatprep.subr.mxu0 0.0
    %572 = vmatpush1.msra.mxu0 %v119
    %573 = vmatprep.subr.mxu0 0.0
    %574 = vmatpush1.msra.mxu0 %v120
    %575 = vmatprep.subr.mxu0 0.0
    %576 = vmatpush1.msra.mxu0 %v121
    %577 = vmatprep.subr.mxu0 0.0
    %578 = vmatpush1.msra.mxu0 %v122
    %579 = vmatprep.subr.mxu0 0.0
    %580 = vmatpush1.msra.mxu0 %v123
    %581 = vmatprep.subr.mxu0 0.0
    %582 = vmatpush1.msra.mxu0 %v124
    %583 = vmatprep.subr.mxu0 0.0
    %584 = vmatpush1.msra.mxu0 %v125
    %585 = vmatprep.subr.mxu0 0.0
    %586 = vmatpush1.msra.mxu0 %v126
    %587 = vmatprep.subr.mxu0 0.0
    %588 = vmatpush1.msra.mxu0 %v127
    %589 = vmatprep.subr.mxu0 0.0
    %590 = vmatpush1.msra.mxu0 %v128
    %591 = vmatprep.subr.mxu0 0.0
    %592 = vmatpush1.msra.mxu0 0.0
    %593 = vmatprep.subr.mxu0 0.0
    %594 = vmatpush1.msra.mxu0 0.0
    %595 = vmatprep.subr.mxu0 0.0
    %596 = vmatpush1.msra.mxu0 0.0
    %597 = vmatprep.subr.mxu0 0.0
    %598 = vmatpush1.msra.mxu0 0.0
    %599 = vmatprep.subr.mxu0 0.0
    %600 = vmatpush1.msra.mxu0 0.0
    %601 = vmatprep.subr.mxu0 0.0
    %602 = vmatpush1.msra.mxu0 0.0
    %603 = vmatprep.subr.mxu0 0.0
    %604 = vmatpush1.msra.mxu0 0.0
    %605 = vmatprep.subr.mxu0 0.0
    %606 = vmatpush1.msra.mxu0 0.0
    %607 = vmatprep.subr.mxu0 0.0
    %608 = vmatpush1.msra.mxu0 0.0
    %609 = vmatprep.subr.mxu0 0.0
    %610 = vmatpush1.msra.mxu0 0.0
    %611 = vmatprep.subr.mxu0 0.0
    %612 = vmatpush1.msra.mxu0 0.0
    %613 = vmatprep.subr.mxu0 0.0
    %614 = vmatpush1.msra.mxu0 0.0
    %615 = vmatprep.subr.mxu0 0.0
    %616 = vmatpush1.msra.mxu0 0.0
    %617 = vmatprep.subr.mxu0 0.0
    %618 = vmatpush1.msra.mxu0 0.0
    %619 = vmatprep.subr.mxu0 0.0
    %620 = vmatpush1.msra.mxu0 0.0
    %621 = vmatprep.subr.mxu0 0.0
    %622 = vmatpush1.msra.mxu0 0.0
    %623 = vmatprep.mubr.f32.mxu0 0.0
    %624 = vmatmul.mubr.f32.gmra.mrb[0].mxu0 %v481
    %v625 = vpop.f32.mrb[0].mxu0
    %v626 = vadd.f32 %v486, %v625
    %v627 = vpop.f32.mrb[0].mxu0
    %628 = vdwg.mxu0
    %629 = vmatprep.subr.mxu0 0.0
    %630 = vmatpush1.msra.mxu0 %v129
    %631 = vmatprep.subr.mxu0 0.0
    %632 = vmatpush1.msra.mxu0 %v130
    %633 = vmatprep.subr.mxu0 0.0
    %634 = vmatpush1.msra.mxu0 %v131
    %635 = vmatprep.subr.mxu0 0.0
    %636 = vmatpush1.msra.mxu0 %v132
    %637 = vmatprep.subr.mxu0 0.0
    %638 = vmatpush1.msra.mxu0 %v133
    %639 = vmatprep.subr.mxu0 0.0
    %640 = vmatpush1.msra.mxu0 %v134
    %641 = vmatprep.subr.mxu0 0.0
    %642 = vmatpush1.msra.mxu0 %v135
    %643 = vmatprep.subr.mxu0 0.0
    %644 = vmatpush1.msra.mxu0 %v136
    %645 = vmatprep.subr.mxu0 0.0
    %646 = vmatpush1.msra.mxu0 %v137
    %647 = vmatprep.subr.mxu0 0.0
    %648 = vmatpush1.msra.mxu0 %v138
    %649 = vmatprep.subr.mxu0 0.0
    %650 = vmatpush1.msra.mxu0 %v139
    %651 = vmatprep.subr.mxu0 0.0
    %652 = vmatpush1.msra.mxu0 %v140
    %653 = vmatprep.subr.mxu0 0.0
    %654 = vmatpush1.msra.mxu0 %v141
    %655 = vmatprep.subr.mxu0 0.0
    %656 = vmatpush1.msra.mxu0 %v142
    %657 = vmatprep.subr.mxu0 0.0
    %658 = vmatpush1.msra.mxu0 %v143
    %659 = vmatprep.subr.mxu0 0.0
    %660 = vmatpush1.msra.mxu0 %v144
    %661 = vmatprep.subr.mxu0 0.0
    %662 = vmatpush1.msra.mxu0 0.0
    %663 = vmatprep.subr.mxu0 0.0
    %664 = vmatpush1.msra.mxu0 0.0
    %665 = vmatprep.subr.mxu0 0.0
    %666 = vmatpush1.msra.mxu0 0.0
    %667 = vmatprep.subr.mxu0 0.0
    %668 = vmatpush1.msra.mxu0 0.0
    %669 = vmatprep.subr.mxu0 0.0
    %670 = vmatpush1.msra.mxu0 0.0
    %671 = vmatprep.subr.mxu0 0.0
    %672 = vmatpush1.msra.mxu0 0.0
    %673 = vmatprep.subr.mxu0 0.0
    %674 = vmatpush1.msra.mxu0 0.0
    %675 = vmatprep.subr.mxu0 0.0
    %676 = vmatpush1.msra.mxu0 0.0
    %677 = vmatprep.subr.mxu0 0.0
    %678 = vmatpush1.msra.mxu0 0.0
    %679 = vmatprep.subr.mxu0 0.0
    %680 = vmatpush1.msra.mxu0 0.0
    %681 = vmatprep.subr.mxu0 0.0
    %682 = vmatpush1.msra.mxu0 0.0
    %683 = vmatprep.subr.mxu0 0.0
    %684 = vmatpush1.msra.mxu0 0.0
    %685 = vmatprep.subr.mxu0 0.0
    %686 = vmatpush1.msra.mxu0 0.0
    %687 = vmatprep.subr.mxu0 0.0
    %688 = vmatpush1.msra.mxu0 0.0
    %689 = vmatprep.subr.mxu0 0.0
    %690 = vmatpush1.msra.mxu0 0.0
    %691 = vmatprep.subr.mxu0 0.0
    %692 = vmatpush1.msra.mxu0 0.0
    %693 = vmatprep.mubr.f32.mxu0 0.0
    %694 = vmatmul.mubr.f32.gmra.mrb[0].mxu0 %v482
    %v695 = vpop.f32.mrb[0].mxu0
    %v696 = vadd.f32 %v487, %v695
    %v697 = vpop.f32.mrb[0].mxu0
    %698 = vdwg.mxu0
    %699 = vmatprep.subr.mxu0 0.0
    %700 = vmatpush1.msra.mxu0 %v145
    %701 = vmatprep.subr.mxu0 0.0
    %702 = vmatpush1.msra.mxu0 %v146
    %703 = vmatprep.subr.mxu0 0.0
    %704 = vmatpush1.msra.mxu0 %v147
    %705 = vmatprep.subr.mxu0 0.0
    %706 = vmatpush1.msra.mxu0 %v148
    %707 = vmatprep.subr.mxu0 0.0
    %708 = vmatpush1.msra.mxu0 %v149
    %709 = vmatprep.subr.mxu0 0.0
    %710 = vmatpush1.msra.mxu0 %v150
    %711 = vmatprep.subr.mxu0 0.0
    %712 = vmatpush1.msra.mxu0 %v151
    %713 = vmatprep.subr.mxu0 0.0
    %714 = vmatpush1.msra.mxu0 %v152
    %715 = vmatprep.subr.mxu0 0.0
    %716 = vmatpush1.msra.mxu0 %v153
    %717 = vmatprep.subr.mxu0 0.0
    %718 = vmatpush1.msra.mxu0 %v154
    %719 = vmatprep.subr.mxu0 0.0
    %720 = vmatpush1.msra.mxu0 %v155
    %721 = vmatprep.subr.mxu0 0.0
    %722 = vmatpush1.msra.mxu0 %v156
    %723 = vmatprep.subr.mxu0 0.0
    %724 = vmatpush1.msra.mxu0 %v157
    %725 = vmatprep.subr.mxu0 0.0
    %726 = vmatpush1.msra.mxu0 %v158
    %727 = vmatprep.subr.mxu0 0.0
    %728 = vmatpush1.msra.mxu0 %v159
    %729 = vmatprep.subr.mxu0 0.0
    %730 = vmatpush1.msra.mxu0 %v160
    %731 = vmatprep.subr.mxu0 0.0
    %732 = vmatpush1.msra.mxu0 0.0
    %733 = vmatprep.subr.mxu0 0.0
    %734 = vmatpush1.msra.mxu0 0.0
    %735 = vmatprep.subr.mxu0 0.0
    %736 = vmatpush1.msra.mxu0 0.0
    %737 = vmatprep.subr.mxu0 0.0
    %738 = vmatpush1.msra.mxu0 0.0
    %739 = vmatprep.subr.mxu0 0.0
    %740 = vmatpush1.msra.mxu0 0.0
    %741 = vmatprep.subr.mxu0 0.0
    %742 = vmatpush1.msra.mxu0 0.0
    %743 = vmatprep.subr.mxu0 0.0
    %744 = vmatpush1.msra.mxu0 0.0
    %745 = vmatprep.subr.mxu0 0.0
    %746 = vmatpush1.msra.mxu0 0.0
    %747 = vmatprep.subr.mxu0 0.0
    %748 = vmatpush1.msra.mxu0 0.0
    %749 = vmatprep.subr.mxu0 0.0
    %750 = vmatpush1.msra.mxu0 0.0
    %751 = vmatprep.subr.mxu0 0.0
    %752 = vmatpush1.msra.mxu0 0.0
    %753 = vmatprep.subr.mxu0 0.0
    %754 = vmatpush1.msra.mxu0 0.0
    %755 = vmatprep.subr.mxu0 0.0
    %756 = vmatpush1.msra.mxu0 0.0
    %757 = vmatprep.subr.mxu0 0.0
    %758 = vmatpush1.msra.mxu0 0.0
    %759 = vmatprep.subr.mxu0 0.0
    %760 = vmatpush1.msra.mxu0 0.0
    %761 = vmatprep.subr.mxu0 0.0
    %762 = vmatpush1.msra.mxu0 0.0
    %763 = vmatprep.mubr.f32.mxu0 0.0
    %764 = vmatmul.mubr.f32.gmra.mrb[0].mxu0 %v483
    %v765 = vpop.f32.mrb[0].mxu0
    %v766 = vadd.f32 %v488, %v765
    %v767 = vpop.f32.mrb[0].mxu0
    %768 = vdwg.mxu0
    %v769 = vxor.u32 %v556, 2147483648
    %v770 = vmul.f32 %v769, 1.442695
    %v771 = vpow.pop %v770
    %v772 = vadd.f32 %v771, 1.0
    %v773 = vrcp.pop %v772
    %v774 = vmul.f32 1.0, %v773
    %v775 = vxor.u32 %v626, 2147483648
    %v776 = vmul.f32 %v775, 1.442695
    %v777 = vpow.pop %v776
    %v778 = vadd.f32 %v777, 1.0
    %v779 = vrcp.pop %v778
    %v780 = vmul.f32 1.0, %v779
    %v781 = vxor.u32 %v696, 2147483648
    %v782 = vmul.f32 %v781, 1.442695
    %v783 = vpow.pop %v782
    %v784 = vadd.f32 %v783, 1.0
    %v785 = vrcp.pop %v784
    %v786 = vmul.f32 1.0, %v785
    %v787 = vtanh.pop %v766
    %v788 = vmul.f32 %v780, %v476
    %v789 = vmul.f32 %v774, %v787
    %v790 = vadd.f32 %v788, %v789
    %v791 = vtanh.pop %v790
    %v792 = vmul.f32 %v786, %v791
    %s793 = scalar_lea.vmem [#allocation14], 8
    %794 = vst [vmem:[%s793] sm:$0xff] %v792
    %v795 = vmul.f32 %v792, %v161
    %v796 = vmul.f32 %v792, %v162
    %v797 = vmul.f32 %v792, %v163
    %v798 = vmul.f32 %v792, %v164
    %s799 = scalar_lea.vmem [#allocation6], 64
    %v800 = vld [vmem:[%s799] sm:$0xff]
    %v801 = vld [vmem:[%s799 + $0x8] sm:$0xff]
    %v802 = vld [vmem:[%s799 + $0x10] sm:$0xff]
    %v803 = vld [vmem:[%s799 + $0x18] sm:$0xff]
    %804 = vmatprep.subr.mxu0 0.0
    %805 = vmatpush1.msra.mxu0 %v97
    %806 = vmatprep.subr.mxu0 0.0
    %807 = vmatpush1.msra.mxu0 %v98
    %808 = vmatprep.subr.mxu0 0.0
    %809 = vmatpush1.msra.mxu0 %v99
    %810 = vmatprep.subr.mxu0 0.0
    %811 = vmatpush1.msra.mxu0 %v100
    %812 = vmatprep.subr.mxu0 0.0
    %813 = vmatpush1.msra.mxu0 %v101
    %814 = vmatprep.subr.mxu0 0.0
    %815 = vmatpush1.msra.mxu0 %v102
    %816 = vmatprep.subr.mxu0 0.0
    %817 = vmatpush1.msra.mxu0 %v103
    %818 = vmatprep.subr.mxu0 0.0
    %819 = vmatpush1.msra.mxu0 %v104
    %820 = vmatprep.subr.mxu0 0.0
    %821 = vmatpush1.msra.mxu0 %v105
    %822 = vmatprep.subr.mxu0 0.0
    %823 = vmatpush1.msra.mxu0 %v106
    %824 = vmatprep.subr.mxu0 0.0
    %825 = vmatpush1.msra.mxu0 %v107
    %826 = vmatprep.subr.mxu0 0.0
    %827 = vmatpush1.msra.mxu0 %v108
    %828 = vmatprep.subr.mxu0 0.0
    %829 = vmatpush1.msra.mxu0 %v109
    %830 = vmatprep.subr.mxu0 0.0
    %831 = vmatpush1.msra.mxu0 %v110
    %832 = vmatprep.subr.mxu0 0.0
    %833 = vmatpush1.msra.mxu0 %v111
    %834 = vmatprep.subr.mxu0 0.0
    %835 = vmatpush1.msra.mxu0 %v112
    %836 = vmatprep.subr.mxu0 0.0
    %837 = vmatpush1.msra.mxu0 0.0
    %838 = vmatprep.subr.mxu0 0.0
    %839 = vmatpush1.msra.mxu0 0.0
    %840 = vmatprep.subr.mxu0 0.0
    %841 = vmatpush1.msra.mxu0 0.0
    %842 = vmatprep.subr.mxu0 0.0
    %843 = vmatpush1.msra.mxu0 0.0
    %844 = vmatprep.subr.mxu0 0.0
    %845 = vmatpush1.msra.mxu0 0.0
    %846 = vmatprep.subr.mxu0 0.0
    %847 = vmatpush1.msra.mxu0 0.0
    %848 = vmatprep.subr.mxu0 0.0
    %849 = vmatpush1.msra.mxu0 0.0
    %850 = vmatprep.subr.mxu0 0.0
    %851 = vmatpush1.msra.mxu0 0.0
    %852 = vmatprep.subr.mxu0 0.0
    %853 = vmatpush1.msra.mxu0 0.0
    %854 = vmatprep.subr.mxu0 0.0
    %855 = vmatpush1.msra.mxu0 0.0
    %856 = vmatprep.subr.mxu0 0.0
    %857 = vmatpush1.msra.mxu0 0.0
    %858 = vmatprep.subr.mxu0 0.0
    %859 = vmatpush1.msra.mxu0 0.0
    %860 = vmatprep.subr.mxu0 0.0
    %861 = vmatpush1.msra.mxu0 0.0
    %862 = vmatprep.subr.mxu0 0.0
    %863 = vmatpush1.msra.mxu0 0.0
    %864 = vmatprep.subr.mxu0 0.0
    %865 = vmatpush1.msra.mxu0 0.0
    %866 = vmatprep.subr.mxu0 0.0
    %867 = vmatpush1.msra.mxu0 0.0
    %868 = vmatprep.mubr.f32.mxu0 0.0
    %869 = vmatmul.mubr.f32.gmra.mrb[0].mxu0 %v795
    %v870 = vpop.f32.mrb[0].mxu0
    %v871 = vadd.f32 %v800, %v870
    %v872 = vpop.f32.mrb[0].mxu0
    %873 = vdwg.mxu0
    %874 = vmatprep.subr.mxu0 0.0
    %875 = vmatpush1.msra.mxu0 %v113
    %876 = vmatprep.subr.mxu0 0.0
    %877 = vmatpush1.msra.mxu0 %v114
    %878 = vmatprep.subr.mxu0 0.0
    %879 = vmatpush1.msra.mxu0 %v115
    %880 = vmatprep.subr.mxu0 0.0
    %881 = vmatpush1.msra.mxu0 %v116
    %882 = vmatprep.subr.mxu0 0.0
    %883 = vmatpush1.msra.mxu0 %v117
    %884 = vmatprep.subr.mxu0 0.0
    %885 = vmatpush1.msra.mxu0 %v118
    %886 = vmatprep.subr.mxu0 0.0
    %887 = vmatpush1.msra.mxu0 %v119
    %888 = vmatprep.subr.mxu0 0.0
    %889 = vmatpush1.msra.mxu0 %v120
    %890 = vmatprep.subr.mxu0 0.0
    %891 = vmatpush1.msra.mxu0 %v121
    %892 = vmatprep.subr.mxu0 0.0
    %893 = vmatpush1.msra.mxu0 %v122
    %894 = vmatprep.subr.mxu0 0.0
    %895 = vmatpush1.msra.mxu0 %v123
    %896 = vmatprep.subr.mxu0 0.0
    %897 = vmatpush1.msra.mxu0 %v124
    %898 = vmatprep.subr.mxu0 0.0
    %899 = vmatpush1.msra.mxu0 %v125
    %900 = vmatprep.subr.mxu0 0.0
    %901 = vmatpush1.msra.mxu0 %v126
    %902 = vmatprep.subr.mxu0 0.0
    %903 = vmatpush1.msra.mxu0 %v127
    %904 = vmatprep.subr.mxu0 0.0
    %905 = vmatpush1.msra.mxu0 %v128
    %906 = vmatprep.subr.mxu0 0.0
    %907 = vmatpush1.msra.mxu0 0.0
    %908 = vmatprep.subr.mxu0 0.0
    %909 = vmatpush1.msra.mxu0 0.0
    %910 = vmatprep.subr.mxu0 0.0
    %911 = vmatpush1.msra.mxu0 0.0
    %912 = vmatprep.subr.mxu0 0.0
    %913 = vmatpush1.msra.mxu0 0.0
    %914 = vmatprep.subr.mxu0 0.0
    %915 = vmatpush1.msra.mxu0 0.0
    %916 = vmatprep.subr.mxu0 0.0
    %917 = vmatpush1.msra.mxu0 0.0
    %918 = vmatprep.subr.mxu0 0.0
    %919 = vmatpush1.msra.mxu0 0.0
    %920 = vmatprep.subr.mxu0 0.0
    %921 = vmatpush1.msra.mxu0 0.0
    %922 = vmatprep.subr.mxu0 0.0
    %923 = vmatpush1.msra.mxu0 0.0
    %924 = vmatprep.subr.mxu0 0.0
    %925 = vmatpush1.msra.mxu0 0.0
    %926 = vmatprep.subr.mxu0 0.0
    %927 = vmatpush1.msra.mxu0 0.0
    %928 = vmatprep.subr.mxu0 0.0
    %929 = vmatpush1.msra.mxu0 0.0
    %930 = vmatprep.subr.mxu0 0.0
    %931 = vmatpush1.msra.mxu0 0.0
    %932 = vmatprep.subr.mxu0 0.0
    %933 = vmatpush1.msra.mxu0 0.0
    %934 = vmatprep.subr.mxu0 0.0
    %935 = vmatpush1.msra.mxu0 0.0
    %936 = vmatprep.subr.mxu0 0.0
    %937 = vmatpush1.msra.mxu0 0.0
    %938 = vmatprep.mubr.f32.mxu0 0.0
    %939 = vmatmul.mubr.f32.gmra.mrb[0].mxu0 %v796
    %v940 = vpop.f32.mrb[0].mxu0
    %v941 = vadd.f32 %v801, %v940
    %v942 = vpop.f32.mrb[0].mxu0
    %943 = vdwg.mxu0
    %944 = vmatprep.subr.mxu0 0.0
    %945 = vmatpush1.msra.mxu0 %v129
    %946 = vmatprep.subr.mxu0 0.0
    %947 = vmatpush1.msra.mxu0 %v130
    %948 = vmatprep.subr.mxu0 0.0
    %949 = vmatpush1.msra.mxu0 %v131
    %950 = vmatprep.subr.mxu0 0.0
    %951 = vmatpush1.msra.mxu0 %v132
    %952 = vmatprep.subr.mxu0 0.0
    %953 = vmatpush1.msra.mxu0 %v133
    %954 = vmatprep.subr.mxu0 0.0
    %955 = vmatpush1.msra.mxu0 %v134
    %956 = vmatprep.subr.mxu0 0.0
    %957 = vmatpush1.msra.mxu0 %v135
    %958 = vmatprep.subr.mxu0 0.0
    %959 = vmatpush1.msra.mxu0 %v136
    %960 = vmatprep.subr.mxu0 0.0
    %961 = vmatpush1.msra.mxu0 %v137
    %962 = vmatprep.subr.mxu0 0.0
    %963 = vmatpush1.msra.mxu0 %v138
    %964 = vmatprep.subr.mxu0 0.0
    %965 = vmatpush1.msra.mxu0 %v139
    %966 = vmatprep.subr.mxu0 0.0
    %967 = vmatpush1.msra.mxu0 %v140
    %968 = vmatprep.subr.mxu0 0.0
    %969 = vmatpush1.msra.mxu0 %v141
    %970 = vmatprep.subr.mxu0 0.0
    %971 = vmatpush1.msra.mxu0 %v142
    %972 = vmatprep.subr.mxu0 0.0
    %973 = vmatpush1.msra.mxu0 %v143
    %974 = vmatprep.subr.mxu0 0.0
    %975 = vmatpush1.msra.mxu0 %v144
    %976 = vmatprep.subr.mxu0 0.0
    %977 = vmatpush1.msra.mxu0 0.0
    %978 = vmatprep.subr.mxu0 0.0
    %979 = vmatpush1.msra.mxu0 0.0
    %980 = vmatprep.subr.mxu0 0.0
    %981 = vmatpush1.msra.mxu0 0.0
    %982 = vmatprep.subr.mxu0 0.0
    %983 = vmatpush1.msra.mxu0 0.0
    %984 = vmatprep.subr.mxu0 0.0
    %985 = vmatpush1.msra.mxu0 0.0
    %986 = vmatprep.subr.mxu0 0.0
    %987 = vmatpush1.msra.mxu0 0.0
    %988 = vmatprep.subr.mxu0 0.0
    %989 = vmatpush1.msra.mxu0 0.0
    %990 = vmatprep.subr.mxu0 0.0
    %991 = vmatpush1.msra.mxu0 0.0
    %992 = vmatprep.subr.mxu0 0.0
    %993 = vmatpush1.msra.mxu0 0.0
    %994 = vmatprep.subr.mxu0 0.0
    %995 = vmatpush1.msra.mxu0 0.0
    %996 = vmatprep.subr.mxu0 0.0
    %997 = vmatpush1.msra.mxu0 0.0
    %998 = vmatprep.subr.mxu0 0.0
    %999 = vmatpush1.msra.mxu0 0.0
    %1000 = vmatprep.subr.mxu0 0.0
    %1001 = vmatpush1.msra.mxu0 0.0
    %1002 = vmatprep.subr.mxu0 0.0
    %1003 = vmatpush1.msra.mxu0 0.0
    %1004 = vmatprep.subr.mxu0 0.0
    %1005 = vmatpush1.msra.mxu0 0.0
    %1006 = vmatprep.subr.mxu0 0.0
    %1007 = vmatpush1.msra.mxu0 0.0
    %1008 = vmatprep.mubr.f32.mxu0 0.0
    %1009 = vmatmul.mubr.f32.gmra.mrb[0].mxu0 %v797
    %v1010 = vpop.f32.mrb[0].mxu0
    %v1011 = vadd.f32 %v802, %v1010
    %v1012 = vpop.f32.mrb[0].mxu0
    %1013 = vdwg.mxu0
    %1014 = vmatprep.subr.mxu0 0.0
    %1015 = vmatpush1.msra.mxu0 %v145
    %1016 = vmatprep.subr.mxu0 0.0
    %1017 = vmatpush1.msra.mxu0 %v146
    %1018 = vmatprep.subr.mxu0 0.0
    %1019 = vmatpush1.msra.mxu0 %v147
    %1020 = vmatprep.subr.mxu0 0.0
    %1021 = vmatpush1.msra.mxu0 %v148
    %1022 = vmatprep.subr.mxu0 0.0
    %1023 = vmatpush1.msra.mxu0 %v149
    %1024 = vmatprep.subr.mxu0 0.0
    %1025 = vmatpush1.msra.mxu0 %v150
    %1026 = vmatprep.subr.mxu0 0.0
    %1027 = vmatpush1.msra.mxu0 %v151
    %1028 = vmatprep.subr.mxu0 0.0
    %1029 = vmatpush1.msra.mxu0 %v152
    %1030 = vmatprep.subr.mxu0 0.0
    %1031 = vmatpush1.msra.mxu0 %v153
    %1032 = vmatprep.subr.mxu0 0.0
    %1033 = vmatpush1.msra.mxu0 %v154
    %1034 = vmatprep.subr.mxu0 0.0
    %1035 = vmatpush1.msra.mxu0 %v155
    %1036 = vmatprep.subr.mxu0 0.0
    %1037 = vmatpush1.msra.mxu0 %v156
    %1038 = vmatprep.subr.mxu0 0.0
    %1039 = vmatpush1.msra.mxu0 %v157
    %1040 = vmatprep.subr.mxu0 0.0
    %1041 = vmatpush1.msra.mxu0 %v158
    %1042 = vmatprep.subr.mxu0 0.0
    %1043 = vmatpush1.msra.mxu0 %v159
    %1044 = vmatprep.subr.mxu0 0.0
    %1045 = vmatpush1.msra.mxu0 %v160
    %1046 = vmatprep.subr.mxu0 0.0
    %1047 = vmatpush1.msra.mxu0 0.0
    %1048 = vmatprep.subr.mxu0 0.0
    %1049 = vmatpush1.msra.mxu0 0.0
    %1050 = vmatprep.subr.mxu0 0.0
    %1051 = vmatpush1.msra.mxu0 0.0
    %1052 = vmatprep.subr.mxu0 0.0
    %1053 = vmatpush1.msra.mxu0 0.0
    %1054 = vmatprep.subr.mxu0 0.0
    %1055 = vmatpush1.msra.mxu0 0.0
    %1056 = vmatprep.subr.mxu0 0.0
    %1057 = vmatpush1.msra.mxu0 0.0
    %1058 = vmatprep.subr.mxu0 0.0
    %1059 = vmatpush1.msra.mxu0 0.0
    %1060 = vmatprep.subr.mxu0 0.0
    %1061 = vmatpush1.msra.mxu0 0.0
    %1062 = vmatprep.subr.mxu0 0.0
    %1063 = vmatpush1.msra.mxu0 0.0
    %1064 = vmatprep.subr.mxu0 0.0
    %1065 = vmatpush1.msra.mxu0 0.0
    %1066 = vmatprep.subr.mxu0 0.0
    %1067 = vmatpush1.msra.mxu0 0.0
    %1068 = vmatprep.subr.mxu0 0.0
    %1069 = vmatpush1.msra.mxu0 0.0
    %1070 = vmatprep.subr.mxu0 0.0
    %1071 = vmatpush1.msra.mxu0 0.0
    %1072 = vmatprep.subr.mxu0 0.0
    %1073 = vmatpush1.msra.mxu0 0.0
    %1074 = vmatprep.subr.mxu0 0.0
    %1075 = vmatpush1.msra.mxu0 0.0
    %1076 = vmatprep.subr.mxu0 0.0
    %1077 = vmatpush1.msra.mxu0 0.0
    %1078 = vmatprep.mubr.f32.mxu0 0.0
    %1079 = vmatmul.mubr.f32.gmra.mrb[0].mxu0 %v798
    %v1080 = vpop.f32.mrb[0].mxu0
    %v1081 = vadd.f32 %v803, %v1080
    %v1082 = vpop.f32.mrb[0].mxu0
    %1083 = vdwg.mxu0
    %v1084 = vxor.u32 %v871, 2147483648
    %v1085 = vmul.f32 %v1084, 1.442695
    %v1086 = vpow.pop %v1085
    %v1087 = vadd.f32 %v1086, 1.0
    %v1088 = vrcp.pop %v1087
    %v1089 = vmul.f32 1.0, %v1088
    %v1090 = vxor.u32 %v941, 2147483648
    %v1091 = vmul.f32 %v1090, 1.442695
    %v1092 = vpow.pop %v1091
    %v1093 = vadd.f32 %v1092, 1.0
    %v1094 = vrcp.pop %v1093
    %v1095 = vmul.f32 1.0, %v1094
    %v1096 = vxor.u32 %v1011, 2147483648
    %v1097 = vmul.f32 %v1096, 1.442695
    %v1098 = vpow.pop %v1097
    %v1099 = vadd.f32 %v1098, 1.0
    %v1100 = vrcp.pop %v1099
    %v1101 = vmul.f32 1.0, %v1100
    %v1102 = vtanh.pop %v1081
    %v1103 = vmul.f32 %v1095, %v790
    %v1104 = vmul.f32 %v1089, %v1102
    %v1105 = vadd.f32 %v1103, %v1104
    %v1106 = vtanh.pop %v1105
    %v1107 = vmul.f32 %v1101, %v1106
    %s1108 = scalar_lea.vmem [#allocation14], 16
    %1109 = vst [vmem:[%s1108] sm:$0xff] %v1107
    %v1110 = vmul.f32 %v1107, %v161
    %v1111 = vmul.f32 %v1107, %v162
    %v1112 = vmul.f32 %v1107, %v163
    %v1113 = vmul.f32 %v1107, %v164
    %s1114 = scalar_lea.vmem [#allocation6], 96
    %v1115 = vld [vmem:[%s1114] sm:$0xff]
    %v1116 = vld [vmem:[%s1114 + $0x8] sm:$0xff]
    %v1117 = vld [vmem:[%s1114 + $0x10] sm:$0xff]
    %v1118 = vld [vmem:[%s1114 + $0x18] sm:$0xff]
    %1119 = vmatprep.subr.mxu0 0.0
    %1120 = vmatpush1.msra.mxu0 %v97
    %1121 = vmatprep.subr.mxu0 0.0
    %1122 = vmatpush1.msra.mxu0 %v98
    %1123 = vmatprep.subr.mxu0 0.0
    %1124 = vmatpush1.msra.mxu0 %v99
    %1125 = vmatprep.subr.mxu0 0.0
    %1126 = vmatpush1.msra.mxu0 %v100
    %1127 = vmatprep.subr.mxu0 0.0
    %1128 = vmatpush1.msra.mxu0 %v101
    %1129 = vmatprep.subr.mxu0 0.0
    %1130 = vmatpush1.msra.mxu0 %v102
    %1131 = vmatprep.subr.mxu0 0.0
    %1132 = vmatpush1.msra.mxu0 %v103
    %1133 = vmatprep.subr.mxu0 0.0
    %1134 = vmatpush1.msra.mxu0 %v104
    %1135 = vmatprep.subr.mxu0 0.0
    %1136 = vmatpush1.msra.mxu0 %v105
    %1137 = vmatprep.subr.mxu0 0.0
    %1138 = vmatpush1.msra.mxu0 %v106
    %1139 = vmatprep.subr.mxu0 0.0
    %1140 = vmatpush1.msra.mxu0 %v107
    %1141 = vmatprep.subr.mxu0 0.0
    %1142 = vmatpush1.msra.mxu0 %v108
    %1143 = vmatprep.subr.mxu0 0.0
    %1144 = vmatpush1.msra.mxu0 %v109
    %1145 = vmatprep.subr.mxu0 0.0
    %1146 = vmatpush1.msra.mxu0 %v110
    %1147 = vmatprep.subr.mxu0 0.0
    %1148 = vmatpush1.msra.mxu0 %v111
    %1149 = vmatprep.subr.mxu0 0.0
    %1150 = vmatpush1.msra.mxu0 %v112
    %1151 = vmatprep.subr.mxu0 0.0
    %1152 = vmatpush1.msra.mxu0 0.0
    %1153 = vmatprep.subr.mxu0 0.0
    %1154 = vmatpush1.msra.mxu0 0.0
    %1155 = vmatprep.subr.mxu0 0.0
    %1156 = vmatpush1.msra.mxu0 0.0
    %1157 = vmatprep.subr.mxu0 0.0
    %1158 = vmatpush1.msra.mxu0 0.0
    %1159 = vmatprep.subr.mxu0 0.0
    %1160 = vmatpush1.msra.mxu0 0.0
    %1161 = vmatprep.subr.mxu0 0.0
    %1162 = vmatpush1.msra.mxu0 0.0
    %1163 = vmatprep.subr.mxu0 0.0
    %1164 = vmatpush1.msra.mxu0 0.0
    %1165 = vmatprep.subr.mxu0 0.0
    %1166 = vmatpush1.msra.mxu0 0.0
    %1167 = vmatprep.subr.mxu0 0.0
    %1168 = vmatpush1.msra.mxu0 0.0
    %1169 = vmatprep.subr.mxu0 0.0
    %1170 = vmatpush1.msra.mxu0 0.0
    %1171 = vmatprep.subr.mxu0 0.0
    %1172 = vmatpush1.msra.mxu0 0.0
    %1173 = vmatprep.subr.mxu0 0.0
    %1174 = vmatpush1.msra.mxu0 0.0
    %1175 = vmatprep.subr.mxu0 0.0
    %1176 = vmatpush1.msra.mxu0 0.0
    %1177 = vmatprep.subr.mxu0 0.0
    %1178 = vmatpush1.msra.mxu0 0.0
    %1179 = vmatprep.subr.mxu0 0.0
    %1180 = vmatpush1.msra.mxu0 0.0
    %1181 = vmatprep.subr.mxu0 0.0
    %1182 = vmatpush1.msra.mxu0 0.0
    %1183 = vmatprep.mubr.f32.mxu0 0.0
    %1184 = vmatmul.mubr.f32.gmra.mrb[0].mxu0 %v1110
    %v1185 = vpop.f32.mrb[0].mxu0
    %v1186 = vadd.f32 %v1115, %v1185
    %v1187 = vpop.f32.mrb[0].mxu0
    %1188 = vdwg.mxu0
    %1189 = vmatprep.subr.mxu0 0.0
    %1190 = vmatpush1.msra.mxu0 %v113
    %1191 = vmatprep.subr.mxu0 0.0
    %1192 = vmatpush1.msra.mxu0 %v114
    %1193 = vmatprep.subr.mxu0 0.0
    %1194 = vmatpush1.msra.mxu0 %v115
    %1195 = vmatprep.subr.mxu0 0.0
    %1196 = vmatpush1.msra.mxu0 %v116
    %1197 = vmatprep.subr.mxu0 0.0
    %1198 = vmatpush1.msra.mxu0 %v117
    %1199 = vmatprep.subr.mxu0 0.0
    %1200 = vmatpush1.msra.mxu0 %v118
    %1201 = vmatprep.subr.mxu0 0.0
    %1202 = vmatpush1.msra.mxu0 %v119
    %1203 = vmatprep.subr.mxu0 0.0
    %1204 = vmatpush1.msra.mxu0 %v120
    %1205 = vmatprep.subr.mxu0 0.0
    %1206 = vmatpush1.msra.mxu0 %v121
    %1207 = vmatprep.subr.mxu0 0.0
    %1208 = vmatpush1.msra.mxu0 %v122
    %1209 = vmatprep.subr.mxu0 0.0
    %1210 = vmatpush1.msra.mxu0 %v123
    %1211 = vmatprep.subr.mxu0 0.0
    %1212 = vmatpush1.msra.mxu0 %v124
    %1213 = vmatprep.subr.mxu0 0.0
    %1214 = vmatpush1.msra.mxu0 %v125
    %1215 = vmatprep.subr.mxu0 0.0
    %1216 = vmatpush1.msra.mxu0 %v126
    %1217 = vmatprep.subr.mxu0 0.0
    %1218 = vmatpush1.msra.mxu0 %v127
    %1219 = vmatprep.subr.mxu0 0.0
    %1220 = vmatpush1.msra.mxu0 %v128
    %1221 = vmatprep.subr.mxu0 0.0
    %1222 = vmatpush1.msra.mxu0 0.0
    %1223 = vmatprep.subr.mxu0 0.0
    %1224 = vmatpush1.msra.mxu0 0.0
    %1225 = vmatprep.subr.mxu0 0.0
    %1226 = vmatpush1.msra.mxu0 0.0
    %1227 = vmatprep.subr.mxu0 0.0
    %1228 = vmatpush1.msra.mxu0 0.0
    %1229 = vmatprep.subr.mxu0 0.0
    %1230 = vmatpush1.msra.mxu0 0.0
    %1231 = vmatprep.subr.mxu0 0.0
    %1232 = vmatpush1.msra.mxu0 0.0
    %1233 = vmatprep.subr.mxu0 0.0
    %1234 = vmatpush1.msra.mxu0 0.0
    %1235 = vmatprep.subr.mxu0 0.0
    %1236 = vmatpush1.msra.mxu0 0.0
    %1237 = vmatprep.subr.mxu0 0.0
    %1238 = vmatpush1.msra.mxu0 0.0
    %1239 = vmatprep.subr.mxu0 0.0
    %1240 = vmatpush1.msra.mxu0 0.0
    %1241 = vmatprep.subr.mxu0 0.0
    %1242 = vmatpush1.msra.mxu0 0.0
    %1243 = vmatprep.subr.mxu0 0.0
    %1244 = vmatpush1.msra.mxu0 0.0
    %1245 = vmatprep.subr.mxu0 0.0
    %1246 = vmatpush1.msra.mxu0 0.0
    %1247 = vmatprep.subr.mxu0 0.0
    %1248 = vmatpush1.msra.mxu0 0.0
    %1249 = vmatprep.subr.mxu0 0.0
    %1250 = vmatpush1.msra.mxu0 0.0
    %1251 = vmatprep.subr.mxu0 0.0
    %1252 = vmatpush1.msra.mxu0 0.0
    %1253 = vmatprep.mubr.f32.mxu0 0.0
    %1254 = vmatmul.mubr.f32.gmra.mrb[0].mxu0 %v1111
    %v1255 = vpop.f32.mrb[0].mxu0
    %v1256 = vadd.f32 %v1116, %v1255
    %v1257 = vpop.f32.mrb[0].mxu0
    %1258 = vdwg.mxu0
    %1259 = vmatprep.subr.mxu0 0.0
    %1260 = vmatpush1.msra.mxu0 %v129
    %1261 = vmatprep.subr.mxu0 0.0
    %1262 = vmatpush1.msra.mxu0 %v130
    %1263 = vmatprep.subr.mxu0 0.0
    %1264 = vmatpush1.msra.mxu0 %v131
    %1265 = vmatprep.subr.mxu0 0.0
    %1266 = vmatpush1.msra.mxu0 %v132
    %1267 = vmatprep.subr.mxu0 0.0
    %1268 = vmatpush1.msra.mxu0 %v133
    %1269 = vmatprep.subr.mxu0 0.0
    %1270 = vmatpush1.msra.mxu0 %v134
    %1271 = vmatprep.subr.mxu0 0.0
    %1272 = vmatpush1.msra.mxu0 %v135
    %1273 = vmatprep.subr.mxu0 0.0
    %1274 = vmatpush1.msra.mxu0 %v136
    %1275 = vmatprep.subr.mxu0 0.0
    %1276 = vmatpush1.msra.mxu0 %v137
    %1277 = vmatprep.subr.mxu0 0.0
    %1278 = vmatpush1.msra.mxu0 %v138
    %1279 = vmatprep.subr.mxu0 0.0
    %1280 = vmatpush1.msra.mxu0 %v139
    %1281 = vmatprep.subr.mxu0 0.0
    %1282 = vmatpush1.msra.mxu0 %v140
    %1283 = vmatprep.subr.mxu0 0.0
    %1284 = vmatpush1.msra.mxu0 %v141
    %1285 = vmatprep.subr.mxu0 0.0
    %1286 = vmatpush1.msra.mxu0 %v142
    %1287 = vmatprep.subr.mxu0 0.0
    %1288 = vmatpush1.msra.mxu0 %v143
    %1289 = vmatprep.subr.mxu0 0.0
    %1290 = vmatpush1.msra.mxu0 %v144
    %1291 = vmatprep.subr.mxu0 0.0
    %1292 = vmatpush1.msra.mxu0 0.0
    %1293 = vmatprep.subr.mxu0 0.0
    %1294 = vmatpush1.msra.mxu0 0.0
    %1295 = vmatprep.subr.mxu0 0.0
    %1296 = vmatpush1.msra.mxu0 0.0
    %1297 = vmatprep.subr.mxu0 0.0
    %1298 = vmatpush1.msra.mxu0 0.0
    %1299 = vmatprep.subr.mxu0 0.0
    %1300 = vmatpush1.msra.mxu0 0.0
    %1301 = vmatprep.subr.mxu0 0.0
    %1302 = vmatpush1.msra.mxu0 0.0
    %1303 = vmatprep.subr.mxu0 0.0
    %1304 = vmatpush1.msra.mxu0 0.0
    %1305 = vmatprep.subr.mxu0 0.0
    %1306 = vmatpush1.msra.mxu0 0.0
    %1307 = vmatprep.subr.mxu0 0.0
    %1308 = vmatpush1.msra.mxu0 0.0
    %1309 = vmatprep.subr.mxu0 0.0
    %1310 = vmatpush1.msra.mxu0 0.0
    %1311 = vmatprep.subr.mxu0 0.0
    %1312 = vmatpush1.msra.mxu0 0.0
    %1313 = vmatprep.subr.mxu0 0.0
    %1314 = vmatpush1.msra.mxu0 0.0
    %1315 = vmatprep.subr.mxu0 0.0
    %1316 = vmatpush1.msra.mxu0 0.0
    %1317 = vmatprep.subr.mxu0 0.0
    %1318 = vmatpush1.msra.mxu0 0.0
    %1319 = vmatprep.subr.mxu0 0.0
    %1320 = vmatpush1.msra.mxu0 0.0
    %1321 = vmatprep.subr.mxu0 0.0
    %1322 = vmatpush1.msra.mxu0 0.0
    %1323 = vmatprep.mubr.f32.mxu0 0.0
    %1324 = vmatmul.mubr.f32.gmra.mrb[0].mxu0 %v1112
    %v1325 = vpop.f32.mrb[0].mxu0
    %v1326 = vadd.f32 %v1117, %v1325
    %v1327 = vpop.f32.mrb[0].mxu0
    %1328 = vdwg.mxu0
    %1329 = vmatprep.subr.mxu0 0.0
    %1330 = vmatpush1.msra.mxu0 %v145
    %1331 = vmatprep.subr.mxu0 0.0
    %1332 = vmatpush1.msra.mxu0 %v146
    %1333 = vmatprep.subr.mxu0 0.0
    %1334 = vmatpush1.msra.mxu0 %v147
    %1335 = vmatprep.subr.mxu0 0.0
    %1336 = vmatpush1.msra.mxu0 %v148
    %1337 = vmatprep.subr.mxu0 0.0
    %1338 = vmatpush1.msra.mxu0 %v149
    %1339 = vmatprep.subr.mxu0 0.0
    %1340 = vmatpush1.msra.mxu0 %v150
    %1341 = vmatprep.subr.mxu0 0.0
    %1342 = vmatpush1.msra.mxu0 %v151
    %1343 = vmatprep.subr.mxu0 0.0
    %1344 = vmatpush1.msra.mxu0 %v152
    %1345 = vmatprep.subr.mxu0 0.0
    %1346 = vmatpush1.msra.mxu0 %v153
    %1347 = vmatprep.subr.mxu0 0.0
    %1348 = vmatpush1.msra.mxu0 %v154
    %1349 = vmatprep.subr.mxu0 0.0
    %1350 = vmatpush1.msra.mxu0 %v155
    %1351 = vmatprep.subr.mxu0 0.0
    %1352 = vmatpush1.msra.mxu0 %v156
    %1353 = vmatprep.subr.mxu0 0.0
    %1354 = vmatpush1.msra.mxu0 %v157
    %1355 = vmatprep.subr.mxu0 0.0
    %1356 = vmatpush1.msra.mxu0 %v158
    %1357 = vmatprep.subr.mxu0 0.0
    %1358 = vmatpush1.msra.mxu0 %v159
    %1359 = vmatprep.subr.mxu0 0.0
    %1360 = vmatpush1.msra.mxu0 %v160
    %1361 = vmatprep.subr.mxu0 0.0
    %1362 = vmatpush1.msra.mxu0 0.0
    %1363 = vmatprep.subr.mxu0 0.0
    %1364 = vmatpush1.msra.mxu0 0.0
    %1365 = vmatprep.subr.mxu0 0.0
    %1366 = vmatpush1.msra.mxu0 0.0
    %1367 = vmatprep.subr.mxu0 0.0
    %1368 = vmatpush1.msra.mxu0 0.0
    %1369 = vmatprep.subr.mxu0 0.0
    %1370 = vmatpush1.msra.mxu0 0.0
    %1371 = vmatprep.subr.mxu0 0.0
    %1372 = vmatpush1.msra.mxu0 0.0
    %1373 = vmatprep.subr.mxu0 0.0
    %1374 = vmatpush1.msra.mxu0 0.0
    %1375 = vmatprep.subr.mxu0 0.0
    %1376 = vmatpush1.msra.mxu0 0.0
    %1377 = vmatprep.subr.mxu0 0.0
    %1378 = vmatpush1.msra.mxu0 0.0
    %1379 = vmatprep.subr.mxu0 0.0
    %1380 = vmatpush1.msra.mxu0 0.0
    %1381 = vmatprep.subr.mxu0 0.0
    %1382 = vmatpush1.msra.mxu0 0.0
    %1383 = vmatprep.subr.mxu0 0.0
    %1384 = vmatpush1.msra.mxu0 0.0
    %1385 = vmatprep.subr.mxu0 0.0
    %1386 = vmatpush1.msra.mxu0 0.0
    %1387 = vmatprep.subr.mxu0 0.0
    %1388 = vmatpush1.msra.mxu0 0.0
    %1389 = vmatprep.subr.mxu0 0.0
    %1390 = vmatpush1.msra.mxu0 0.0
    %1391 = vmatprep.subr.mxu0 0.0
    %1392 = vmatpush1.msra.mxu0 0.0
    %1393 = vmatprep.mubr.f32.mxu0 0.0
    %1394 = vmatmul.mubr.f32.gmra.mrb[0].mxu0 %v1113
    %v1395 = vpop.f32.mrb[0].mxu0
    %v1396 = vadd.f32 %v1118, %v1395
    %v1397 = vpop.f32.mrb[0].mxu0
    %1398 = vdwg.mxu0
    %v1399 = vxor.u32 %v1186, 2147483648
    %v1400 = vmul.f32 %v1399, 1.442695
    %v1401 = vpow.pop %v1400
    %v1402 = vadd.f32 %v1401, 1.0
    %v1403 = vrcp.pop %v1402
    %v1404 = vmul.f32 1.0, %v1403
    %v1405 = vxor.u32 %v1256, 2147483648
    %v1406 = vmul.f32 %v1405, 1.442695
    %v1407 = vpow.pop %v1406
    %v1408 = vadd.f32 %v1407, 1.0
    %v1409 = vrcp.pop %v1408
    %v1410 = vmul.f32 1.0, %v1409
    %v1411 = vxor.u32 %v1326, 2147483648
    %v1412 = vmul.f32 %v1411, 1.442695
    %v1413 = vpow.pop %v1412
    %v1414 = vadd.f32 %v1413, 1.0
    %v1415 = vrcp.pop %v1414
    %v1416 = vmul.f32 1.0, %v1415
    %v1417 = vtanh.pop %v1396
    %v1418 = vmul.f32 %v1410, %v1105
    %v1419 = vmul.f32 %v1404, %v1417
    %v1420 = vadd.f32 %v1418, %v1419
    %v1421 = vtanh.pop %v1420
    %v1422 = vmul.f32 %v1416, %v1421
    %s1423 = scalar_lea.vmem [#allocation14], 24
    %1424 = vst [vmem:[%s1423] sm:$0xff] %v1422
    %v1425 = vmul.f32 %v1422, %v161
    %v1426 = vmul.f32 %v1422, %v162
    %v1427 = vmul.f32 %v1422, %v163
    %v1428 = vmul.f32 %v1422, %v164
    %s1429 = scalar_lea.vmem [#allocation6], 128
    %v1430 = vld [vmem:[%s1429] sm:$0xff]
    %v1431 = vld [vmem:[%s1429 + $0x8] sm:$0xff]
    %v1432 = vld [vmem:[%s1429 + $0x10] sm:$0xff]
    %v1433 = vld [vmem:[%s1429 + $0x18] sm:$0xff]
    %1434 = vmatprep.subr.mxu0 0.0
    %1435 = vmatpush1.msra.mxu0 %v97
    %1436 = vmatprep.subr.mxu0 0.0
    %1437 = vmatpush1.msra.mxu0 %v98
    %1438 = vmatprep.subr.mxu0 0.0
    %1439 = vmatpush1.msra.mxu0 %v99
    %1440 = vmatprep.subr.mxu0 0.0
    %1441 = vmatpush1.msra.mxu0 %v100
    %1442 = vmatprep.subr.mxu0 0.0
    %1443 = vmatpush1.msra.mxu0 %v101
    %1444 = vmatprep.subr.mxu0 0.0
    %1445 = vmatpush1.msra.mxu0 %v102
    %1446 = vmatprep.subr.mxu0 0.0
    %1447 = vmatpush1.msra.mxu0 %v103
    %1448 = vmatprep.subr.mxu0 0.0
    %1449 = vmatpush1.msra.mxu0 %v104
    %1450 = vmatprep.subr.mxu0 0.0
    %1451 = vmatpush1.msra.mxu0 %v105
    %1452 = vmatprep.subr.mxu0 0.0
    %1453 = vmatpush1.msra.mxu0 %v106
    %1454 = vmatprep.subr.mxu0 0.0
    %1455 = vmatpush1.msra.mxu0 %v107
    %1456 = vmatprep.subr.mxu0 0.0
    %1457 = vmatpush1.msra.mxu0 %v108
    %1458 = vmatprep.subr.mxu0 0.0
    %1459 = vmatpush1.msra.mxu0 %v109
    %1460 = vmatprep.subr.mxu0 0.0
    %1461 = vmatpush1.msra.mxu0 %v110
    %1462 = vmatprep.subr.mxu0 0.0
    %1463 = vmatpush1.msra.mxu0 %v111
    %1464 = vmatprep.subr.mxu0 0.0
    %1465 = vmatpush1.msra.mxu0 %v112
    %1466 = vmatprep.subr.mxu0 0.0
    %1467 = vmatpush1.msra.mxu0 0.0
    %1468 = vmatprep.subr.mxu0 0.0
    %1469 = vmatpush1.msra.mxu0 0.0
    %1470 = vmatprep.subr.mxu0 0.0
    %1471 = vmatpush1.msra.mxu0 0.0
    %1472 = vmatprep.subr.mxu0 0.0
    %1473 = vmatpush1.msra.mxu0 0.0
    %1474 = vmatprep.subr.mxu0 0.0
    %1475 = vmatpush1.msra.mxu0 0.0
    %1476 = vmatprep.subr.mxu0 0.0
    %1477 = vmatpush1.msra.mxu0 0.0
    %1478 = vmatprep.subr.mxu0 0.0
    %1479 = vmatpush1.msra.mxu0 0.0
    %1480 = vmatprep.subr.mxu0 0.0
    %1481 = vmatpush1.msra.mxu0 0.0
    %1482 = vmatprep.subr.mxu0 0.0
    %1483 = vmatpush1.msra.mxu0 0.0
    %1484 = vmatprep.subr.mxu0 0.0
    %1485 = vmatpush1.msra.mxu0 0.0
    %1486 = vmatprep.subr.mxu0 0.0
    %1487 = vmatpush1.msra.mxu0 0.0
    %1488 = vmatprep.subr.mxu0 0.0
    %1489 = vmatpush1.msra.mxu0 0.0
    %1490 = vmatprep.subr.mxu0 0.0
    %1491 = vmatpush1.msra.mxu0 0.0
    %1492 = vmatprep.subr.mxu0 0.0
    %1493 = vmatpush1.msra.mxu0 0.0
    %1494 = vmatprep.subr.mxu0 0.0
    %1495 = vmatpush1.msra.mxu0 0.0
    %1496 = vmatprep.subr.mxu0 0.0
    %1497 = vmatpush1.msra.mxu0 0.0
    %1498 = vmatprep.mubr.f32.mxu0 0.0
    %1499 = vmatmul.mubr.f32.gmra.mrb[0].mxu0 %v1425
    %v1500 = vpop.f32.mrb[0].mxu0
    %v1501 = vadd.f32 %v1430, %v1500
    %v1502 = vpop.f32.mrb[0].mxu0
    %1503 = vdwg.mxu0
    %1504 = vmatprep.subr.mxu0 0.0
    %1505 = vmatpush1.msra.mxu0 %v113
    %1506 = vmatprep.subr.mxu0 0.0
    %1507 = vmatpush1.msra.mxu0 %v114
    %1508 = vmatprep.subr.mxu0 0.0
    %1509 = vmatpush1.msra.mxu0 %v115
    %1510 = vmatprep.subr.mxu0 0.0
    %1511 = vmatpush1.msra.mxu0 %v116
    %1512 = vmatprep.subr.mxu0 0.0
    %1513 = vmatpush1.msra.mxu0 %v117
    %1514 = vmatprep.subr.mxu0 0.0
    %1515 = vmatpush1.msra.mxu0 %v118
    %1516 = vmatprep.subr.mxu0 0.0
    %1517 = vmatpush1.msra.mxu0 %v119
    %1518 = vmatprep.subr.mxu0 0.0
    %1519 = vmatpush1.msra.mxu0 %v120
    %1520 = vmatprep.subr.mxu0 0.0
    %1521 = vmatpush1.msra.mxu0 %v121
    %1522 = vmatprep.subr.mxu0 0.0
    %1523 = vmatpush1.msra.mxu0 %v122
    %1524 = vmatprep.subr.mxu0 0.0
    %1525 = vmatpush1.msra.mxu0 %v123
    %1526 = vmatprep.subr.mxu0 0.0
    %1527 = vmatpush1.msra.mxu0 %v124
    %1528 = vmatprep.subr.mxu0 0.0
    %1529 = vmatpush1.msra.mxu0 %v125
    %1530 = vmatprep.subr.mxu0 0.0
    %1531 = vmatpush1.msra.mxu0 %v126
    %1532 = vmatprep.subr.mxu0 0.0
    %1533 = vmatpush1.msra.mxu0 %v127
    %1534 = vmatprep.subr.mxu0 0.0
    %1535 = vmatpush1.msra.mxu0 %v128
    %1536 = vmatprep.subr.mxu0 0.0
    %1537 = vmatpush1.msra.mxu0 0.0
    %1538 = vmatprep.subr.mxu0 0.0
    %1539 = vmatpush1.msra.mxu0 0.0
    %1540 = vmatprep.subr.mxu0 0.0
    %1541 = vmatpush1.msra.mxu0 0.0
    %1542 = vmatprep.subr.mxu0 0.0
    %1543 = vmatpush1.msra.mxu0 0.0
    %1544 = vmatprep.subr.mxu0 0.0
    %1545 = vmatpush1.msra.mxu0 0.0
    %1546 = vmatprep.subr.mxu0 0.0
    %1547 = vmatpush1.msra.mxu0 0.0
    %1548 = vmatprep.subr.mxu0 0.0
    %1549 = vmatpush1.msra.mxu0 0.0
    %1550 = vmatprep.subr.mxu0 0.0
    %1551 = vmatpush1.msra.mxu0 0.0
    %1552 = vmatprep.subr.mxu0 0.0
    %1553 = vmatpush1.msra.mxu0 0.0
    %1554 = vmatprep.subr.mxu0 0.0
    %1555 = vmatpush1.msra.mxu0 0.0
    %1556 = vmatprep.subr.mxu0 0.0
    %1557 = vmatpush1.msra.mxu0 0.0
    %1558 = vmatprep.subr.mxu0 0.0
    %1559 = vmatpush1.msra.mxu0 0.0
    %1560 = vmatprep.subr.mxu0 0.0
    %1561 = vmatpush1.msra.mxu0 0.0
    %1562 = vmatprep.subr.mxu0 0.0
    %1563 = vmatpush1.msra.mxu0 0.0
    %1564 = vmatprep.subr.mxu0 0.0
    %1565 = vmatpush1.msra.mxu0 0.0
    %1566 = vmatprep.subr.mxu0 0.0
    %1567 = vmatpush1.msra.mxu0 0.0
    %1568 = vmatprep.mubr.f32.mxu0 0.0
    %1569 = vmatmul.mubr.f32.gmra.mrb[0].mxu0 %v1426
    %v1570 = vpop.f32.mrb[0].mxu0
    %v1571 = vadd.f32 %v1431, %v1570
    %v1572 = vpop.f32.mrb[0].mxu0
    %1573 = vdwg.mxu0
    %1574 = vmatprep.subr.mxu0 0.0
    %1575 = vmatpush1.msra.mxu0 %v129
    %1576 = vmatprep.subr.mxu0 0.0
    %1577 = vmatpush1.msra.mxu0 %v130
    %1578 = vmatprep.subr.mxu0 0.0
    %1579 = vmatpush1.msra.mxu0 %v131
    %1580 = vmatprep.subr.mxu0 0.0
    %1581 = vmatpush1.msra.mxu0 %v132
    %1582 = vmatprep.subr.mxu0 0.0
    %1583 = vmatpush1.msra.mxu0 %v133
    %1584 = vmatprep.subr.mxu0 0.0
    %1585 = vmatpush1.msra.mxu0 %v134
    %1586 = vmatprep.subr.mxu0 0.0
    %1587 = vmatpush1.msra.mxu0 %v135
    %1588 = vmatprep.subr.mxu0 0.0
    %1589 = vmatpush1.msra.mxu0 %v136
    %1590 = vmatprep.subr.mxu0 0.0
    %1591 = vmatpush1.msra.mxu0 %v137
    %1592 = vmatprep.subr.mxu0 0.0
    %1593 = vmatpush1.msra.mxu0 %v138
    %1594 = vmatprep.subr.mxu0 0.0
    %1595 = vmatpush1.msra.mxu0 %v139
    %1596 = vmatprep.subr.mxu0 0.0
    %1597 = vmatpush1.msra.mxu0 %v140
    %1598 = vmatprep.subr.mxu0 0.0
    %1599 = vmatpush1.msra.mxu0 %v141
    %1600 = vmatprep.subr.mxu0 0.0
    %1601 = vmatpush1.msra.mxu0 %v142
    %1602 = vmatprep.subr.mxu0 0.0
    %1603 = vmatpush1.msra.mxu0 %v143
    %1604 = vmatprep.subr.mxu0 0.0
    %1605 = vmatpush1.msra.mxu0 %v144
    %1606 = vmatprep.subr.mxu0 0.0
    %1607 = vmatpush1.msra.mxu0 0.0
    %1608 = vmatprep.subr.mxu0 0.0
    %1609 = vmatpush1.msra.mxu0 0.0
    %1610 = vmatprep.subr.mxu0 0.0
    %1611 = vmatpush1.msra.mxu0 0.0
    %1612 = vmatprep.subr.mxu0 0.0
    %1613 = vmatpush1.msra.mxu0 0.0
    %1614 = vmatprep.subr.mxu0 0.0
    %1615 = vmatpush1.msra.mxu0 0.0
    %1616 = vmatprep.subr.mxu0 0.0
    %1617 = vmatpush1.msra.mxu0 0.0
    %1618 = vmatprep.subr.mxu0 0.0
    %1619 = vmatpush1.msra.mxu0 0.0
    %1620 = vmatprep.subr.mxu0 0.0
    %1621 = vmatpush1.msra.mxu0 0.0
    %1622 = vmatprep.subr.mxu0 0.0
    %1623 = vmatpush1.msra.mxu0 0.0
    %1624 = vmatprep.subr.mxu0 0.0
    %1625 = vmatpush1.msra.mxu0 0.0
    %1626 = vmatprep.subr.mxu0 0.0
    %1627 = vmatpush1.msra.mxu0 0.0
    %1628 = vmatprep.subr.mxu0 0.0
    %1629 = vmatpush1.msra.mxu0 0.0
    %1630 = vmatprep.subr.mxu0 0.0
    %1631 = vmatpush1.msra.mxu0 0.0
    %1632 = vmatprep.subr.mxu0 0.0
    %1633 = vmatpush1.msra.mxu0 0.0
    %1634 = vmatprep.subr.mxu0 0.0
    %1635 = vmatpush1.msra.mxu0 0.0
    %1636 = vmatprep.subr.mxu0 0.0
    %1637 = vmatpush1.msra.mxu0 0.0
    %1638 = vmatprep.mubr.f32.mxu0 0.0
    %1639 = vmatmul.mubr.f32.gmra.mrb[0].mxu0 %v1427
    %v1640 = vpop.f32.mrb[0].mxu0
    %v1641 = vadd.f32 %v1432, %v1640
    %v1642 = vpop.f32.mrb[0].mxu0
    %1643 = vdwg.mxu0
    %1644 = vmatprep.subr.mxu0 0.0
    %1645 = vmatpush1.msra.mxu0 %v145
    %1646 = vmatprep.subr.mxu0 0.0
    %1647 = vmatpush1.msra.mxu0 %v146
    %1648 = vmatprep.subr.mxu0 0.0
    %1649 = vmatpush1.msra.mxu0 %v147
    %1650 = vmatprep.subr.mxu0 0.0
    %1651 = vmatpush1.msra.mxu0 %v148
    %1652 = vmatprep.subr.mxu0 0.0
    %1653 = vmatpush1.msra.mxu0 %v149
    %1654 = vmatprep.subr.mxu0 0.0
    %1655 = vmatpush1.msra.mxu0 %v150
    %1656 = vmatprep.subr.mxu0 0.0
    %1657 = vmatpush1.msra.mxu0 %v151
    %1658 = vmatprep.subr.mxu0 0.0
    %1659 = vmatpush1.msra.mxu0 %v152
    %1660 = vmatprep.subr.mxu0 0.0
    %1661 = vmatpush1.msra.mxu0 %v153
    %1662 = vmatprep.subr.mxu0 0.0
    %1663 = vmatpush1.msra.mxu0 %v154
    %1664 = vmatprep.subr.mxu0 0.0
    %1665 = vmatpush1.msra.mxu0 %v155
    %1666 = vmatprep.subr.mxu0 0.0
    %1667 = vmatpush1.msra.mxu0 %v156
    %1668 = vmatprep.subr.mxu0 0.0
    %1669 = vmatpush1.msra.mxu0 %v157
    %1670 = vmatprep.subr.mxu0 0.0
    %1671 = vmatpush1.msra.mxu0 %v158
    %1672 = vmatprep.subr.mxu0 0.0
    %1673 = vmatpush1.msra.mxu0 %v159
    %1674 = vmatprep.subr.mxu0 0.0
    %1675 = vmatpush1.msra.mxu0 %v160
    %1676 = vmatprep.subr.mxu0 0.0
    %1677 = vmatpush1.msra.mxu0 0.0
    %1678 = vmatprep.subr.mxu0 0.0
    %1679 = vmatpush1.msra.mxu0 0.0
    %1680 = vmatprep.subr.mxu0 0.0
    %1681 = vmatpush1.msra.mxu0 0.0
    %1682 = vmatprep.subr.mxu0 0.0
    %1683 = vmatpush1.msra.mxu0 0.0
    %1684 = vmatprep.subr.mxu0 0.0
    %1685 = vmatpush1.msra.mxu0 0.0
    %1686 = vmatprep.subr.mxu0 0.0
    %1687 = vmatpush1.msra.mxu0 0.0
    %1688 = vmatprep.subr.mxu0 0.0
    %1689 = vmatpush1.msra.mxu0 0.0
    %1690 = vmatprep.subr.mxu0 0.0
    %1691 = vmatpush1.msra.mxu0 0.0
    %1692 = vmatprep.subr.mxu0 0.0
    %1693 = vmatpush1.msra.mxu0 0.0
    %1694 = vmatprep.subr.mxu0 0.0
    %1695 = vmatpush1.msra.mxu0 0.0
    %1696 = vmatprep.subr.mxu0 0.0
    %1697 = vmatpush1.msra.mxu0 0.0
    %1698 = vmatprep.subr.mxu0 0.0
    %1699 = vmatpush1.msra.mxu0 0.0
    %1700 = vmatprep.subr.mxu0 0.0
    %1701 = vmatpush1.msra.mxu0 0.0
    %1702 = vmatprep.subr.mxu0 0.0
    %1703 = vmatpush1.msra.mxu0 0.0
    %1704 = vmatprep.subr.mxu0 0.0
    %1705 = vmatpush1.msra.mxu0 0.0
    %1706 = vmatprep.subr.mxu0 0.0
    %1707 = vmatpush1.msra.mxu0 0.0
    %1708 = vmatprep.mubr.f32.mxu0 0.0
    %1709 = vmatmul.mubr.f32.gmra.mrb[0].mxu0 %v1428
    %v1710 = vpop.f32.mrb[0].mxu0
    %v1711 = vadd.f32 %v1433, %v1710
    %v1712 = vpop.f32.mrb[0].mxu0
    %1713 = vdwg.mxu0
    %v1714 = vxor.u32 %v1501, 2147483648
    %v1715 = vmul.f32 %v1714, 1.442695
    %v1716 = vpow.pop %v1715
    %v1717 = vadd.f32 %v1716, 1.0
    %v1718 = vrcp.pop %v1717
    %v1719 = vmul.f32 1.0, %v1718
    %v1720 = vxor.u32 %v1571, 2147483648
    %v1721 = vmul.f32 %v1720, 1.442695
    %v1722 = vpow.pop %v1721
    %v1723 = vadd.f32 %v1722, 1.0
    %v1724 = vrcp.pop %v1723
    %v1725 = vmul.f32 1.0, %v1724
    %v1726 = vxor.u32 %v1641, 2147483648
    %v1727 = vmul.f32 %v1726, 1.442695
    %v1728 = vpow.pop %v1727
    %v1729 = vadd.f32 %v1728, 1.0
    %v1730 = vrcp.pop %v1729
    %v1731 = vmul.f32 1.0, %v1730
    %v1732 = vtanh.pop %v1711
    %v1733 = vmul.f32 %v1725, %v1420
    %v1734 = vmul.f32 %v1719, %v1732
    %v1735 = vadd.f32 %v1733, %v1734
    %v1736 = vtanh.pop %v1735
    %v1737 = vmul.f32 %v1731, %v1736
    %s1738 = scalar_lea.vmem [#allocation14], 32
    %1739 = vst [vmem:[%s1738] sm:$0xff] %v1737
    %v1740 = vmul.f32 %v1737, %v161
    %v1741 = vmul.f32 %v1737, %v162
    %v1742 = vmul.f32 %v1737, %v163
    %v1743 = vmul.f32 %v1737, %v164
    %s1744 = scalar_lea.vmem [#allocation6], 160
    %v1745 = vld [vmem:[%s1744] sm:$0xff]
    %v1746 = vld [vmem:[%s1744 + $0x8] sm:$0xff]
    %v1747 = vld [vmem:[%s1744 + $0x10] sm:$0xff]
    %v1748 = vld [vmem:[%s1744 + $0x18] sm:$0xff]
    %1749 = vmatprep.subr.mxu0 0.0
    %1750 = vmatpush1.msra.mxu0 %v97
    %1751 = vmatprep.subr.mxu0 0.0
    %1752 = vmatpush1.msra.mxu0 %v98
    %1753 = vmatprep.subr.mxu0 0.0
    %1754 = vmatpush1.msra.mxu0 %v99
    %1755 = vmatprep.subr.mxu0 0.0
    %1756 = vmatpush1.msra.mxu0 %v100
    %1757 = vmatprep.subr.mxu0 0.0
    %1758 = vmatpush1.msra.mxu0 %v101
    %1759 = vmatprep.subr.mxu0 0.0
    %1760 = vmatpush1.msra.mxu0 %v102
    %1761 = vmatprep.subr.mxu0 0.0
    %1762 = vmatpush1.msra.mxu0 %v103
    %1763 = vmatprep.subr.mxu0 0.0
    %1764 = vmatpush1.msra.mxu0 %v104
    %1765 = vmatprep.subr.mxu0 0.0
    %1766 = vmatpush1.msra.mxu0 %v105
    %1767 = vmatprep.subr.mxu0 0.0
    %1768 = vmatpush1.msra.mxu0 %v106
    %1769 = vmatprep.subr.mxu0 0.0
    %1770 = vmatpush1.msra.mxu0 %v107
    %1771 = vmatprep.subr.mxu0 0.0
    %1772 = vmatpush1.msra.mxu0 %v108
    %1773 = vmatprep.subr.mxu0 0.0
    %1774 = vmatpush1.msra.mxu0 %v109
    %1775 = vmatprep.subr.mxu0 0.0
    %1776 = vmatpush1.msra.mxu0 %v110
    %1777 = vmatprep.subr.mxu0 0.0
    %1778 = vmatpush1.msra.mxu0 %v111
    %1779 = vmatprep.subr.mxu0 0.0
    %1780 = vmatpush1.msra.mxu0 %v112
    %1781 = vmatprep.subr.mxu0 0.0
    %1782 = vmatpush1.msra.mxu0 0.0
    %1783 = vmatprep.subr.mxu0 0.0
    %1784 = vmatpush1.msra.mxu0 0.0
    %1785 = vmatprep.subr.mxu0 0.0
    %1786 = vmatpush1.msra.mxu0 0.0
    %1787 = vmatprep.subr.mxu0 0.0
    %1788 = vmatpush1.msra.mxu0 0.0
    %1789 = vmatprep.subr.mxu0 0.0
    %1790 = vmatpush1.msra.mxu0 0.0
    %1791 = vmatprep.subr.mxu0 0.0
    %1792 = vmatpush1.msra.mxu0 0.0
    %1793 = vmatprep.subr.mxu0 0.0
    %1794 = vmatpush1.msra.mxu0 0.0
    %1795 = vmatprep.subr.mxu0 0.0
    %1796 = vmatpush1.msra.mxu0 0.0
    %1797 = vmatprep.subr.mxu0 0.0
    %1798 = vmatpush1.msra.mxu0 0.0
    %1799 = vmatprep.subr.mxu0 0.0
    %1800 = vmatpush1.msra.mxu0 0.0
    %1801 = vmatprep.subr.mxu0 0.0
    %1802 = vmatpush1.msra.mxu0 0.0
    %1803 = vmatprep.subr.mxu0 0.0
    %1804 = vmatpush1.msra.mxu0 0.0
    %1805 = vmatprep.subr.mxu0 0.0
    %1806 = vmatpush1.msra.mxu0 0.0
    %1807 = vmatprep.subr.mxu0 0.0
    %1808 = vmatpush1.msra.mxu0 0.0
    %1809 = vmatprep.subr.mxu0 0.0
    %1810 = vmatpush1.msra.mxu0 0.0
    %1811 = vmatprep.subr.mxu0 0.0
    %1812 = vmatpush1.msra.mxu0 0.0
    %1813 = vmatprep.mubr.f32.mxu0 0.0
    %1814 = vmatmul.mubr.f32.gmra.mrb[0].mxu0 %v1740
    %v1815 = vpop.f32.mrb[0].mxu0
    %v1816 = vadd.f32 %v1745, %v1815
    %v1817 = vpop.f32.mrb[0].mxu0
    %1818 = vdwg.mxu0
    %1819 = vmatprep.subr.mxu0 0.0
    %1820 = vmatpush1.msra.mxu0 %v113
    %1821 = vmatprep.subr.mxu0 0.0
    %1822 = vmatpush1.msra.mxu0 %v114
    %1823 = vmatprep.subr.mxu0 0.0
    %1824 = vmatpush1.msra.mxu0 %v115
    %1825 = vmatprep.subr.mxu0 0.0
    %1826 = vmatpush1.msra.mxu0 %v116
    %1827 = vmatprep.subr.mxu0 0.0
    %1828 = vmatpush1.msra.mxu0 %v117
    %1829 = vmatprep.subr.mxu0 0.0
    %1830 = vmatpush1.msra.mxu0 %v118
    %1831 = vmatprep.subr.mxu0 0.0
    %1832 = vmatpush1.msra.mxu0 %v119
    %1833 = vmatprep.subr.mxu0 0.0
    %1834 = vmatpush1.msra.mxu0 %v120
    %1835 = vmatprep.subr.mxu0 0.0
    %1836 = vmatpush1.msra.mxu0 %v121
    %1837 = vmatprep.subr.mxu0 0.0
    %1838 = vmatpush1.msra.mxu0 %v122
    %1839 = vmatprep.subr.mxu0 0.0
    %1840 = vmatpush1.msra.mxu0 %v123
    %1841 = vmatprep.subr.mxu0 0.0
    %1842 = vmatpush1.msra.mxu0 %v124
    %1843 = vmatprep.subr.mxu0 0.0
    %1844 = vmatpush1.msra.mxu0 %v125
    %1845 = vmatprep.subr.mxu0 0.0
    %1846 = vmatpush1.msra.mxu0 %v126
    %1847 = vmatprep.subr.mxu0 0.0
    %1848 = vmatpush1.msra.mxu0 %v127
    %1849 = vmatprep.subr.mxu0 0.0
    %1850 = vmatpush1.msra.mxu0 %v128
    %1851 = vmatprep.subr.mxu0 0.0
    %1852 = vmatpush1.msra.mxu0 0.0
    %1853 = vmatprep.subr.mxu0 0.0
    %1854 = vmatpush1.msra.mxu0 0.0
    %1855 = vmatprep.subr.mxu0 0.0
    %1856 = vmatpush1.msra.mxu0 0.0
    %1857 = vmatprep.subr.mxu0 0.0
    %1858 = vmatpush1.msra.mxu0 0.0
    %1859 = vmatprep.subr.mxu0 0.0
    %1860 = vmatpush1.msra.mxu0 0.0
    %1861 = vmatprep.subr.mxu0 0.0
    %1862 = vmatpush1.msra.mxu0 0.0
    %1863 = vmatprep.subr.mxu0 0.0
    %1864 = vmatpush1.msra.mxu0 0.0
    %1865 = vmatprep.subr.mxu0 0.0
    %1866 = vmatpush1.msra.mxu0 0.0
    %1867 = vmatprep.subr.mxu0 0.0
    %1868 = vmatpush1.msra.mxu0 0.0
    %1869 = vmatprep.subr.mxu0 0.0
    %1870 = vmatpush1.msra.mxu0 0.0
    %1871 = vmatprep.subr.mxu0 0.0
    %1872 = vmatpush1.msra.mxu0 0.0
    %1873 = vmatprep.subr.mxu0 0.0
    %1874 = vmatpush1.msra.mxu0 0.0
    %1875 = vmatprep.subr.mxu0 0.0
    %1876 = vmatpush1.msra.mxu0 0.0
    %1877 = vmatprep.subr.mxu0 0.0
    %1878 = vmatpush1.msra.mxu0 0.0
    %1879 = vmatprep.subr.mxu0 0.0
    %1880 = vmatpush1.msra.mxu0 0.0
    %1881 = vmatprep.subr.mxu0 0.0
    %1882 = vmatpush1.msra.mxu0 0.0
    %1883 = vmatprep.mubr.f32.mxu0 0.0
    %1884 = vmatmul.mubr.f32.gmra.mrb[0].mxu0 %v1741
    %v1885 = vpop.f32.mrb[0].mxu0
    %v1886 = vadd.f32 %v1746, %v1885
    %v1887 = vpop.f32.mrb[0].mxu0
    %1888 = vdwg.mxu0
    %1889 = vmatprep.subr.mxu0 0.0
    %1890 = vmatpush1.msra.mxu0 %v129
    %1891 = vmatprep.subr.mxu0 0.0
    %1892 = vmatpush1.msra.mxu0 %v130
    %1893 = vmatprep.subr.mxu0 0.0
    %1894 = vmatpush1.msra.mxu0 %v131
    %1895 = vmatprep.subr.mxu0 0.0
    %1896 = vmatpush1.msra.mxu0 %v132
    %1897 = vmatprep.subr.mxu0 0.0
    %1898 = vmatpush1.msra.mxu0 %v133
    %1899 = vmatprep.subr.mxu0 0.0
    %1900 = vmatpush1.msra.mxu0 %v134
    %1901 = vmatprep.subr.mxu0 0.0
    %1902 = vmatpush1.msra.mxu0 %v135
    %1903 = vmatprep.subr.mxu0 0.0
    %1904 = vmatpush1.msra.mxu0 %v136
    %1905 = vmatprep.subr.mxu0 0.0
    %1906 = vmatpush1.msra.mxu0 %v137
    %1907 = vmatprep.subr.mxu0 0.0
    %1908 = vmatpush1.msra.mxu0 %v138
    %1909 = vmatprep.subr.mxu0 0.0
    %1910 = vmatpush1.msra.mxu0 %v139
    %1911 = vmatprep.subr.mxu0 0.0
    %1912 = vmatpush1.msra.mxu0 %v140
    %1913 = vmatprep.subr.mxu0 0.0
    %1914 = vmatpush1.msra.mxu0 %v141
    %1915 = vmatprep.subr.mxu0 0.0
    %1916 = vmatpush1.msra.mxu0 %v142
    %1917 = vmatprep.subr.mxu0 0.0
    %1918 = vmatpush1.msra.mxu0 %v143
    %1919 = vmatprep.subr.mxu0 0.0
    %1920 = vmatpush1.msra.mxu0 %v144
    %1921 = vmatprep.subr.mxu0 0.0
    %1922 = vmatpush1.msra.mxu0 0.0
    %1923 = vmatprep.subr.mxu0 0.0
    %1924 = vmatpush1.msra.mxu0 0.0
    %1925 = vmatprep.subr.mxu0 0.0
    %1926 = vmatpush1.msra.mxu0 0.0
    %1927 = vmatprep.subr.mxu0 0.0
    %1928 = vmatpush1.msra.mxu0 0.0
    %1929 = vmatprep.subr.mxu0 0.0
    %1930 = vmatpush1.msra.mxu0 0.0
    %1931 = vmatprep.subr.mxu0 0.0
    %1932 = vmatpush1.msra.mxu0 0.0
    %1933 = vmatprep.subr.mxu0 0.0
    %1934 = vmatpush1.msra.mxu0 0.0
    %1935 = vmatprep.subr.mxu0 0.0
    %1936 = vmatpush1.msra.mxu0 0.0
    %1937 = vmatprep.subr.mxu0 0.0
    %1938 = vmatpush1.msra.mxu0 0.0
    %1939 = vmatprep.subr.mxu0 0.0
    %1940 = vmatpush1.msra.mxu0 0.0
    %1941 = vmatprep.subr.mxu0 0.0
    %1942 = vmatpush1.msra.mxu0 0.0
    %1943 = vmatprep.subr.mxu0 0.0
    %1944 = vmatpush1.msra.mxu0 0.0
    %1945 = vmatprep.subr.mxu0 0.0
    %1946 = vmatpush1.msra.mxu0 0.0
    %1947 = vmatprep.subr.mxu0 0.0
    %1948 = vmatpush1.msra.mxu0 0.0
    %1949 = vmatprep.subr.mxu0 0.0
    %1950 = vmatpush1.msra.mxu0 0.0
    %1951 = vmatprep.subr.mxu0 0.0
    %1952 = vmatpush1.msra.mxu0 0.0
    %1953 = vmatprep.mubr.f32.mxu0 0.0
    %1954 = vmatmul.mubr.f32.gmra.mrb[0].mxu0 %v1742
    %v1955 = vpop.f32.mrb[0].mxu0
    %v1956 = vadd.f32 %v1747, %v1955
    %v1957 = vpop.f32.mrb[0].mxu0
    %1958 = vdwg.mxu0
    %1959 = vmatprep.subr.mxu0 0.0
    %1960 = vmatpush1.msra.mxu0 %v145
    %1961 = vmatprep.subr.mxu0 0.0
    %1962 = vmatpush1.msra.mxu0 %v146
    %1963 = vmatprep.subr.mxu0 0.0
    %1964 = vmatpush1.msra.mxu0 %v147
    %1965 = vmatprep.subr.mxu0 0.0
    %1966 = vmatpush1.msra.mxu0 %v148
    %1967 = vmatprep.subr.mxu0 0.0
    %1968 = vmatpush1.msra.mxu0 %v149
    %1969 = vmatprep.subr.mxu0 0.0
    %1970 = vmatpush1.msra.mxu0 %v150
    %1971 = vmatprep.subr.mxu0 0.0
    %1972 = vmatpush1.msra.mxu0 %v151
    %1973 = vmatprep.subr.mxu0 0.0
    %1974 = vmatpush1.msra.mxu0 %v152
    %1975 = vmatprep.subr.mxu0 0.0
    %1976 = vmatpush1.msra.mxu0 %v153
    %1977 = vmatprep.subr.mxu0 0.0
    %1978 = vmatpush1.msra.mxu0 %v154
    %1979 = vmatprep.subr.mxu0 0.0
    %1980 = vmatpush1.msra.mxu0 %v155
    %1981 = vmatprep.subr.mxu0 0.0
    %1982 = vmatpush1.msra.mxu0 %v156
    %1983 = vmatprep.subr.mxu0 0.0
    %1984 = vmatpush1.msra.mxu0 %v157
    %1985 = vmatprep.subr.mxu0 0.0
    %1986 = vmatpush1.msra.mxu0 %v158
    %1987 = vmatprep.subr.mxu0 0.0
    %1988 = vmatpush1.msra.mxu0 %v159
    %1989 = vmatprep.subr.mxu0 0.0
    %1990 = vmatpush1.msra.mxu0 %v160
    %1991 = vmatprep.subr.mxu0 0.0
    %1992 = vmatpush1.msra.mxu0 0.0
    %1993 = vmatprep.subr.mxu0 0.0
    %1994 = vmatpush1.msra.mxu0 0.0
    %1995 = vmatprep.subr.mxu0 0.0
    %1996 = vmatpush1.msra.mxu0 0.0
    %1997 = vmatprep.subr.mxu0 0.0
    %1998 = vmatpush1.msra.mxu0 0.0
    %1999 = vmatprep.subr.mxu0 0.0
    %2000 = vmatpush1.msra.mxu0 0.0
    %2001 = vmatprep.subr.mxu0 0.0
    %2002 = vmatpush1.msra.mxu0 0.0
    %2003 = vmatprep.subr.mxu0 0.0
    %2004 = vmatpush1.msra.mxu0 0.0
    %2005 = vmatprep.subr.mxu0 0.0
    %2006 = vmatpush1.msra.mxu0 0.0
    %2007 = vmatprep.subr.mxu0 0.0
    %2008 = vmatpush1.msra.mxu0 0.0
    %2009 = vmatprep.subr.mxu0 0.0
    %2010 = vmatpush1.msra.mxu0 0.0
    %2011 = vmatprep.subr.mxu0 0.0
    %2012 = vmatpush1.msra.mxu0 0.0
    %2013 = vmatprep.subr.mxu0 0.0
    %2014 = vmatpush1.msra.mxu0 0.0
    %2015 = vmatprep.subr.mxu0 0.0
    %2016 = vmatpush1.msra.mxu0 0.0
    %2017 = vmatprep.subr.mxu0 0.0
    %2018 = vmatpush1.msra.mxu0 0.0
    %2019 = vmatprep.subr.mxu0 0.0
    %2020 = vmatpush1.msra.mxu0 0.0
    %2021 = vmatprep.subr.mxu0 0.0
    %2022 = vmatpush1.msra.mxu0 0.0
    %2023 = vmatprep.mubr.f32.mxu0 0.0
    %2024 = vmatmul.mubr.f32.gmra.mrb[0].mxu0 %v1743
    %v2025 = vpop.f32.mrb[0].mxu0
    %v2026 = vadd.f32 %v1748, %v2025
    %v2027 = vpop.f32.mrb[0].mxu0
    %2028 = vdwg.mxu0
    %v2029 = vxor.u32 %v1816, 2147483648
    %v2030 = vmul.f32 %v2029, 1.442695
    %v2031 = vpow.pop %v2030
    %v2032 = vadd.f32 %v2031, 1.0
    %v2033 = vrcp.pop %v2032
    %v2034 = vmul.f32 1.0, %v2033
    %v2035 = vxor.u32 %v1886, 2147483648
    %v2036 = vmul.f32 %v2035, 1.442695
    %v2037 = vpow.pop %v2036
    %v2038 = vadd.f32 %v2037, 1.0
    %v2039 = vrcp.pop %v2038
    %v2040 = vmul.f32 1.0, %v2039
    %v2041 = vxor.u32 %v1956, 2147483648
    %v2042 = vmul.f32 %v2041, 1.442695
    %v2043 = vpow.pop %v2042
    %v2044 = vadd.f32 %v2043, 1.0
    %v2045 = vrcp.pop %v2044
    %v2046 = vmul.f32 1.0, %v2045
    %v2047 = vtanh.pop %v2026
    %v2048 = vmul.f32 %v2040, %v1735
    %v2049 = vmul.f32 %v2034, %v2047
    %v2050 = vadd.f32 %v2048, %v2049
    %v2051 = vtanh.pop %v2050
    %v2052 = vmul.f32 %v2046, %v2051
    %s2053 = scalar_lea.vmem [#allocation14], 40
    %2054 = vst [vmem:[%s2053] sm:$0xff] %v2052
    %v2055 = vmul.f32 %v2052, %v161
    %v2056 = vmul.f32 %v2052, %v162
    %v2057 = vmul.f32 %v2052, %v163
    %v2058 = vmul.f32 %v2052, %v164
    %s2059 = scalar_lea.vmem [#allocation6], 192
    %v2060 = vld [vmem:[%s2059] sm:$0xff]
    %v2061 = vld [vmem:[%s2059 + $0x8] sm:$0xff]
    %v2062 = vld [vmem:[%s2059 + $0x10] sm:$0xff]
    %v2063 = vld [vmem:[%s2059 + $0x18] sm:$0xff]
    %2064 = vmatprep.subr.mxu0 0.0
    %2065 = vmatpush1.msra.mxu0 %v97
    %2066 = vmatprep.subr.mxu0 0.0
    %2067 = vmatpush1.msra.mxu0 %v98
    %2068 = vmatprep.subr.mxu0 0.0
    %2069 = vmatpush1.msra.mxu0 %v99
    %2070 = vmatprep.subr.mxu0 0.0
    %2071 = vmatpush1.msra.mxu0 %v100
    %2072 = vmatprep.subr.mxu0 0.0
    %2073 = vmatpush1.msra.mxu0 %v101
    %2074 = vmatprep.subr.mxu0 0.0
    %2075 = vmatpush1.msra.mxu0 %v102
    %2076 = vmatprep.subr.mxu0 0.0
    %2077 = vmatpush1.msra.mxu0 %v103
    %2078 = vmatprep.subr.mxu0 0.0
    %2079 = vmatpush1.msra.mxu0 %v104
    %2080 = vmatprep.subr.mxu0 0.0
    %2081 = vmatpush1.msra.mxu0 %v105
    %2082 = vmatprep.subr.mxu0 0.0
    %2083 = vmatpush1.msra.mxu0 %v106
    %2084 = vmatprep.subr.mxu0 0.0
    %2085 = vmatpush1.msra.mxu0 %v107
    %2086 = vmatprep.subr.mxu0 0.0
    %2087 = vmatpush1.msra.mxu0 %v108
    %2088 = vmatprep.subr.mxu0 0.0
    %2089 = vmatpush1.msra.mxu0 %v109
    %2090 = vmatprep.subr.mxu0 0.0
    %2091 = vmatpush1.msra.mxu0 %v110
    %2092 = vmatprep.subr.mxu0 0.0
    %2093 = vmatpush1.msra.mxu0 %v111
    %2094 = vmatprep.subr.mxu0 0.0
    %2095 = vmatpush1.msra.mxu0 %v112
    %2096 = vmatprep.subr.mxu0 0.0
    %2097 = vmatpush1.msra.mxu0 0.0
    %2098 = vmatprep.subr.mxu0 0.0
    %2099 = vmatpush1.msra.mxu0 0.0
    %2100 = vmatprep.subr.mxu0 0.0
    %2101 = vmatpush1.msra.mxu0 0.0
    %2102 = vmatprep.subr.mxu0 0.0
    %2103 = vmatpush1.msra.mxu0 0.0
    %2104 = vmatprep.subr.mxu0 0.0
    %2105 = vmatpush1.msra.mxu0 0.0
    %2106 = vmatprep.subr.mxu0 0.0
    %2107 = vmatpush1.msra.mxu0 0.0
    %2108 = vmatprep.subr.mxu0 0.0
    %2109 = vmatpush1.msra.mxu0 0.0
    %2110 = vmatprep.subr.mxu0 0.0
    %2111 = vmatpush1.msra.mxu0 0.0
    %2112 = vmatprep.subr.mxu0 0.0
    %2113 = vmatpush1.msra.mxu0 0.0
    %2114 = vmatprep.subr.mxu0 0.0
    %2115 = vmatpush1.msra.mxu0 0.0
    %2116 = vmatprep.subr.mxu0 0.0
    %2117 = vmatpush1.msra.mxu0 0.0
    %2118 = vmatprep.subr.mxu0 0.0
    %2119 = vmatpush1.msra.mxu0 0.0
    %2120 = vmatprep.subr.mxu0 0.0
    %2121 = vmatpush1.msra.mxu0 0.0
    %2122 = vmatprep.subr.mxu0 0.0
    %2123 = vmatpush1.msra.mxu0 0.0
    %2124 = vmatprep.subr.mxu0 0.0
    %2125 = vmatpush1.msra.mxu0 0.0
    %2126 = vmatprep.subr.mxu0 0.0
    %2127 = vmatpush1.msra.mxu0 0.0
    %2128 = vmatprep.mubr.f32.mxu0 0.0
    %2129 = vmatmul.mubr.f32.gmra.mrb[0].mxu0 %v2055
    %v2130 = vpop.f32.mrb[0].mxu0
    %v2131 = vadd.f32 %v2060, %v2130
    %v2132 = vpop.f32.mrb[0].mxu0
    %2133 = vdwg.mxu0
    %2134 = vmatprep.subr.mxu0 0.0
    %2135 = vmatpush1.msra.mxu0 %v113
    %2136 = vmatprep.subr.mxu0 0.0
    %2137 = vmatpush1.msra.mxu0 %v114
    %2138 = vmatprep.subr.mxu0 0.0
    %2139 = vmatpush1.msra.mxu0 %v115
    %2140 = vmatprep.subr.mxu0 0.0
    %2141 = vmatpush1.msra.mxu0 %v116
    %2142 = vmatprep.subr.mxu0 0.0
    %2143 = vmatpush1.msra.mxu0 %v117
    %2144 = vmatprep.subr.mxu0 0.0
    %2145 = vmatpush1.msra.mxu0 %v118
    %2146 = vmatprep.subr.mxu0 0.0
    %2147 = vmatpush1.msra.mxu0 %v119
    %2148 = vmatprep.subr.mxu0 0.0
    %2149 = vmatpush1.msra.mxu0 %v120
    %2150 = vmatprep.subr.mxu0 0.0
    %2151 = vmatpush1.msra.mxu0 %v121
    %2152 = vmatprep.subr.mxu0 0.0
    %2153 = vmatpush1.msra.mxu0 %v122
    %2154 = vmatprep.subr.mxu0 0.0
    %2155 = vmatpush1.msra.mxu0 %v123
    %2156 = vmatprep.subr.mxu0 0.0
    %2157 = vmatpush1.msra.mxu0 %v124
    %2158 = vmatprep.subr.mxu0 0.0
    %2159 = vmatpush1.msra.mxu0 %v125
    %2160 = vmatprep.subr.mxu0 0.0
    %2161 = vmatpush1.msra.mxu0 %v126
    %2162 = vmatprep.subr.mxu0 0.0
    %2163 = vmatpush1.msra.mxu0 %v127
    %2164 = vmatprep.subr.mxu0 0.0
    %2165 = vmatpush1.msra.mxu0 %v128
    %2166 = vmatprep.subr.mxu0 0.0
    %2167 = vmatpush1.msra.mxu0 0.0
    %2168 = vmatprep.subr.mxu0 0.0
    %2169 = vmatpush1.msra.mxu0 0.0
    %2170 = vmatprep.subr.mxu0 0.0
    %2171 = vmatpush1.msra.mxu0 0.0
    %2172 = vmatprep.subr.mxu0 0.0
    %2173 = vmatpush1.msra.mxu0 0.0
    %2174 = vmatprep.subr.mxu0 0.0
    %2175 = vmatpush1.msra.mxu0 0.0
    %2176 = vmatprep.subr.mxu0 0.0
    %2177 = vmatpush1.msra.mxu0 0.0
    %2178 = vmatprep.subr.mxu0 0.0
    %2179 = vmatpush1.msra.mxu0 0.0
    %2180 = vmatprep.subr.mxu0 0.0
    %2181 = vmatpush1.msra.mxu0 0.0
    %2182 = vmatprep.subr.mxu0 0.0
    %2183 = vmatpush1.msra.mxu0 0.0
    %2184 = vmatprep.subr.mxu0 0.0
    %2185 = vmatpush1.msra.mxu0 0.0
    %2186 = vmatprep.subr.mxu0 0.0
    %2187 = vmatpush1.msra.mxu0 0.0
    %2188 = vmatprep.subr.mxu0 0.0
    %2189 = vmatpush1.msra.mxu0 0.0
    %2190 = vmatprep.subr.mxu0 0.0
    %2191 = vmatpush1.msra.mxu0 0.0
    %2192 = vmatprep.subr.mxu0 0.0
    %2193 = vmatpush1.msra.mxu0 0.0
    %2194 = vmatprep.subr.mxu0 0.0
    %2195 = vmatpush1.msra.mxu0 0.0
    %2196 = vmatprep.subr.mxu0 0.0
    %2197 = vmatpush1.msra.mxu0 0.0
    %2198 = vmatprep.mubr.f32.mxu0 0.0
    %2199 = vmatmul.mubr.f32.gmra.mrb[0].mxu0 %v2056
    %v2200 = vpop.f32.mrb[0].mxu0
    %v2201 = vadd.f32 %v2061, %v2200
    %v2202 = vpop.f32.mrb[0].mxu0
    %2203 = vdwg.mxu0
    %2204 = vmatprep.subr.mxu0 0.0
    %2205 = vmatpush1.msra.mxu0 %v129
    %2206 = vmatprep.subr.mxu0 0.0
    %2207 = vmatpush1.msra.mxu0 %v130
    %2208 = vmatprep.subr.mxu0 0.0
    %2209 = vmatpush1.msra.mxu0 %v131
    %2210 = vmatprep.subr.mxu0 0.0
    %2211 = vmatpush1.msra.mxu0 %v132
    %2212 = vmatprep.subr.mxu0 0.0
    %2213 = vmatpush1.msra.mxu0 %v133
    %2214 = vmatprep.subr.mxu0 0.0
    %2215 = vmatpush1.msra.mxu0 %v134
    %2216 = vmatprep.subr.mxu0 0.0
    %2217 = vmatpush1.msra.mxu0 %v135
    %2218 = vmatprep.subr.mxu0 0.0
    %2219 = vmatpush1.msra.mxu0 %v136
    %2220 = vmatprep.subr.mxu0 0.0
    %2221 = vmatpush1.msra.mxu0 %v137
    %2222 = vmatprep.subr.mxu0 0.0
    %2223 = vmatpush1.msra.mxu0 %v138
    %2224 = vmatprep.subr.mxu0 0.0
    %2225 = vmatpush1.msra.mxu0 %v139
    %2226 = vmatprep.subr.mxu0 0.0
    %2227 = vmatpush1.msra.mxu0 %v140
    %2228 = vmatprep.subr.mxu0 0.0
    %2229 = vmatpush1.msra.mxu0 %v141
    %2230 = vmatprep.subr.mxu0 0.0
    %2231 = vmatpush1.msra.mxu0 %v142
    %2232 = vmatprep.subr.mxu0 0.0
    %2233 = vmatpush1.msra.mxu0 %v143
    %2234 = vmatprep.subr.mxu0 0.0
    %2235 = vmatpush1.msra.mxu0 %v144
    %2236 = vmatprep.subr.mxu0 0.0
    %2237 = vmatpush1.msra.mxu0 0.0
    %2238 = vmatprep.subr.mxu0 0.0
    %2239 = vmatpush1.msra.mxu0 0.0
    %2240 = vmatprep.subr.mxu0 0.0
    %2241 = vmatpush1.msra.mxu0 0.0
    %2242 = vmatprep.subr.mxu0 0.0
    %2243 = vmatpush1.msra.mxu0 0.0
    %2244 = vmatprep.subr.mxu0 0.0
    %2245 = vmatpush1.msra.mxu0 0.0
    %2246 = vmatprep.subr.mxu0 0.0
    %2247 = vmatpush1.msra.mxu0 0.0
    %2248 = vmatprep.subr.mxu0 0.0
    %2249 = vmatpush1.msra.mxu0 0.0
    %2250 = vmatprep.subr.mxu0 0.0
    %2251 = vmatpush1.msra.mxu0 0.0
    %2252 = vmatprep.subr.mxu0 0.0
    %2253 = vmatpush1.msra.mxu0 0.0
    %2254 = vmatprep.subr.mxu0 0.0
    %2255 = vmatpush1.msra.mxu0 0.0
    %2256 = vmatprep.subr.mxu0 0.0
    %2257 = vmatpush1.msra.mxu0 0.0
    %2258 = vmatprep.subr.mxu0 0.0
    %2259 = vmatpush1.msra.mxu0 0.0
    %2260 = vmatprep.subr.mxu0 0.0
    %2261 = vmatpush1.msra.mxu0 0.0
    %2262 = vmatprep.subr.mxu0 0.0
    %2263 = vmatpush1.msra.mxu0 0.0
    %2264 = vmatprep.subr.mxu0 0.0
    %2265 = vmatpush1.msra.mxu0 0.0
    %2266 = vmatprep.subr.mxu0 0.0
    %2267 = vmatpush1.msra.mxu0 0.0
    %2268 = vmatprep.mubr.f32.mxu0 0.0
    %2269 = vmatmul.mubr.f32.gmra.mrb[0].mxu0 %v2057
    %v2270 = vpop.f32.mrb[0].mxu0
    %v2271 = vadd.f32 %v2062, %v2270
    %v2272 = vpop.f32.mrb[0].mxu0
    %2273 = vdwg.mxu0
    %2274 = vmatprep.subr.mxu0 0.0
    %2275 = vmatpush1.msra.mxu0 %v145
    %2276 = vmatprep.subr.mxu0 0.0
    %2277 = vmatpush1.msra.mxu0 %v146
    %2278 = vmatprep.subr.mxu0 0.0
    %2279 = vmatpush1.msra.mxu0 %v147
    %2280 = vmatprep.subr.mxu0 0.0
    %2281 = vmatpush1.msra.mxu0 %v148
    %2282 = vmatprep.subr.mxu0 0.0
    %2283 = vmatpush1.msra.mxu0 %v149
    %2284 = vmatprep.subr.mxu0 0.0
    %2285 = vmatpush1.msra.mxu0 %v150
    %2286 = vmatprep.subr.mxu0 0.0
    %2287 = vmatpush1.msra.mxu0 %v151
    %2288 = vmatprep.subr.mxu0 0.0
    %2289 = vmatpush1.msra.mxu0 %v152
    %2290 = vmatprep.subr.mxu0 0.0
    %2291 = vmatpush1.msra.mxu0 %v153
    %2292 = vmatprep.subr.mxu0 0.0
    %2293 = vmatpush1.msra.mxu0 %v154
    %2294 = vmatprep.subr.mxu0 0.0
    %2295 = vmatpush1.msra.mxu0 %v155
    %2296 = vmatprep.subr.mxu0 0.0
    %2297 = vmatpush1.msra.mxu0 %v156
    %2298 = vmatprep.subr.mxu0 0.0
    %2299 = vmatpush1.msra.mxu0 %v157
    %2300 = vmatprep.subr.mxu0 0.0
    %2301 = vmatpush1.msra.mxu0 %v158
    %2302 = vmatprep.subr.mxu0 0.0
    %2303 = vmatpush1.msra.mxu0 %v159
    %2304 = vmatprep.subr.mxu0 0.0
    %2305 = vmatpush1.msra.mxu0 %v160
    %2306 = vmatprep.subr.mxu0 0.0
    %2307 = vmatpush1.msra.mxu0 0.0
    %2308 = vmatprep.subr.mxu0 0.0
    %2309 = vmatpush1.msra.mxu0 0.0
    %2310 = vmatprep.subr.mxu0 0.0
    %2311 = vmatpush1.msra.mxu0 0.0
    %2312 = vmatprep.subr.mxu0 0.0
    %2313 = vmatpush1.msra.mxu0 0.0
    %2314 = vmatprep.subr.mxu0 0.0
    %2315 = vmatpush1.msra.mxu0 0.0
    %2316 = vmatprep.subr.mxu0 0.0
    %2317 = vmatpush1.msra.mxu0 0.0
    %2318 = vmatprep.subr.mxu0 0.0
    %2319 = vmatpush1.msra.mxu0 0.0
    %2320 = vmatprep.subr.mxu0 0.0
    %2321 = vmatpush1.msra.mxu0 0.0
    %2322 = vmatprep.subr.mxu0 0.0
    %2323 = vmatpush1.msra.mxu0 0.0
    %2324 = vmatprep.subr.mxu0 0.0
    %2325 = vmatpush1.msra.mxu0 0.0
    %2326 = vmatprep.subr.mxu0 0.0
    %2327 = vmatpush1.msra.mxu0 0.0
    %2328 = vmatprep.subr.mxu0 0.0
    %2329 = vmatpush1.msra.mxu0 0.0
    %2330 = vmatprep.subr.mxu0 0.0
    %2331 = vmatpush1.msra.mxu0 0.0
    %2332 = vmatprep.subr.mxu0 0.0
    %2333 = vmatpush1.msra.mxu0 0.0
    %2334 = vmatprep.subr.mxu0 0.0
    %2335 = vmatpush1.msra.mxu0 0.0
    %2336 = vmatprep.subr.mxu0 0.0
    %2337 = vmatpush1.msra.mxu0 0.0
    %2338 = vmatprep.mubr.f32.mxu0 0.0
    %2339 = vmatmul.mubr.f32.gmra.mrb[0].mxu0 %v2058
    %v2340 = vpop.f32.mrb[0].mxu0
    %v2341 = vadd.f32 %v2063, %v2340
    %v2342 = vpop.f32.mrb[0].mxu0
    %2343 = vdwg.mxu0
    %v2344 = vxor.u32 %v2131, 2147483648
    %v2345 = vmul.f32 %v2344, 1.442695
    %v2346 = vpow.pop %v2345
    %v2347 = vadd.f32 %v2346, 1.0
    %v2348 = vrcp.pop %v2347
    %v2349 = vmul.f32 1.0, %v2348
    %v2350 = vxor.u32 %v2201, 2147483648
    %v2351 = vmul.f32 %v2350, 1.442695
    %v2352 = vpow.pop %v2351
    %v2353 = vadd.f32 %v2352, 1.0
    %v2354 = vrcp.pop %v2353
    %v2355 = vmul.f32 1.0, %v2354
    %v2356 = vxor.u32 %v2271, 2147483648
    %v2357 = vmul.f32 %v2356, 1.442695
    %v2358 = vpow.pop %v2357
    %v2359 = vadd.f32 %v2358, 1.0
    %v2360 = vrcp.pop %v2359
    %v2361 = vmul.f32 1.0, %v2360
    %v2362 = vtanh.pop %v2341
    %v2363 = vmul.f32 %v2355, %v2050
    %v2364 = vmul.f32 %v2349, %v2362
    %v2365 = vadd.f32 %v2363, %v2364
    %v2366 = vtanh.pop %v2365
    %v2367 = vmul.f32 %v2361, %v2366
    %s2368 = scalar_lea.vmem [#allocation14], 48
    %2369 = vst [vmem:[%s2368] sm:$0xff] %v2367
    %v2370 = vmul.f32 %v2367, %v161
    %v2371 = vmul.f32 %v2367, %v162
    %v2372 = vmul.f32 %v2367, %v163
    %v2373 = vmul.f32 %v2367, %v164
    %s2374 = scalar_lea.vmem [#allocation6], 224
    %v2375 = vld [vmem:[%s2374] sm:$0xff]
    %v2376 = vld [vmem:[%s2374 + $0x8] sm:$0xff]
    %v2377 = vld [vmem:[%s2374 + $0x10] sm:$0xff]
    %v2378 = vld [vmem:[%s2374 + $0x18] sm:$0xff]
    %2379 = vmatprep.subr.mxu0 0.0
    %2380 = vmatpush1.msra.mxu0 %v97
    %2381 = vmatprep.subr.mxu0 0.0
    %2382 = vmatpush1.msra.mxu0 %v98
    %2383 = vmatprep.subr.mxu0 0.0
    %2384 = vmatpush1.msra.mxu0 %v99
    %2385 = vmatprep.subr.mxu0 0.0
    %2386 = vmatpush1.msra.mxu0 %v100
    %2387 = vmatprep.subr.mxu0 0.0
    %2388 = vmatpush1.msra.mxu0 %v101
    %2389 = vmatprep.subr.mxu0 0.0
    %2390 = vmatpush1.msra.mxu0 %v102
    %2391 = vmatprep.subr.mxu0 0.0
    %2392 = vmatpush1.msra.mxu0 %v103
    %2393 = vmatprep.subr.mxu0 0.0
    %2394 = vmatpush1.msra.mxu0 %v104
    %2395 = vmatprep.subr.mxu0 0.0
    %2396 = vmatpush1.msra.mxu0 %v105
    %2397 = vmatprep.subr.mxu0 0.0
    %2398 = vmatpush1.msra.mxu0 %v106
    %2399 = vmatprep.subr.mxu0 0.0
    %2400 = vmatpush1.msra.mxu0 %v107
    %2401 = vmatprep.subr.mxu0 0.0
    %2402 = vmatpush1.msra.mxu0 %v108
    %2403 = vmatprep.subr.mxu0 0.0
    %2404 = vmatpush1.msra.mxu0 %v109
    %2405 = vmatprep.subr.mxu0 0.0
    %2406 = vmatpush1.msra.mxu0 %v110
    %2407 = vmatprep.subr.mxu0 0.0
    %2408 = vmatpush1.msra.mxu0 %v111
    %2409 = vmatprep.subr.mxu0 0.0
    %2410 = vmatpush1.msra.mxu0 %v112
    %2411 = vmatprep.subr.mxu0 0.0
    %2412 = vmatpush1.msra.mxu0 0.0
    %2413 = vmatprep.subr.mxu0 0.0
    %2414 = vmatpush1.msra.mxu0 0.0
    %2415 = vmatprep.subr.mxu0 0.0
    %2416 = vmatpush1.msra.mxu0 0.0
    %2417 = vmatprep.subr.mxu0 0.0
    %2418 = vmatpush1.msra.mxu0 0.0
    %2419 = vmatprep.subr.mxu0 0.0
    %2420 = vmatpush1.msra.mxu0 0.0
    %2421 = vmatprep.subr.mxu0 0.0
    %2422 = vmatpush1.msra.mxu0 0.0
    %2423 = vmatprep.subr.mxu0 0.0
    %2424 = vmatpush1.msra.mxu0 0.0
    %2425 = vmatprep.subr.mxu0 0.0
    %2426 = vmatpush1.msra.mxu0 0.0
    %2427 = vmatprep.subr.mxu0 0.0
    %2428 = vmatpush1.msra.mxu0 0.0
    %2429 = vmatprep.subr.mxu0 0.0
    %2430 = vmatpush1.msra.mxu0 0.0
    %2431 = vmatprep.subr.mxu0 0.0
    %2432 = vmatpush1.msra.mxu0 0.0
    %2433 = vmatprep.subr.mxu0 0.0
    %2434 = vmatpush1.msra.mxu0 0.0
    %2435 = vmatprep.subr.mxu0 0.0
    %2436 = vmatpush1.msra.mxu0 0.0
    %2437 = vmatprep.subr.mxu0 0.0
    %2438 = vmatpush1.msra.mxu0 0.0
    %2439 = vmatprep.subr.mxu0 0.0
    %2440 = vmatpush1.msra.mxu0 0.0
    %2441 = vmatprep.subr.mxu0 0.0
    %2442 = vmatpush1.msra.mxu0 0.0
    %2443 = vmatprep.mubr.f32.mxu0 0.0
    %2444 = vmatmul.mubr.f32.gmra.mrb[0].mxu0 %v2370
    %v2445 = vpop.f32.mrb[0].mxu0
    %v2446 = vadd.f32 %v2375, %v2445
    %v2447 = vpop.f32.mrb[0].mxu0
    %2448 = vdwg.mxu0
    %2449 = vmatprep.subr.mxu0 0.0
    %2450 = vmatpush1.msra.mxu0 %v113
    %2451 = vmatprep.subr.mxu0 0.0
    %2452 = vmatpush1.msra.mxu0 %v114
    %2453 = vmatprep.subr.mxu0 0.0
    %2454 = vmatpush1.msra.mxu0 %v115
    %2455 = vmatprep.subr.mxu0 0.0
    %2456 = vmatpush1.msra.mxu0 %v116
    %2457 = vmatprep.subr.mxu0 0.0
    %2458 = vmatpush1.msra.mxu0 %v117
    %2459 = vmatprep.subr.mxu0 0.0
    %2460 = vmatpush1.msra.mxu0 %v118
    %2461 = vmatprep.subr.mxu0 0.0
    %2462 = vmatpush1.msra.mxu0 %v119
    %2463 = vmatprep.subr.mxu0 0.0
    %2464 = vmatpush1.msra.mxu0 %v120
    %2465 = vmatprep.subr.mxu0 0.0
    %2466 = vmatpush1.msra.mxu0 %v121
    %2467 = vmatprep.subr.mxu0 0.0
    %2468 = vmatpush1.msra.mxu0 %v122
    %2469 = vmatprep.subr.mxu0 0.0
    %2470 = vmatpush1.msra.mxu0 %v123
    %2471 = vmatprep.subr.mxu0 0.0
    %2472 = vmatpush1.msra.mxu0 %v124
    %2473 = vmatprep.subr.mxu0 0.0
    %2474 = vmatpush1.msra.mxu0 %v125
    %2475 = vmatprep.subr.mxu0 0.0
    %2476 = vmatpush1.msra.mxu0 %v126
    %2477 = vmatprep.subr.mxu0 0.0
    %2478 = vmatpush1.msra.mxu0 %v127
    %2479 = vmatprep.subr.mxu0 0.0
    %2480 = vmatpush1.msra.mxu0 %v128
    %2481 = vmatprep.subr.mxu0 0.0
    %2482 = vmatpush1.msra.mxu0 0.0
    %2483 = vmatprep.subr.mxu0 0.0
    %2484 = vmatpush1.msra.mxu0 0.0
    %2485 = vmatprep.subr.mxu0 0.0
    %2486 = vmatpush1.msra.mxu0 0.0
    %2487 = vmatprep.subr.mxu0 0.0
    %2488 = vmatpush1.msra.mxu0 0.0
    %2489 = vmatprep.subr.mxu0 0.0
    %2490 = vmatpush1.msra.mxu0 0.0
    %2491 = vmatprep.subr.mxu0 0.0
    %2492 = vmatpush1.msra.mxu0 0.0
    %2493 = vmatprep.subr.mxu0 0.0
    %2494 = vmatpush1.msra.mxu0 0.0
    %2495 = vmatprep.subr.mxu0 0.0
    %2496 = vmatpush1.msra.mxu0 0.0
    %2497 = vmatprep.subr.mxu0 0.0
    %2498 = vmatpush1.msra.mxu0 0.0
    %2499 = vmatprep.subr.mxu0 0.0
    %2500 = vmatpush1.msra.mxu0 0.0
    %2501 = vmatprep.subr.mxu0 0.0
    %2502 = vmatpush1.msra.mxu0 0.0
    %2503 = vmatprep.subr.mxu0 0.0
    %2504 = vmatpush1.msra.mxu0 0.0
    %2505 = vmatprep.subr.mxu0 0.0
    %2506 = vmatpush1.msra.mxu0 0.0
    %2507 = vmatprep.subr.mxu0 0.0
    %2508 = vmatpush1.msra.mxu0 0.0
    %2509 = vmatprep.subr.mxu0 0.0
    %2510 = vmatpush1.msra.mxu0 0.0
    %2511 = vmatprep.subr.mxu0 0.0
    %2512 = vmatpush1.msra.mxu0 0.0
    %2513 = vmatprep.mubr.f32.mxu0 0.0
    %2514 = vmatmul.mubr.f32.gmra.mrb[0].mxu0 %v2371
    %v2515 = vpop.f32.mrb[0].mxu0
    %v2516 = vadd.f32 %v2376, %v2515
    %v2517 = vpop.f32.mrb[0].mxu0
    %2518 = vdwg.mxu0
    %2519 = vmatprep.subr.mxu0 0.0
    %2520 = vmatpush1.msra.mxu0 %v129
    %2521 = vmatprep.subr.mxu0 0.0
    %2522 = vmatpush1.msra.mxu0 %v130
    %2523 = vmatprep.subr.mxu0 0.0
    %2524 = vmatpush1.msra.mxu0 %v131
    %2525 = vmatprep.subr.mxu0 0.0
    %2526 = vmatpush1.msra.mxu0 %v132
    %2527 = vmatprep.subr.mxu0 0.0
    %2528 = vmatpush1.msra.mxu0 %v133
    %2529 = vmatprep.subr.mxu0 0.0
    %2530 = vmatpush1.msra.mxu0 %v134
    %2531 = vmatprep.subr.mxu0 0.0
    %2532 = vmatpush1.msra.mxu0 %v135
    %2533 = vmatprep.subr.mxu0 0.0
    %2534 = vmatpush1.msra.mxu0 %v136
    %2535 = vmatprep.subr.mxu0 0.0
    %2536 = vmatpush1.msra.mxu0 %v137
    %2537 = vmatprep.subr.mxu0 0.0
    %2538 = vmatpush1.msra.mxu0 %v138
    %2539 = vmatprep.subr.mxu0 0.0
    %2540 = vmatpush1.msra.mxu0 %v139
    %2541 = vmatprep.subr.mxu0 0.0
    %2542 = vmatpush1.msra.mxu0 %v140
    %2543 = vmatprep.subr.mxu0 0.0
    %2544 = vmatpush1.msra.mxu0 %v141
    %2545 = vmatprep.subr.mxu0 0.0
    %2546 = vmatpush1.msra.mxu0 %v142
    %2547 = vmatprep.subr.mxu0 0.0
    %2548 = vmatpush1.msra.mxu0 %v143
    %2549 = vmatprep.subr.mxu0 0.0
    %2550 = vmatpush1.msra.mxu0 %v144
    %2551 = vmatprep.subr.mxu0 0.0
    %2552 = vmatpush1.msra.mxu0 0.0
    %2553 = vmatprep.subr.mxu0 0.0
    %2554 = vmatpush1.msra.mxu0 0.0
    %2555 = vmatprep.subr.mxu0 0.0
    %2556 = vmatpush1.msra.mxu0 0.0
    %2557 = vmatprep.subr.mxu0 0.0
    %2558 = vmatpush1.msra.mxu0 0.0
    %2559 = vmatprep.subr.mxu0 0.0
    %2560 = vmatpush1.msra.mxu0 0.0
    %2561 = vmatprep.subr.mxu0 0.0
    %2562 = vmatpush1.msra.mxu0 0.0
    %2563 = vmatprep.subr.mxu0 0.0
    %2564 = vmatpush1.msra.mxu0 0.0
    %2565 = vmatprep.subr.mxu0 0.0
    %2566 = vmatpush1.msra.mxu0 0.0
    %2567 = vmatprep.subr.mxu0 0.0
    %2568 = vmatpush1.msra.mxu0 0.0
    %2569 = vmatprep.subr.mxu0 0.0
    %2570 = vmatpush1.msra.mxu0 0.0
    %2571 = vmatprep.subr.mxu0 0.0
    %2572 = vmatpush1.msra.mxu0 0.0
    %2573 = vmatprep.subr.mxu0 0.0
    %2574 = vmatpush1.msra.mxu0 0.0
    %2575 = vmatprep.subr.mxu0 0.0
    %2576 = vmatpush1.msra.mxu0 0.0
    %2577 = vmatprep.subr.mxu0 0.0
    %2578 = vmatpush1.msra.mxu0 0.0
    %2579 = vmatprep.subr.mxu0 0.0
    %2580 = vmatpush1.msra.mxu0 0.0
    %2581 = vmatprep.subr.mxu0 0.0
    %2582 = vmatpush1.msra.mxu0 0.0
    %2583 = vmatprep.mubr.f32.mxu0 0.0
    %2584 = vmatmul.mubr.f32.gmra.mrb[0].mxu0 %v2372
    %v2585 = vpop.f32.mrb[0].mxu0
    %v2586 = vadd.f32 %v2377, %v2585
    %v2587 = vpop.f32.mrb[0].mxu0
    %2588 = vdwg.mxu0
    %2589 = vmatprep.subr.mxu0 0.0
    %2590 = vmatpush1.msra.mxu0 %v145
    %2591 = vmatprep.subr.mxu0 0.0
    %2592 = vmatpush1.msra.mxu0 %v146
    %2593 = vmatprep.subr.mxu0 0.0
    %2594 = vmatpush1.msra.mxu0 %v147
    %2595 = vmatprep.subr.mxu0 0.0
    %2596 = vmatpush1.msra.mxu0 %v148
    %2597 = vmatprep.subr.mxu0 0.0
    %2598 = vmatpush1.msra.mxu0 %v149
    %2599 = vmatprep.subr.mxu0 0.0
    %2600 = vmatpush1.msra.mxu0 %v150
    %2601 = vmatprep.subr.mxu0 0.0
    %2602 = vmatpush1.msra.mxu0 %v151
    %2603 = vmatprep.subr.mxu0 0.0
    %2604 = vmatpush1.msra.mxu0 %v152
    %2605 = vmatprep.subr.mxu0 0.0
    %2606 = vmatpush1.msra.mxu0 %v153
    %2607 = vmatprep.subr.mxu0 0.0
    %2608 = vmatpush1.msra.mxu0 %v154
    %2609 = vmatprep.subr.mxu0 0.0
    %2610 = vmatpush1.msra.mxu0 %v155
    %2611 = vmatprep.subr.mxu0 0.0
    %2612 = vmatpush1.msra.mxu0 %v156
    %2613 = vmatprep.subr.mxu0 0.0
    %2614 = vmatpush1.msra.mxu0 %v157
    %2615 = vmatprep.subr.mxu0 0.0
    %2616 = vmatpush1.msra.mxu0 %v158
    %2617 = vmatprep.subr.mxu0 0.0
    %2618 = vmatpush1.msra.mxu0 %v159
    %2619 = vmatprep.subr.mxu0 0.0
    %2620 = vmatpush1.msra.mxu0 %v160
    %2621 = vmatprep.subr.mxu0 0.0
    %2622 = vmatpush1.msra.mxu0 0.0
    %2623 = vmatprep.subr.mxu0 0.0
    %2624 = vmatpush1.msra.mxu0 0.0
    %2625 = vmatprep.subr.mxu0 0.0
    %2626 = vmatpush1.msra.mxu0 0.0
    %2627 = vmatprep.subr.mxu0 0.0
    %2628 = vmatpush1.msra.mxu0 0.0
    %2629 = vmatprep.subr.mxu0 0.0
    %2630 = vmatpush1.msra.mxu0 0.0
    %2631 = vmatprep.subr.mxu0 0.0
    %2632 = vmatpush1.msra.mxu0 0.0
    %2633 = vmatprep.subr.mxu0 0.0
    %2634 = vmatpush1.msra.mxu0 0.0
    %2635 = vmatprep.subr.mxu0 0.0
    %2636 = vmatpush1.msra.mxu0 0.0
    %2637 = vmatprep.subr.mxu0 0.0
    %2638 = vmatpush1.msra.mxu0 0.0
    %2639 = vmatprep.subr.mxu0 0.0
    %2640 = vmatpush1.msra.mxu0 0.0
    %2641 = vmatprep.subr.mxu0 0.0
    %2642 = vmatpush1.msra.mxu0 0.0
    %2643 = vmatprep.subr.mxu0 0.0
    %2644 = vmatpush1.msra.mxu0 0.0
    %2645 = vmatprep.subr.mxu0 0.0
    %2646 = vmatpush1.msra.mxu0 0.0
    %2647 = vmatprep.subr.mxu0 0.0
    %2648 = vmatpush1.msra.mxu0 0.0
    %2649 = vmatprep.subr.mxu0 0.0
    %2650 = vmatpush1.msra.mxu0 0.0
    %2651 = vmatprep.subr.mxu0 0.0
    %2652 = vmatpush1.msra.mxu0 0.0
    %2653 = vmatprep.mubr.f32.mxu0 0.0
    %2654 = vmatmul.mubr.f32.gmra.mrb[0].mxu0 %v2373
    %v2655 = vpop.f32.mrb[0].mxu0
    %v2656 = vadd.f32 %v2378, %v2655
    %v2657 = vpop.f32.mrb[0].mxu0
    %2658 = vdwg.mxu0
    %v2659 = vxor.u32 %v2446, 2147483648
    %v2660 = vmul.f32 %v2659, 1.442695
    %v2661 = vpow.pop %v2660
    %v2662 = vadd.f32 %v2661, 1.0
    %v2663 = vrcp.pop %v2662
    %v2664 = vmul.f32 1.0, %v2663
    %v2665 = vxor.u32 %v2516, 2147483648
    %v2666 = vmul.f32 %v2665, 1.442695
    %v2667 = vpow.pop %v2666
    %v2668 = vadd.f32 %v2667, 1.0
    %v2669 = vrcp.pop %v2668
    %v2670 = vmul.f32 1.0, %v2669
    %v2671 = vxor.u32 %v2586, 2147483648
    %v2672 = vmul.f32 %v2671, 1.442695
    %v2673 = vpow.pop %v2672
    %v2674 = vadd.f32 %v2673, 1.0
    %v2675 = vrcp.pop %v2674
    %v2676 = vmul.f32 1.0, %v2675
    %v2677 = vtanh.pop %v2656
    %v2678 = vmul.f32 %v2670, %v2365
    %v2679 = vmul.f32 %v2664, %v2677
    %v2680 = vadd.f32 %v2678, %v2679
    %v2681 = vtanh.pop %v2680
    %v2682 = vmul.f32 %v2676, %v2681
    %s2683 = scalar_lea.vmem [#allocation14], 56
    %2684 = vst [vmem:[%s2683] sm:$0xff] %v2682
    %2685 = vst [vmem:[#allocation2] sm:$0xff] %v2682
    %2686 = vst [vmem:[#allocation3] sm:$0xff] %v2680
    // Predicated region
    $region42: #{tpu_custom_call.1} parent=1 // pred_check
      %p2687 = pneg %p74
    $region43: #{tpu_custom_call.1} parent=1 // pred_check_branch
      %2689 = sbr.rel (%p2687) target = $region45
    $region44: #{tpu_custom_call.1} parent=1 // pred_region
      %2690 = vst [vmem:[#allocation15] sm:$0xff] %v2682
      %2691 = vst [vmem:[#allocation17] sm:$0xff] %v2680
    $region45: #{tpu_custom_call.1} parent=1 // pred_fallthru
      _
    // Predicated region
    $region46: #{tpu_custom_call.1} parent=1 // pred_check
      _
    $region47: #{tpu_custom_call.1} parent=1 // pred_check_branch
      %2693 = sbr.rel (0) target = $region49
    $region48: #{tpu_custom_call.1} parent=1 // pred_region
      %s2695 = ssub.s32 1024, 1024
      %2696 = vsyncadd [#allocation8], %s2695
      %s2697 = sshll.u32 [#allocation14], 4
      %s2698 = int_to_ptr.vmem [resolvable:$true] %s2697
      %2703 = dma.vmem_to_hbm [thread:$0]  %s2698, 1024, %s5, [#allocation8], 128, 128, 8
    $region49: #{tpu_custom_call.1} parent=1 // pred_fallthru
      _
    // Predicated region
    $region50: #{tpu_custom_call.1} parent=1 // pred_check
      _
    $region51: #{tpu_custom_call.1} parent=1 // pred_check_branch
      %2705 = sbr.rel (0) target = $region53
    $region52: #{tpu_custom_call.1} parent=1 // pred_region
      %s2707 = ssub.s32 128, 128
      %2708 = vsyncadd [#allocation16], %s2707
      %s2710 = sshll.u32 [#allocation15], 4
      %s2711 = int_to_ptr.vmem [resolvable:$true] %s2710
      %2713 = dma.vmem_to_hbm [thread:$0]  %s2711, 128, %s6, [#allocation16]
    $region53: #{tpu_custom_call.1} parent=1 // pred_fallthru
      _
    // Predicated region
    $region54: #{tpu_custom_call.1} parent=1 // pred_check
      _
    $region55: #{tpu_custom_call.1} parent=1 // pred_check_branch
      %2715 = sbr.rel (0) target = $region57
    $region56: #{tpu_custom_call.1} parent=1 // pred_region
      %s2717 = ssub.s32 128, 128
      %2718 = vsyncadd [#allocation16], %s2717
      %s2720 = sshll.u32 [#allocation17], 4
      %s2721 = int_to_ptr.vmem [resolvable:$true] %s2720
      %2723 = dma.vmem_to_hbm [thread:$0]  %s2721, 128, %s7, [#allocation16]
    $region57: #{tpu_custom_call.1} parent=1 // pred_fallthru
      _
    // Predicated region
    $region58: #{tpu_custom_call.1} parent=1 // pred_check
      _
    $region59: #{tpu_custom_call.1} parent=1 // pred_check_branch
      %2725 = sbr.rel (0) target = $region61
    $region60: #{tpu_custom_call.1} parent=1 // pred_region
      %2726 = dma.done [#allocation8], 1024
    $region61: #{tpu_custom_call.1} parent=1 // pred_fallthru
      _
    // Predicated region
    $region62: #{tpu_custom_call.1} parent=1 // pred_check
      _
    $region63: #{tpu_custom_call.1} parent=1 // pred_check_branch
      %2728 = sbr.rel (0) target = $region65
    $region64: #{tpu_custom_call.1} parent=1 // pred_region
      %2729 = dma.done [#allocation16], 128
    $region65: #{tpu_custom_call.1} parent=1 // pred_fallthru
      _
    // Predicated region
    $region66: #{tpu_custom_call.1} parent=1 // pred_check
      _
    $region67: #{tpu_custom_call.1} parent=1 // pred_check_branch
      %2731 = sbr.rel (0) target = $region69
    $region68: #{tpu_custom_call.1} parent=1 // pred_region
      %2732 = dma.done [#allocation16], 128
    $region69: #{tpu_custom_call.1} parent=1 // pred_fallthru
      _
    %2733 = vsyncpa [#allocation7], 1
    %2734 = vsyncpa [#allocation10], 1
    %2735 = vsyncpa [#allocation13], 1
    %2736 = vsyncpa [#allocation8], 1
    %2737 = vsyncpa [#allocation16], 1
  %2738 = vsyncmov [#allocation5]
  %s2739 = vpop.sfrf %2738
  %p2740 = scmp.eq.s32.totalorder %s2739, 0
  %p2741 = pneg %p2740
  %2743 = shalt.err (%p2741)

</llo_original>
